<compile_context>
chip_gen: v7x
topology: tpu7x:2x2x1
jax: 0.10.0
libtpu: 0.0.40
codegen_flags: <defaults>
</compile_context>

<pallas_src>
import math

import jax
import jax.numpy as jnp
from jax.experimental import pallas as pl
from jax.experimental.pallas import tpu as pltpu

EPS = 1e-5


# --------------------------- pass 1: conv + partial BN stats ---------------
def _conv_stats_kernel(xm_ref, h1_ref, h2_ref, w_ref, y_ref, sum_ref, sq_ref):
    # xm_ref : (1, TH, W+2, C)  f32   main rows of the zero-padded input tile
    # h1_ref : (1, 1,  W+2, C)  f32   halo row TH
    # h2_ref : (1, 1,  W+2, C)  f32   halo row TH+1
    # w_ref  : (9, Cin, Cout)   bf16  conv taps flattened as dh*3+dw
    # y_ref  : (TH*W, Cout)     f32   conv output tile (pre-BN)
    # sum_ref, sq_ref : (1, 1, Cout) f32  per-tile partial sum / sum of squares
    _, TH, Wp2, C = xm_ref.shape
    W = Wp2 - 2
    Cout = w_ref.shape[2]

    # (TH+2, W+2, C) padded row window for this tile (concat along untiled dim)
    xpt = jnp.concatenate([xm_ref[0], h1_ref[0], h2_ref[0]], axis=0)

    acc = jnp.zeros((TH * W, Cout), dtype=jnp.float32)
    for dw in range(3):
        # One column-shifted copy per dw; bf16 inputs, f32 MXU accumulation.
        xw = xpt[:, dw:dw + W, :].reshape((TH + 2) * W, C).astype(jnp.bfloat16)
        for dh in range(3):
            lhs = xw[dh * W: dh * W + TH * W]          # aligned row slice
            acc = acc + jnp.dot(lhs, w_ref[dh * 3 + dw],
                                preferred_element_type=jnp.float32)

    y_ref[...] = acc
    # Single pass over acc: sum and sum-of-squares (var = E[x^2] - E[x]^2).
    sum_ref[0] = jnp.sum(acc, axis=0, keepdims=True)
    sq_ref[0] = jnp.sum(acc * acc, axis=0, keepdims=True)


# --------------------------- pass 2: normalize + residual ------------------
def _bn_residual_kernel(y_ref, x_ref, scale_ref, shift_ref, o_ref):
    # Lane-dense (rows, W*C) layout; scale/shift pre-tiled to (1, W*C).
    o_ref[...] = x_ref[...] + y_ref[...] * scale_ref[...] + shift_ref[...]


def _pick_rows(total, row_bytes, budget, multiple):
    """Largest divisor of `total` that is a multiple of `multiple` and fits."""
    best = None
    for t in range(1, total + 1):
        if total % t or t % multiple or t * row_bytes > budget:
            continue
        best = t
    return best if best is not None else total


def resnet_block(x_nchw, w_oihw, gamma, beta):
    """out = x + BN_trainmode(Conv2d_3x3_s1_p1_nobias(x)); all f32 in/out."""
    N, C, H, W = x_nchw.shape

    # Glue: NCHW -> NHWC, zero-pad spatial dims, flatten conv taps.
    x_nhwc = jnp.transpose(x_nchw, (0, 2, 3, 1))
    xp = jnp.pad(x_nhwc, ((0, 0), (1, 1), (1, 1), (0, 0)))
    w_taps = jnp.transpose(w_oihw, (2, 3, 1, 0)).reshape(9, C, C).astype(jnp.bfloat16)

    # ---- pass 1: tiled over (batch, H row-blocks) --------------------------
    th_mult = 8 // math.gcd(W, 8)          # keep (TH*W) % 8 == 0 for y blocks
    TH = _pick_rows(H, row_bytes=W * C * 4, budget=1 << 20, multiple=th_mult)
    n_h = H // TH
    G = N * n_h

    y_flat, psum, psq = pl.pallas_call(
        _conv_stats_kernel,
        out_shape=(
            jax.ShapeDtypeStruct((N * H * W, C), jnp.float32),
            jax.ShapeDtypeStruct((G, 1, C), jnp.float32),
            jax.ShapeDtypeStruct((G, 1, C), jnp.float32),
        ),
        grid=(N, n_h),
        in_specs=[
            pl.BlockSpec((1, TH, W + 2, C), lambda n, j: (n, j, 0, 0)),
            pl.BlockSpec((1, 1, W + 2, C), lambda n, j: (n, j * TH + TH, 0, 0)),
            pl.BlockSpec((1, 1, W + 2, C), lambda n, j: (n, j * TH + TH + 1, 0, 0)),
            pl.BlockSpec((9, C, C), lambda n, j: (0, 0, 0)),   # weight resident
        ],
        out_specs=(
            pl.BlockSpec((TH * W, C), lambda n, j: (n * n_h + j, 0)),
            pl.BlockSpec((1, 1, C), lambda n, j: (n * n_h + j, 0, 0)),
            pl.BlockSpec((1, 1, C), lambda n, j: (n * n_h + j, 0, 0)),
        ),
        compiler_params=pltpu.CompilerParams(
            dimension_semantics=("parallel", "parallel")),
    )(xp, xp, xp, w_taps)

    # ---- fold BN (batch stats + affine) into per-channel scale / shift -----
    nhw = float(N * H * W)
    mean = jnp.sum(psum, axis=(0, 1)) / nhw
    ex2 = jnp.sum(psq, axis=(0, 1)) / nhw
    var = jnp.maximum(ex2 - mean * mean, 0.0)           # biased (training BN)
    scale = gamma * jax.lax.rsqrt(var + EPS)
    shift = beta - mean * scale
    scale_row = jnp.tile(scale, W).reshape(1, W * C)    # channel fastest-varying
    shift_row = jnp.tile(shift, W).reshape(1, W * C)

    # ---- pass 2: lane-dense normalize + residual ---------------------------
    y2 = y_flat.reshape(N * H, W * C)
    x2 = x_nhwc.reshape(N * H, W * C)
    TR = _pick_rows(N * H, row_bytes=W * C * 4, budget=2 << 20, multiple=8)

    out2 = pl.pallas_call(
        _bn_residual_kernel,
        out_shape=jax.ShapeDtypeStruct((N * H, W * C), jnp.float32),
        grid=(N * H // TR,),
        in_specs=[
            pl.BlockSpec((TR, W * C), lambda i: (i, 0)),
            pl.BlockSpec((TR, W * C), lambda i: (i, 0)),
            pl.BlockSpec((1, W * C), lambda i: (0, 0)),     # resident
            pl.BlockSpec((1, W * C), lambda i: (0, 0)),     # resident
        ],
        out_specs=pl.BlockSpec((TR, W * C), lambda i: (i, 0)),
        compiler_params=pltpu.CompilerParams(
            dimension_semantics=("parallel",)),
    )(y2, x2, scale_row, shift_row)

    return jnp.transpose(out2.reshape(N, H, W, C), (0, 3, 1, 2))


def resnet_block_ref(x_nchw, w_oihw, gamma, beta, cast_inputs_to_bf16=False):
    """Pure-JAX reference (PyTorch training-mode BN). Optionally rounds the
    conv inputs to bf16 to mirror the kernel's bf16-input MXU matmuls."""
    if cast_inputs_to_bf16:
        xc = x_nchw.astype(jnp.bfloat16).astype(jnp.float32)
        wc = w_oihw.astype(jnp.bfloat16).astype(jnp.float32)
    else:
        xc, wc = x_nchw, w_oihw
    y = jax.lax.conv_general_dilated(
        xc, wc, window_strides=(1, 1), padding=((1, 1), (1, 1)),
        dimension_numbers=("NCHW", "OIHW", "NCHW"),
        precision=jax.lax.Precision.HIGHEST)
    mean = jnp.mean(y, axis=(0, 2, 3), keepdims=True)
    var = jnp.mean((y - mean) ** 2, axis=(0, 2, 3), keepdims=True)
    yn = gamma[None, :, None, None] * (y - mean) * jax.lax.rsqrt(var + EPS) \
        + beta[None, :, None, None]
    return x_nchw + yn


if __name__ == "__main__":
    key = jax.random.PRNGKey(0)
    k1, k2, k3, k4 = jax.random.split(key, 4)

    N, conv_dim, H, W = 2, 4, 16, 16
    x = jax.random.normal(k1, (N, conv_dim, H, W), dtype=jnp.float32)
    w = jax.random.normal(k2, (conv_dim, conv_dim, 3, 3), dtype=jnp.float32) * 0.1
    gamma = 1.0 + 0.1 * jax.random.normal(k3, (conv_dim,), dtype=jnp.float32)
    beta = 0.1 * jax.random.normal(k4, (conv_dim,), dtype=jnp.float32)

    out = jax.jit(resnet_block)(x, w, gamma, beta)
    out = jax.block_until_ready(out)

    # Tight check vs. a reference whose conv inputs are rounded to bf16
    # (matches the kernel's bf16-input / f32-accumulate MXU path).
    ref_matched = resnet_block_ref(x, w, gamma, beta, cast_inputs_to_bf16=True)
    assert out.shape == ref_matched.shape and out.dtype == ref_matched.dtype
    assert jnp.allclose(out, ref_matched, atol=2e-4, rtol=2e-4), float(
        jnp.max(jnp.abs(out - ref_matched)))

    # Looser sanity check vs. the full-f32 PyTorch-semantics reference
    # (difference bounded by bf16 rounding of the conv inputs, per perf rec).
    ref_f32 = resnet_block_ref(x, w, gamma, beta)
    assert jnp.allclose(out, ref_f32, atol=1e-1, rtol=1e-1), float(
        jnp.max(jnp.abs(out - ref_f32)))

    print("KERNEL_OK")
</pallas_src>

<mosaic_0001>
module attributes {stable_mosaic.version = 11 : i64} {
  func.func @_conv_stats_kernel(%arg0: i32, %arg1: i32, %arg2: memref<1x16x18x4xf32, #tpu.memory_space<vmem>>, %arg3: memref<1x1x18x4xf32, #tpu.memory_space<vmem>>, %arg4: memref<1x1x18x4xf32, #tpu.memory_space<vmem>>, %arg5: memref<9x4x4xbf16, #tpu.memory_space<vmem>>, %arg6: memref<256x4xf32, #tpu.memory_space<vmem>>, %arg7: memref<1x1x4xf32, #tpu.memory_space<vmem>>, %arg8: memref<1x1x4xf32, #tpu.memory_space<vmem>>) attributes {dimension_semantics = [#tpu.dimension_semantics<parallel>, #tpu.dimension_semantics<parallel>], iteration_bounds = array<i64: 2, 1>, scalar_prefetch = 0 : i64, scratch_operands = 0 : i64, tpu.core_type = #tpu.core_type<tc>, window_params = [{transform_indices = @transform_0, window_bounds = array<i64: 1, 16, 18, 4>}, {transform_indices = @transform_1, window_bounds = array<i64: 1, 1, 18, 4>}, {transform_indices = @transform_2, window_bounds = array<i64: 1, 1, 18, 4>}, {pipeline_mode = #tpu.pipeline_mode<synchronous>, transform_indices = @transform_3, window_bounds = array<i64: 9, 4, 4>}, {transform_indices = @transform_4, window_bounds = array<i64: 256, 4>}, {transform_indices = @transform_5, window_bounds = array<i64: 1, 1, 4>}, {transform_indices = @transform_6, window_bounds = array<i64: 1, 1, 4>}]} {
    %c0 = arith.constant 0 : index
    %c0_0 = arith.constant 0 : index
    %c0_1 = arith.constant 0 : index
    %c0_2 = arith.constant 0 : index
    %0 = vector.load %arg2[%c0, %c0_0, %c0_1, %c0_2] : memref<1x16x18x4xf32, #tpu.memory_space<vmem>>, vector<1x16x18x4xf32>
    %1 = vector.shape_cast %0 : vector<1x16x18x4xf32> to vector<16x18x4xf32>
    %c0_3 = arith.constant 0 : index
    %c0_4 = arith.constant 0 : index
    %c0_5 = arith.constant 0 : index
    %c0_6 = arith.constant 0 : index
    %2 = vector.load %arg3[%c0_3, %c0_4, %c0_5, %c0_6] : memref<1x1x18x4xf32, #tpu.memory_space<vmem>>, vector<1x1x18x4xf32>
    %3 = vector.shape_cast %2 : vector<1x1x18x4xf32> to vector<1x18x4xf32>
    %c0_7 = arith.constant 0 : index
    %c0_8 = arith.constant 0 : index
    %c0_9 = arith.constant 0 : index
    %c0_10 = arith.constant 0 : index
    %4 = vector.load %arg4[%c0_7, %c0_8, %c0_9, %c0_10] : memref<1x1x18x4xf32, #tpu.memory_space<vmem>>, vector<1x1x18x4xf32>
    %5 = vector.shape_cast %4 : vector<1x1x18x4xf32> to vector<1x18x4xf32>
    %6 = tpu.concatenate %1, %3, %5 in 0 : vector<16x18x4xf32>, vector<1x18x4xf32>, vector<1x18x4xf32> -> vector<18x18x4xf32>
    %cst = arith.constant 0.000000e+00 : f32
    %7 = vector.broadcast %cst : f32 to vector<256x4xf32>
    %8 = vector.extract_strided_slice %6 {offsets = [0, 0, 0], sizes = [18, 16, 4], strides = [1, 1, 1]} : vector<18x18x4xf32> to vector<18x16x4xf32>
    %9 = vector.shape_cast %8 : vector<18x16x4xf32> to vector<288x4xf32>
    %10 = arith.truncf %9 : vector<288x4xf32> to vector<288x4xbf16>
    %11 = vector.extract_strided_slice %10 {offsets = [0, 0], sizes = [256, 4], strides = [1, 1]} : vector<288x4xbf16> to vector<256x4xbf16>
    %c0_11 = arith.constant 0 : index
    %c0_12 = arith.constant 0 : index
    %c0_13 = arith.constant 0 : index
    %12 = vector.load %arg5[%c0_11, %c0_12, %c0_13] : memref<9x4x4xbf16, #tpu.memory_space<vmem>>, vector<1x4x4xbf16>
    %13 = vector.shape_cast %12 : vector<1x4x4xbf16> to vector<4x4xbf16>
    %cst_14 = arith.constant dense<0.000000e+00> : vector<256x4xf32>
    %14 = tpu.matmul %11, %13, %cst_14 {dimension_numbers = #tpu.dot_dimension_numbers<[1], [0], [0], [1], [0, 0, 1, 1], [], []>} : vector<256x4xbf16>, vector<4x4xbf16>, vector<256x4xf32> -> vector<256x4xf32>
    %15 = arith.addf %7, %14 : vector<256x4xf32>
    %16 = vector.extract_strided_slice %10 {offsets = [16, 0], sizes = [256, 4], strides = [1, 1]} : vector<288x4xbf16> to vector<256x4xbf16>
    %c3 = arith.constant 3 : index
    %c0_15 = arith.constant 0 : index
    %c0_16 = arith.constant 0 : index
    %17 = vector.load %arg5[%c3, %c0_15, %c0_16] : memref<9x4x4xbf16, #tpu.memory_space<vmem>>, vector<1x4x4xbf16>
    %18 = vector.shape_cast %17 : vector<1x4x4xbf16> to vector<4x4xbf16>
    %cst_17 = arith.constant dense<0.000000e+00> : vector<256x4xf32>
    %19 = tpu.matmul %16, %18, %cst_17 {dimension_numbers = #tpu.dot_dimension_numbers<[1], [0], [0], [1], [0, 0, 1, 1], [], []>} : vector<256x4xbf16>, vector<4x4xbf16>, vector<256x4xf32> -> vector<256x4xf32>
    %20 = arith.addf %15, %19 : vector<256x4xf32>
    %21 = vector.extract_strided_slice %10 {offsets = [32, 0], sizes = [256, 4], strides = [1, 1]} : vector<288x4xbf16> to vector<256x4xbf16>
    %c6 = arith.constant 6 : index
    %c0_18 = arith.constant 0 : index
    %c0_19 = arith.constant 0 : index
    %22 = vector.load %arg5[%c6, %c0_18, %c0_19] : memref<9x4x4xbf16, #tpu.memory_space<vmem>>, vector<1x4x4xbf16>
    %23 = vector.shape_cast %22 : vector<1x4x4xbf16> to vector<4x4xbf16>
    %cst_20 = arith.constant dense<0.000000e+00> : vector<256x4xf32>
    %24 = tpu.matmul %21, %23, %cst_20 {dimension_numbers = #tpu.dot_dimension_numbers<[1], [0], [0], [1], [0, 0, 1, 1], [], []>} : vector<256x4xbf16>, vector<4x4xbf16>, vector<256x4xf32> -> vector<256x4xf32>
    %25 = arith.addf %20, %24 : vector<256x4xf32>
    %26 = vector.extract_strided_slice %6 {offsets = [0, 1, 0], sizes = [18, 16, 4], strides = [1, 1, 1]} : vector<18x18x4xf32> to vector<18x16x4xf32>
    %27 = vector.shape_cast %26 : vector<18x16x4xf32> to vector<288x4xf32>
    %28 = arith.truncf %27 : vector<288x4xf32> to vector<288x4xbf16>
    %29 = vector.extract_strided_slice %28 {offsets = [0, 0], sizes = [256, 4], strides = [1, 1]} : vector<288x4xbf16> to vector<256x4xbf16>
    %c1 = arith.constant 1 : index
    %c0_21 = arith.constant 0 : index
    %c0_22 = arith.constant 0 : index
    %30 = vector.load %arg5[%c1, %c0_21, %c0_22] : memref<9x4x4xbf16, #tpu.memory_space<vmem>>, vector<1x4x4xbf16>
    %31 = vector.shape_cast %30 : vector<1x4x4xbf16> to vector<4x4xbf16>
    %cst_23 = arith.constant dense<0.000000e+00> : vector<256x4xf32>
    %32 = tpu.matmul %29, %31, %cst_23 {dimension_numbers = #tpu.dot_dimension_numbers<[1], [0], [0], [1], [0, 0, 1, 1], [], []>} : vector<256x4xbf16>, vector<4x4xbf16>, vector<256x4xf32> -> vector<256x4xf32>
    %33 = arith.addf %25, %32 : vector<256x4xf32>
    %34 = vector.extract_strided_slice %28 {offsets = [16, 0], sizes = [256, 4], strides = [1, 1]} : vector<288x4xbf16> to vector<256x4xbf16>
    %c4 = arith.constant 4 : index
    %c0_24 = arith.constant 0 : index
    %c0_25 = arith.constant 0 : index
    %35 = vector.load %arg5[%c4, %c0_24, %c0_25] : memref<9x4x4xbf16, #tpu.memory_space<vmem>>, vector<1x4x4xbf16>
    %36 = vector.shape_cast %35 : vector<1x4x4xbf16> to vector<4x4xbf16>
    %cst_26 = arith.constant dense<0.000000e+00> : vector<256x4xf32>
    %37 = tpu.matmul %34, %36, %cst_26 {dimension_numbers = #tpu.dot_dimension_numbers<[1], [0], [0], [1], [0, 0, 1, 1], [], []>} : vector<256x4xbf16>, vector<4x4xbf16>, vector<256x4xf32> -> vector<256x4xf32>
    %38 = arith.addf %33, %37 : vector<256x4xf32>
    %39 = vector.extract_strided_slice %28 {offsets = [32, 0], sizes = [256, 4], strides = [1, 1]} : vector<288x4xbf16> to vector<256x4xbf16>
    %c7 = arith.constant 7 : index
    %c0_27 = arith.constant 0 : index
    %c0_28 = arith.constant 0 : index
    %40 = vector.load %arg5[%c7, %c0_27, %c0_28] : memref<9x4x4xbf16, #tpu.memory_space<vmem>>, vector<1x4x4xbf16>
    %41 = vector.shape_cast %40 : vector<1x4x4xbf16> to vector<4x4xbf16>
    %cst_29 = arith.constant dense<0.000000e+00> : vector<256x4xf32>
    %42 = tpu.matmul %39, %41, %cst_29 {dimension_numbers = #tpu.dot_dimension_numbers<[1], [0], [0], [1], [0, 0, 1, 1], [], []>} : vector<256x4xbf16>, vector<4x4xbf16>, vector<256x4xf32> -> vector<256x4xf32>
    %43 = arith.addf %38, %42 : vector<256x4xf32>
    %44 = vector.extract_strided_slice %6 {offsets = [0, 2, 0], sizes = [18, 16, 4], strides = [1, 1, 1]} : vector<18x18x4xf32> to vector<18x16x4xf32>
    %45 = vector.shape_cast %44 : vector<18x16x4xf32> to vector<288x4xf32>
    %46 = arith.truncf %45 : vector<288x4xf32> to vector<288x4xbf16>
    %47 = vector.extract_strided_slice %46 {offsets = [0, 0], sizes = [256, 4], strides = [1, 1]} : vector<288x4xbf16> to vector<256x4xbf16>
    %c2 = arith.constant 2 : index
    %c0_30 = arith.constant 0 : index
    %c0_31 = arith.constant 0 : index
    %48 = vector.load %arg5[%c2, %c0_30, %c0_31] : memref<9x4x4xbf16, #tpu.memory_space<vmem>>, vector<1x4x4xbf16>
    %49 = vector.shape_cast %48 : vector<1x4x4xbf16> to vector<4x4xbf16>
    %cst_32 = arith.constant dense<0.000000e+00> : vector<256x4xf32>
    %50 = tpu.matmul %47, %49, %cst_32 {dimension_numbers = #tpu.dot_dimension_numbers<[1], [0], [0], [1], [0, 0, 1, 1], [], []>} : vector<256x4xbf16>, vector<4x4xbf16>, vector<256x4xf32> -> vector<256x4xf32>
    %51 = arith.addf %43, %50 : vector<256x4xf32>
    %52 = vector.extract_strided_slice %46 {offsets = [16, 0], sizes = [256, 4], strides = [1, 1]} : vector<288x4xbf16> to vector<256x4xbf16>
    %c5 = arith.constant 5 : index
    %c0_33 = arith.constant 0 : index
    %c0_34 = arith.constant 0 : index
    %53 = vector.load %arg5[%c5, %c0_33, %c0_34] : memref<9x4x4xbf16, #tpu.memory_space<vmem>>, vector<1x4x4xbf16>
    %54 = vector.shape_cast %53 : vector<1x4x4xbf16> to vector<4x4xbf16>
    %cst_35 = arith.constant dense<0.000000e+00> : vector<256x4xf32>
    %55 = tpu.matmul %52, %54, %cst_35 {dimension_numbers = #tpu.dot_dimension_numbers<[1], [0], [0], [1], [0, 0, 1, 1], [], []>} : vector<256x4xbf16>, vector<4x4xbf16>, vector<256x4xf32> -> vector<256x4xf32>
    %56 = arith.addf %51, %55 : vector<256x4xf32>
    %57 = vector.extract_strided_slice %46 {offsets = [32, 0], sizes = [256, 4], strides = [1, 1]} : vector<288x4xbf16> to vector<256x4xbf16>
    %c8 = arith.constant 8 : index
    %c0_36 = arith.constant 0 : index
    %c0_37 = arith.constant 0 : index
    %58 = vector.load %arg5[%c8, %c0_36, %c0_37] : memref<9x4x4xbf16, #tpu.memory_space<vmem>>, vector<1x4x4xbf16>
    %59 = vector.shape_cast %58 : vector<1x4x4xbf16> to vector<4x4xbf16>
    %cst_38 = arith.constant dense<0.000000e+00> : vector<256x4xf32>
    %60 = tpu.matmul %57, %59, %cst_38 {dimension_numbers = #tpu.dot_dimension_numbers<[1], [0], [0], [1], [0, 0, 1, 1], [], []>} : vector<256x4xbf16>, vector<4x4xbf16>, vector<256x4xf32> -> vector<256x4xf32>
    %61 = arith.addf %56, %60 : vector<256x4xf32>
    %c0_39 = arith.constant 0 : index
    %c0_40 = arith.constant 0 : index
    %62 = vector.load %arg6[%c0_39, %c0_40] : memref<256x4xf32, #tpu.memory_space<vmem>>, vector<256x4xf32>
    tpu.vector_store %arg6[%c0_39, %c0_40], %61 {strides = array<i32>} : memref<256x4xf32, #tpu.memory_space<vmem>>, vector<256x4xf32>,
    %cst_41 = arith.constant dense<0.000000e+00> : vector<4xf32>
    %63 = vector.multi_reduction <add>, %61, %cst_41 [0] : vector<256x4xf32> to vector<4xf32>
    %64 = vector.shape_cast %63 : vector<4xf32> to vector<1x4xf32>
    %c0_42 = arith.constant 0 : index
    %c0_43 = arith.constant 0 : index
    %c0_44 = arith.constant 0 : index
    %65 = vector.load %arg7[%c0_42, %c0_43, %c0_44] : memref<1x1x4xf32, #tpu.memory_space<vmem>>, vector<1x1x4xf32>
    %66 = vector.shape_cast %65 : vector<1x1x4xf32> to vector<1x4xf32>
    %67 = vector.shape_cast %64 : vector<1x4xf32> to vector<1x1x4xf32>
    tpu.vector_store %arg7[%c0_42, %c0_43, %c0_44], %67 {strides = array<i32>} : memref<1x1x4xf32, #tpu.memory_space<vmem>>, vector<1x1x4xf32>,
    %68 = arith.mulf %61, %61 : vector<256x4xf32>
    %cst_45 = arith.constant dense<0.000000e+00> : vector<4xf32>
    %69 = vector.multi_reduction <add>, %68, %cst_45 [0] : vector<256x4xf32> to vector<4xf32>
    %70 = vector.shape_cast %69 : vector<4xf32> to vector<1x4xf32>
    %c0_46 = arith.constant 0 : index
    %c0_47 = arith.constant 0 : index
    %c0_48 = arith.constant 0 : index
    %71 = vector.load %arg8[%c0_46, %c0_47, %c0_48] : memref<1x1x4xf32, #tpu.memory_space<vmem>>, vector<1x1x4xf32>
    %72 = vector.shape_cast %71 : vector<1x1x4xf32> to vector<1x4xf32>
    %73 = vector.shape_cast %70 : vector<1x4xf32> to vector<1x1x4xf32>
    tpu.vector_store %arg8[%c0_46, %c0_47, %c0_48], %73 {strides = array<i32>} : memref<1x1x4xf32, #tpu.memory_space<vmem>>, vector<1x1x4xf32>,
    return
  }
  func.func @transform_0(%arg0: i32, %arg1: i32) -> (i32, i32, i32, i32) {
    %c0_i32 = arith.constant 0 : i32
    %c0_i32_0 = arith.constant 0 : i32
    %c0_i32_1 = arith.constant 0 : i32
    return %arg0, %arg1, %c0_i32, %c0_i32_0 : i32, i32, i32, i32
  }
  func.func @transform_1(%arg0: i32, %arg1: i32) -> (i32, i32, i32, i32) {
    %c16_i32 = arith.constant 16 : i32
    %0 = arith.muli %arg1, %c16_i32 : i32
    %c16_i32_0 = arith.constant 16 : i32
    %1 = arith.addi %0, %c16_i32_0 : i32
    %c0_i32 = arith.constant 0 : i32
    %c0_i32_1 = arith.constant 0 : i32
    %c0_i32_2 = arith.constant 0 : i32
    return %arg0, %1, %c0_i32, %c0_i32_1 : i32, i32, i32, i32
  }
  func.func @transform_2(%arg0: i32, %arg1: i32) -> (i32, i32, i32, i32) {
    %c16_i32 = arith.constant 16 : i32
    %0 = arith.muli %arg1, %c16_i32 : i32
    %c16_i32_0 = arith.constant 16 : i32
    %1 = arith.addi %0, %c16_i32_0 : i32
    %c1_i32 = arith.constant 1 : i32
    %2 = arith.addi %1, %c1_i32 : i32
    %c0_i32 = arith.constant 0 : i32
    %c0_i32_1 = arith.constant 0 : i32
    %c0_i32_2 = arith.constant 0 : i32
    return %arg0, %2, %c0_i32, %c0_i32_1 : i32, i32, i32, i32
  }
  func.func @transform_3(%arg0: i32, %arg1: i32) -> (i32, i32, i32) {
    %c0_i32 = arith.constant 0 : i32
    %c0_i32_0 = arith.constant 0 : i32
    %c0_i32_1 = arith.constant 0 : i32
    %c0_i32_2 = arith.constant 0 : i32
    return %c0_i32, %c0_i32_0, %c0_i32_1 : i32, i32, i32
  }
  func.func @transform_4(%arg0: i32, %arg1: i32) -> (i32, i32) {
    %c1_i32 = arith.constant 1 : i32
    %0 = arith.muli %arg0, %c1_i32 : i32
    %1 = arith.addi %0, %arg1 : i32
    %c0_i32 = arith.constant 0 : i32
    %c0_i32_0 = arith.constant 0 : i32
    return %1, %c0_i32 : i32, i32
  }
  func.func @transform_5(%arg0: i32, %arg1: i32) -> (i32, i32, i32) {
    %c1_i32 = arith.constant 1 : i32
    %0 = arith.muli %arg0, %c1_i32 : i32
    %1 = arith.addi %0, %arg1 : i32
    %c0_i32 = arith.constant 0 : i32
    %c0_i32_0 = arith.constant 0 : i32
    %c0_i32_1 = arith.constant 0 : i32
    return %1, %c0_i32, %c0_i32_0 : i32, i32, i32
  }
  func.func @transform_6(%arg0: i32, %arg1: i32) -> (i32, i32, i32) {
    %c1_i32 = arith.constant 1 : i32
    %0 = arith.muli %arg0, %c1_i32 : i32
    %1 = arith.addi %0, %arg1 : i32
    %c0_i32 = arith.constant 0 : i32
    %c0_i32_0 = arith.constant 0 : i32
    %c0_i32_1 = arith.constant 0 : i32
    return %1, %c0_i32, %c0_i32_0 : i32, i32, i32
  }
}

module attributes {stable_mosaic.version = 11 : i64} {
  func.func @_bn_residual_kernel(%arg0: i32, %arg1: memref<32x64xf32, #tpu.memory_space<vmem>>, %arg2: memref<32x64xf32, #tpu.memory_space<vmem>>, %arg3: memref<1x64xf32, #tpu.memory_space<vmem>>, %arg4: memref<1x64xf32, #tpu.memory_space<vmem>>, %arg5: memref<32x64xf32, #tpu.memory_space<vmem>>) attributes {dimension_semantics = [#tpu.dimension_semantics<parallel>], iteration_bounds = array<i64: 1>, scalar_prefetch = 0 : i64, scratch_operands = 0 : i64, tpu.core_type = #tpu.core_type<tc>, window_params = [{transform_indices = @transform_0, window_bounds = array<i64: 32, 64>}, {transform_indices = @transform_1, window_bounds = array<i64: 32, 64>}, {pipeline_mode = #tpu.pipeline_mode<synchronous>, transform_indices = @transform_2, window_bounds = array<i64: 1, 64>}, {pipeline_mode = #tpu.pipeline_mode<synchronous>, transform_indices = @transform_3, window_bounds = array<i64: 1, 64>}, {transform_indices = @transform_4, window_bounds = array<i64: 32, 64>}]} {
    %c0 = arith.constant 0 : index
    %c0_0 = arith.constant 0 : index
    %0 = vector.load %arg2[%c0, %c0_0] : memref<32x64xf32, #tpu.memory_space<vmem>>, vector<32x64xf32>
    %c0_1 = arith.constant 0 : index
    %c0_2 = arith.constant 0 : index
    %1 = vector.load %arg1[%c0_1, %c0_2] : memref<32x64xf32, #tpu.memory_space<vmem>>, vector<32x64xf32>
    %c0_3 = arith.constant 0 : index
    %c0_4 = arith.constant 0 : index
    %2 = vector.load %arg3[%c0_3, %c0_4] : memref<1x64xf32, #tpu.memory_space<vmem>>, vector<1x64xf32>
    %3 = vector.broadcast %2 : vector<1x64xf32> to vector<32x64xf32>
    %4 = arith.mulf %1, %3 : vector<32x64xf32>
    %5 = arith.addf %0, %4 : vector<32x64xf32>
    %c0_5 = arith.constant 0 : index
    %c0_6 = arith.constant 0 : index
    %6 = vector.load %arg4[%c0_5, %c0_6] : memref<1x64xf32, #tpu.memory_space<vmem>>, vector<1x64xf32>
    %7 = vector.broadcast %6 : vector<1x64xf32> to vector<32x64xf32>
    %8 = arith.addf %5, %7 : vector<32x64xf32>
    %c0_7 = arith.constant 0 : index
    %c0_8 = arith.constant 0 : index
    %9 = vector.load %arg5[%c0_7, %c0_8] : memref<32x64xf32, #tpu.memory_space<vmem>>, vector<32x64xf32>
    tpu.vector_store %arg5[%c0_7, %c0_8], %8 {strides = array<i32>} : memref<32x64xf32, #tpu.memory_space<vmem>>, vector<32x64xf32>,
    return
  }
  func.func @transform_0(%arg0: i32) -> (i32, i32) {
    %c0_i32 = arith.constant 0 : i32
    %c0_i32_0 = arith.constant 0 : i32
    return %arg0, %c0_i32 : i32, i32
  }
  func.func @transform_1(%arg0: i32) -> (i32, i32) {
    %c0_i32 = arith.constant 0 : i32
    %c0_i32_0 = arith.constant 0 : i32
    return %arg0, %c0_i32 : i32, i32
  }
  func.func @transform_2(%arg0: i32) -> (i32, i32) {
    %c0_i32 = arith.constant 0 : i32
    %c0_i32_0 = arith.constant 0 : i32
    %c0_i32_1 = arith.constant 0 : i32
    return %c0_i32, %c0_i32_0 : i32, i32
  }
  func.func @transform_3(%arg0: i32) -> (i32, i32) {
    %c0_i32 = arith.constant 0 : i32
    %c0_i32_0 = arith.constant 0 : i32
    %c0_i32_1 = arith.constant 0 : i32
    return %c0_i32, %c0_i32_0 : i32, i32
  }
  func.func @transform_4(%arg0: i32) -> (i32, i32) {
    %c0_i32 = arith.constant 0 : i32
    %c0_i32_0 = arith.constant 0 : i32
    return %arg0, %c0_i32 : i32, i32
  }
}

</mosaic_0001>

<llo_original>
// kernel: tile.13
$region0: #{tile.13}
  #allocation0 [shape = 's32[1]{0}', space=sflag, size = 0x4, scoped, tag = 'scoped memory for tile.13']
  %s0 = inlined_call_operand.vmem [shape: f32[4], index: 0, kind: input, shape index: {}]
  %s1 = inlined_call_operand.vmem [shape: f32[16,4], index: 1, kind: output, shape index: {}]
  // Predicated region
  $region2: #{tile.13} parent=0 // pred_check
    _
  $region3: #{tile.13} parent=0 // pred_check_branch
    %3 = sbr.rel (0) target = $region5
  $region4: #{tile.13} parent=0 // pred_region
    _
  $region5: #{tile.13} parent=0 // pred_fallthru
    _
  %v4 = vld [vmem:[%s0] ss:$0 sm:$0xff]
  %5 = vst [vmem:[%s1] sm:$0xff] %v4
  %s6 = scalar_lea.vmem %s1, 8
  %7 = vst [vmem:[%s6] sm:$0xff] %v4

// kernel: tile.14
$region0: #{tile.14}
  %s0 = inlined_call_operand.vmem [shape: f32[16,4], index: 0, kind: input, shape index: {}]
  %s1 = inlined_call_operand.vmem [shape: f32[1,64], index: 1, kind: output, shape index: {}]
  $region1: #{tile.14} parent=0
    #allocation0 [shape = 'u8[4096]{0}', space=vmem, size = 0x1000, scoped, tag = 'scoped mem for output reshape']
    %v2 = vld [vmem:[%s0] sm:$0x1]
    %vm3 = vcmask 31744
    %4 = vst.msk [vmem:[#allocation0] sm:$0x1] %vm3, %v2
    %s5 = scalar_lea.vmem %s0, 15
    %v6 = vld [vmem:[%s5] sm:$0x1]
    %7 = vrot.lane.b32.xlu0 %v6, 60
    %v8 = vpop.permute.xlu0 %7
    %vm9 = vcmask 523744
    %10 = vst.msk [vmem:[#allocation0] sm:$0x1] %vm9, %v8
    %s11 = scalar_lea.vmem %s0, 14
    %v12 = vld [vmem:[%s11] sm:$0x1]
    %13 = vrot.lane.b32.xlu0 %v12, 56
    %v14 = vpop.permute.xlu0 %13
    %vm15 = vcmask 490944
    %16 = vst.msk [vmem:[#allocation0] sm:$0x1] %vm15, %v14
    %s17 = scalar_lea.vmem %s0, 13
    %v18 = vld [vmem:[%s17] sm:$0x1]
    %19 = vrot.lane.b32.xlu0 %v18, 52
    %v20 = vpop.permute.xlu0 %19
    %vm21 = vcmask 458144
    %22 = vst.msk [vmem:[#allocation0] sm:$0x1] %vm21, %v20
    %s23 = scalar_lea.vmem %s0, 12
    %v24 = vld [vmem:[%s23] sm:$0x1]
    %25 = vrot.lane.b32.xlu0 %v24, 48
    %v26 = vpop.permute.xlu0 %25
    %vm27 = vcmask 425344
    %28 = vst.msk [vmem:[#allocation0] sm:$0x1] %vm27, %v26
    %s29 = scalar_lea.vmem %s0, 11
    %v30 = vld [vmem:[%s29] sm:$0x1]
    %31 = vrot.lane.b32.xlu0 %v30, 44
    %v32 = vpop.permute.xlu0 %31
    %vm33 = vcmask 392544
    %34 = vst.msk [vmem:[#allocation0] sm:$0x1] %vm33, %v32
    %s35 = scalar_lea.vmem %s0, 10
    %v36 = vld [vmem:[%s35] sm:$0x1]
    %37 = vrot.lane.b32.xlu0 %v36, 40
    %v38 = vpop.permute.xlu0 %37
    %vm39 = vcmask 359744
    %40 = vst.msk [vmem:[#allocation0] sm:$0x1] %vm39, %v38
    %s41 = scalar_lea.vmem %s0, 9
    %v42 = vld [vmem:[%s41] sm:$0x1]
    %43 = vrot.lane.b32.xlu0 %v42, 36
    %v44 = vpop.permute.xlu0 %43
    %vm45 = vcmask 326944
    %46 = vst.msk [vmem:[#allocation0] sm:$0x1] %vm45, %v44
    %s47 = scalar_lea.vmem %s0, 8
    %v48 = vld [vmem:[%s47] sm:$0x1]
    %49 = vrot.lane.b32.xlu0 %v48, 32
    %v50 = vpop.permute.xlu0 %49
    %vm51 = vcmask 294144
    %52 = vst.msk [vmem:[#allocation0] sm:$0x1] %vm51, %v50
    %s53 = scalar_lea.vmem %s0, 7
    %v54 = vld [vmem:[%s53] sm:$0x1]
    %55 = vrot.lane.b32.xlu0 %v54, 28
    %v56 = vpop.permute.xlu0 %55
    %vm57 = vcmask 261344
    %58 = vst.msk [vmem:[#allocation0] sm:$0x1] %vm57, %v56
    %s59 = scalar_lea.vmem %s0, 6
    %v60 = vld [vmem:[%s59] sm:$0x1]
    %61 = vrot.lane.b32.xlu0 %v60, 24
    %v62 = vpop.permute.xlu0 %61
    %vm63 = vcmask 228544
    %64 = vst.msk [vmem:[#allocation0] sm:$0x1] %vm63, %v62
    %s65 = scalar_lea.vmem %s0, 5
    %v66 = vld [vmem:[%s65] sm:$0x1]
    %67 = vrot.lane.b32.xlu0 %v66, 20
    %v68 = vpop.permute.xlu0 %67
    %vm69 = vcmask 195744
    %70 = vst.msk [vmem:[#allocation0] sm:$0x1] %vm69, %v68
    %s71 = scalar_lea.vmem %s0, 4
    %v72 = vld [vmem:[%s71] sm:$0x1]
    %73 = vrot.lane.b32.xlu0 %v72, 16
    %v74 = vpop.permute.xlu0 %73
    %vm75 = vcmask 162944
    %76 = vst.msk [vmem:[#allocation0] sm:$0x1] %vm75, %v74
    %s77 = scalar_lea.vmem %s0, 3
    %v78 = vld [vmem:[%s77] sm:$0x1]
    %79 = vrot.lane.b32.xlu0 %v78, 12
    %v80 = vpop.permute.xlu0 %79
    %vm81 = vcmask 130144
    %82 = vst.msk [vmem:[#allocation0] sm:$0x1] %vm81, %v80
    %s83 = scalar_lea.vmem %s0, 2
    %v84 = vld [vmem:[%s83] sm:$0x1]
    %85 = vrot.lane.b32.xlu0 %v84, 8
    %v86 = vpop.permute.xlu0 %85
    %vm87 = vcmask 97344
    %88 = vst.msk [vmem:[#allocation0] sm:$0x1] %vm87, %v86
    %s89 = scalar_lea.vmem %s0, 1
    %v90 = vld [vmem:[%s89] sm:$0x1]
    %91 = vrot.lane.b32.xlu0 %v90, 4
    %v92 = vpop.permute.xlu0 %91
    %vm93 = vcmask 64544
    %94 = vst.msk [vmem:[#allocation0] sm:$0x1] %vm93, %v92
    %s96 = sshllo.u32 0, 1
    %v98 = vld [vmem:[#allocation0] sm:%s96]
    %s99 = sshllo.u32 0, 1
    %100 = vst [vmem:[%s1] sm:%s99] %v98

// kernel: resnet_block.3
$region0: #{resnet_block.3}
  #allocation0 [shape = 'u32[]', space=smem, size = 0x4, offset = 0x4, fixed_abs, tag = 'smem constant byte address 0x4 - core index']
  #allocation1 [shape = 'u32[144,128]{1,0:T(1,128)}', space=vmem, size = 0x12000, scoped, tag = 'internal scratch']
  %s0 = inlined_call_operand.vmem [shape: f32[32,64], index: 0, kind: input, shape index: {}]
  %s1 = inlined_call_operand.vmem [shape: f32[32,64], index: 1, kind: input, shape index: {}]
  %s2 = inlined_call_operand.vmem [shape: f32[1,64], index: 2, kind: input, shape index: {}]
  %s3 = inlined_call_operand.vmem [shape: f32[1,64], index: 3, kind: input, shape index: {}]
  %s4 = inlined_call_operand.vmem [shape: f32[32,64], index: 4, kind: output, shape index: {}]
  %s5 = sld [smem:[#allocation0]]
  $region26: #{resnet_block.3} parent=0
    _
  %s7 = ssub.s32 1, %s5
  %s8 = scalar_select 0, %s7, %s5
  // Predicated region
  $region2: #{resnet_block.3} parent=0 // pred_check
    _
  $region3: #{resnet_block.3} parent=0 // pred_check_branch
    %10 = sbr.rel (0) target = $region5
  $region4: #{resnet_block.3} parent=0 // pred_region
    _
  $region5: #{resnet_block.3} parent=0 // pred_fallthru
    _
  // Predicated region
  $region6: #{resnet_block.3} parent=0 // pred_check
    _
  $region7: #{resnet_block.3} parent=0 // pred_check_branch
    %12 = sbr.rel (0) target = $region9
  $region8: #{resnet_block.3} parent=0 // pred_region
    _
  $region9: #{resnet_block.3} parent=0 // pred_fallthru
    _
  // Predicated region
  $region10: #{resnet_block.3} parent=0 // pred_check
    _
  $region11: #{resnet_block.3} parent=0 // pred_check_branch
    %14 = sbr.rel (0) target = $region13
  $region12: #{resnet_block.3} parent=0 // pred_region
    _
  $region13: #{resnet_block.3} parent=0 // pred_fallthru
    _
  // Predicated region
  $region14: #{resnet_block.3} parent=0 // pred_check
    _
  $region15: #{resnet_block.3} parent=0 // pred_check_branch
    %16 = sbr.rel (0) target = $region17
  $region16: #{resnet_block.3} parent=0 // pred_region
    _
  $region17: #{resnet_block.3} parent=0 // pred_fallthru
    _
  %v17 = vld [vmem:[%s1] sm:$0xff]
  %v18 = vld [vmem:[%s1 + $0x8] sm:$0xff]
  %v19 = vld [vmem:[%s1 + $0x10] sm:$0xff]
  %v20 = vld [vmem:[%s1 + $0x18] sm:$0xff]
  %v21 = vld [vmem:[%s0] sm:$0xff]
  %v22 = vld [vmem:[%s0 + $0x8] sm:$0xff]
  %v23 = vld [vmem:[%s0 + $0x10] sm:$0xff]
  %v24 = vld [vmem:[%s0 + $0x18] sm:$0xff]
  %v25 = vld [vmem:[%s2] sm:$0x1]
  %v27 = vlaneseq
  %v28 = vshrl.u32 %v27, 7
  %v29 = vsub.s32 0, %v28
  %v30 = vrot.slane %v25, %v29
  %v32 = vmul.f32 %v21, %v30
  %v33 = vmul.f32 %v22, %v30
  %v34 = vmul.f32 %v23, %v30
  %v35 = vmul.f32 %v24, %v30
  %v36 = vadd.f32 %v17, %v32
  %v37 = vadd.f32 %v18, %v33
  %v38 = vadd.f32 %v19, %v34
  %v39 = vadd.f32 %v20, %v35
  %v40 = vld [vmem:[%s3] sm:$0x1]
  %v42 = vlaneseq
  %v43 = vshrl.u32 %v42, 7
  %v44 = vsub.s32 0, %v43
  %v45 = vrot.slane %v40, %v44
  %v47 = vadd.f32 %v36, %v45
  %v48 = vadd.f32 %v37, %v45
  %v49 = vadd.f32 %v38, %v45
  %v50 = vadd.f32 %v39, %v45
  %vm51 = vcmask 523264
  %52 = vst.msk [vmem:[%s4] sm:$0xff] %vm51, %v47
  %53 = vst.msk [vmem:[%s4 + $0x8] sm:$0xff] %vm51, %v48
  %54 = vst.msk [vmem:[%s4 + $0x10] sm:$0xff] %vm51, %v49
  %55 = vst.msk [vmem:[%s4 + $0x18] sm:$0xff] %vm51, %v50
  // Predicated region
  $region18: #{resnet_block.3} parent=0 // pred_check
    _
  $region19: #{resnet_block.3} parent=0 // pred_check_branch
    %57 = sbr.rel (0) target = $region21
  $region20: #{resnet_block.3} parent=0 // pred_region
    _
  $region21: #{resnet_block.3} parent=0 // pred_fallthru
    _
  // Predicated region
  $region22: #{resnet_block.3} parent=0 // pred_check
    _
  $region23: #{resnet_block.3} parent=0 // pred_check_branch
    %59 = sbr.rel (0) target = $region25
  $region24: #{resnet_block.3} parent=0 // pred_region
    _
  $region25: #{resnet_block.3} parent=0 // pred_fallthru
    _

// kernel: resnet_block.2
$region0: #{resnet_block.2}
  #allocation0 [shape = 'u32[]', space=smem, size = 0x4, offset = 0x4, fixed_abs, tag = 'smem constant byte address 0x4 - core index']
  #allocation1 [shape = 'u32[144,128]{1,0:T(1,128)}', space=vmem, size = 0x12000, scoped, tag = 'internal scratch']
  %s0 = inlined_call_operand.vmem [shape: f32[2,18,18,4], index: 0, kind: input, shape index: {}, may-alias: {0,1,2}]
  %s1 = inlined_call_operand.vmem [shape: f32[2,18,18,4], index: 1, kind: input, shape index: {}, may-alias: {0,1,2}]
  %s2 = inlined_call_operand.vmem [shape: f32[2,18,18,4], index: 2, kind: input, shape index: {}, may-alias: {0,1,2}]
  %s3 = inlined_call_operand.vmem [shape: bf16[9,4,4], index: 3, kind: input, shape index: {}]
  %s4 = inlined_call_operand.vmem [shape: f32[512,4], index: 4, kind: output, shape index: {0}]
  %s5 = inlined_call_operand.vmem [shape: f32[2,1,4], index: 5, kind: output, shape index: {1}]
  %s6 = inlined_call_operand.vmem [shape: f32[2,1,4], index: 6, kind: output, shape index: {2}]
  %7 = xla_tuple %s4, %s5, %s6
  %s8 = sld [smem:[#allocation0]]
  $region65: #{resnet_block.2} parent=0
    _
  %s10 = ssub.s32 1, %s8
  %s11 = scalar_select 0, %s10, %s8
  loop: start=0, step=1, limit=4
  $region2: #{resnet_block.2} parent=0 // loop_pre_header
    _
  $region3: #{resnet_block.2} parent=0 // loop_header
    %s13 = sphi 0, %s17
    %p14 = scmp.ge.s32.totalorder %s13, 4
    %s20 = sphi 0, %s32
    %s21 = sphi 0, %s28
    %s22 = sphi 0, %s20
    %s23 = sphi 0, %s21
    %s24 = sphi 0, %s22
    %s25 = sphi 0, %s23
    %s37 = sphi 0, %s39
    %s40 = sphi 0, %s37
    %s41 = sphi 0, %s40
    %s57 = sphi 0, %s41
    %s69 = sphi 0, %s71
    %s72 = sphi 0, %s69
    %s73 = sphi 0, %s72
    %s89 = sphi 0, %s73
    %s101 = sphi 0, %s103
    %s104 = sphi 0, %s101
    %s105 = sphi 0, %s104
    %s121 = sphi 0, %s105
    %s125 = sphi 0, %s125
    %s127 = sphi 0, %s125
    %s128 = sphi 0, %s127
    %s142 = sphi 0, %s128
    %s150 = sphi 0, %s152
    %s153 = sphi 0, %s150
    %s154 = sphi 0, %s153
    %s170 = sphi 0, %s154
    %s178 = sphi 0, %s180
    %s181 = sphi 0, %s178
    %s182 = sphi 0, %s181
    %s198 = sphi 0, %s182
    %s206 = sphi 0, %s208
    %s209 = sphi 0, %s206
    %s210 = sphi 0, %s209
    %s226 = sphi 0, %s210
  $region4: #{resnet_block.2} parent=0 // loop_header_branch
    %16 = sbr.rel (%p14) target = $region8
  $region5: #{resnet_block.2} parent=0 // loop_body
    %s18 = ssub.s32 %s13, 1
    %s19 = ssub.s32 %s13, 2
    %s26 = sadd.s32 1, %s21
    %p27 = scmp.ge.s32.totalorder %s26, 1
    %s28 = scalar_select %p27, 0, %s26
    %s29 = sadd.s32 1, %s20
    %s30 = scalar_select %p27, %s29, %s20
    %p31 = scmp.ge.s32.totalorder %s30, 2
    %s32 = scalar_select %p31, 0, %s30
    %s33 = ssub.s32 %s20, %s32
    %s34 = ssub.s32 %s21, %s28
    %s35 = sor.u32 %s33, %s34
    %p36 = scmp.eq.s32.totalorder %s35, 0
    %s38 = sadd.s32 %s37, 1
    %s39 = scalar_select %p36, %s37, %s38
    %p42 = pneg %p36
    %p43 = scmp.eq.s32.totalorder %s13, 1
    %p44 = por %p42, %p43
    %p45 = scmp.ne.s32.totalorder %s37, %s40
    %p46 = scmp.eq.s32.totalorder %s13, 0
    %p47 = por %p45, %p46
    %p48 = scmp.ne.s32.totalorder %s37, %s40
    %p49 = scmp.eq.s32.totalorder %s18, 1
    %p50 = por %p48, %p49
    %p51 = scmp.ne.s32.totalorder %s40, %s41
    %p52 = scmp.eq.s32.totalorder %s18, 0
    %p53 = por %p51, %p52
    %p54 = scmp.ne.s32.totalorder %s40, %s41
    %p55 = scmp.eq.s32.totalorder %s19, 1
    %p56 = por %p54, %p55
    %p58 = scmp.ne.s32.totalorder %s41, %s57
    %p59 = scmp.eq.s32.totalorder %s19, 0
    %p60 = por %p58, %p59
    %s61 = smul.u32 %s21, 16
    %s62 = sadd.s32 %s61, 16
    %s63 = smul.u32 %s28, 16
    %s64 = sadd.s32 %s63, 16
    %s65 = ssub.s32 %s20, %s32
    %s66 = ssub.s32 %s62, %s64
    %s67 = sor.u32 %s65, %s66
    %p68 = scmp.eq.s32.totalorder %s67, 0
    %s70 = sadd.s32 %s69, 1
    %s71 = scalar_select %p68, %s69, %s70
    %p74 = pneg %p68
    %p75 = scmp.eq.s32.totalorder %s13, 1
    %p76 = por %p74, %p75
    %p77 = scmp.ne.s32.totalorder %s69, %s72
    %p78 = scmp.eq.s32.totalorder %s13, 0
    %p79 = por %p77, %p78
    %p80 = scmp.ne.s32.totalorder %s69, %s72
    %p81 = scmp.eq.s32.totalorder %s18, 1
    %p82 = por %p80, %p81
    %p83 = scmp.ne.s32.totalorder %s72, %s73
    %p84 = scmp.eq.s32.totalorder %s18, 0
    %p85 = por %p83, %p84
    %p86 = scmp.ne.s32.totalorder %s72, %s73
    %p87 = scmp.eq.s32.totalorder %s19, 1
    %p88 = por %p86, %p87
    %p90 = scmp.ne.s32.totalorder %s73, %s89
    %p91 = scmp.eq.s32.totalorder %s19, 0
    %p92 = por %p90, %p91
    %s93 = smul.u32 %s21, 16
    %s94 = sadd.s32 %s93, 17
    %s95 = smul.u32 %s28, 16
    %s96 = sadd.s32 %s95, 17
    %s97 = ssub.s32 %s20, %s32
    %s98 = ssub.s32 %s94, %s96
    %s99 = sor.u32 %s97, %s98
    %p100 = scmp.eq.s32.totalorder %s99, 0
    %s102 = sadd.s32 %s101, 1
    %s103 = scalar_select %p100, %s101, %s102
    %p106 = pneg %p100
    %p107 = scmp.eq.s32.totalorder %s13, 1
    %p108 = por %p106, %p107
    %p109 = scmp.ne.s32.totalorder %s101, %s104
    %p110 = scmp.eq.s32.totalorder %s13, 0
    %p111 = por %p109, %p110
    %p112 = scmp.ne.s32.totalorder %s101, %s104
    %p113 = scmp.eq.s32.totalorder %s18, 1
    %p114 = por %p112, %p113
    %p115 = scmp.ne.s32.totalorder %s104, %s105
    %p116 = scmp.eq.s32.totalorder %s18, 0
    %p117 = por %p115, %p116
    %p118 = scmp.ne.s32.totalorder %s104, %s105
    %p119 = scmp.eq.s32.totalorder %s19, 1
    %p120 = por %p118, %p119
    %p122 = scmp.ne.s32.totalorder %s105, %s121
    %p123 = scmp.eq.s32.totalorder %s19, 0
    %p124 = por %p122, %p123
    %s126 = sadd.s32 %s125, 1
    %p129 = scmp.eq.s32.totalorder %s13, 1
    %p130 = scmp.ne.s32.totalorder %s125, %s127
    %p131 = scmp.eq.s32.totalorder %s13, 0
    %p132 = por %p130, %p131
    %p133 = scmp.ne.s32.totalorder %s125, %s127
    %p134 = scmp.eq.s32.totalorder %s18, 1
    %p135 = por %p133, %p134
    %p136 = scmp.ne.s32.totalorder %s127, %s128
    %p137 = scmp.eq.s32.totalorder %s18, 0
    %p138 = por %p136, %p137
    %p139 = scmp.ne.s32.totalorder %s127, %s128
    %p140 = scmp.eq.s32.totalorder %s19, 1
    %p141 = por %p139, %p140
    %p143 = scmp.ne.s32.totalorder %s128, %s142
    %p144 = scmp.eq.s32.totalorder %s19, 0
    %p145 = por %p143, %p144
    %s146 = sadd.s32 %s20, %s21
    %s147 = sadd.s32 %s32, %s28
    %s148 = ssub.s32 %s146, %s147
    %p149 = scmp.eq.s32.totalorder %s148, 0
    %s151 = sadd.s32 %s150, 1
    %s152 = scalar_select %p149, %s150, %s151
    %p155 = pneg %p149
    %p156 = scmp.eq.s32.totalorder %s13, 1
    %p157 = por %p155, %p156
    %p158 = scmp.ne.s32.totalorder %s150, %s153
    %p159 = scmp.eq.s32.totalorder %s13, 0
    %p160 = por %p158, %p159
    %p161 = scmp.ne.s32.totalorder %s150, %s153
    %p162 = scmp.eq.s32.totalorder %s18, 1
    %p163 = por %p161, %p162
    %p164 = scmp.ne.s32.totalorder %s153, %s154
    %p165 = scmp.eq.s32.totalorder %s18, 0
    %p166 = por %p164, %p165
    %p167 = scmp.ne.s32.totalorder %s153, %s154
    %p168 = scmp.eq.s32.totalorder %s19, 1
    %p169 = por %p167, %p168
    %p171 = scmp.ne.s32.totalorder %s154, %s170
    %p172 = scmp.eq.s32.totalorder %s19, 0
    %p173 = por %p171, %p172
    %s174 = sadd.s32 %s20, %s21
    %s175 = sadd.s32 %s32, %s28
    %s176 = ssub.s32 %s174, %s175
    %p177 = scmp.eq.s32.totalorder %s176, 0
    %s179 = sadd.s32 %s178, 1
    %s180 = scalar_select %p177, %s178, %s179
    %p183 = pneg %p177
    %p184 = scmp.eq.s32.totalorder %s13, 1
    %p185 = por %p183, %p184
    %p186 = scmp.ne.s32.totalorder %s178, %s181
    %p187 = scmp.eq.s32.totalorder %s13, 0
    %p188 = por %p186, %p187
    %p189 = scmp.ne.s32.totalorder %s178, %s181
    %p190 = scmp.eq.s32.totalorder %s18, 1
    %p191 = por %p189, %p190
    %p192 = scmp.ne.s32.totalorder %s181, %s182
    %p193 = scmp.eq.s32.totalorder %s18, 0
    %p194 = por %p192, %p193
    %p195 = scmp.ne.s32.totalorder %s181, %s182
    %p196 = scmp.eq.s32.totalorder %s19, 1
    %p197 = por %p195, %p196
    %p199 = scmp.ne.s32.totalorder %s182, %s198
    %p200 = scmp.eq.s32.totalorder %s19, 0
    %p201 = por %p199, %p200
    %s202 = sadd.s32 %s20, %s21
    %s203 = sadd.s32 %s32, %s28
    %s204 = ssub.s32 %s202, %s203
    %p205 = scmp.eq.s32.totalorder %s204, 0
    %s207 = sadd.s32 %s206, 1
    %s208 = scalar_select %p205, %s206, %s207
    %p211 = pneg %p205
    %p212 = scmp.eq.s32.totalorder %s13, 1
    %p213 = por %p211, %p212
    %p214 = scmp.ne.s32.totalorder %s206, %s209
    %p215 = scmp.eq.s32.totalorder %s13, 0
    %p216 = por %p214, %p215
    %p217 = scmp.ne.s32.totalorder %s206, %s209
    %p218 = scmp.eq.s32.totalorder %s18, 1
    %p219 = por %p217, %p218
    %p220 = scmp.ne.s32.totalorder %s209, %s210
    %p221 = scmp.eq.s32.totalorder %s18, 0
    %p222 = por %p220, %p221
    %p223 = scmp.ne.s32.totalorder %s209, %s210
    %p224 = scmp.eq.s32.totalorder %s19, 1
    %p225 = por %p223, %p224
    %p227 = scmp.ne.s32.totalorder %s210, %s226
    %p228 = scmp.eq.s32.totalorder %s19, 0
    %p229 = por %p227, %p228
    %p230 = scmp.le.s32.totalorder 1, %s13
    %p231 = scmp.lt.s32.totalorder %s13, 3
    %p232 = pnand %p230, %p231
    %p233 = pneg %p232
    // Predicated region
    $region9: #{resnet_block.2} parent=5 // pred_check
      _
    $region10: #{resnet_block.2} parent=5 // pred_check_branch
      %235 = sbr.rel (%p232) target = $region12
    $region11: #{resnet_block.2} parent=5 // pred_region
      %s236 = ssub.s32 %s13, 1
      // Predicated region
      $region13: #{resnet_block.2} parent=11 // pred_check
        %p237 = pneg %p138
      $region14: #{resnet_block.2} parent=11 // pred_check_branch
        %239 = sbr.rel (%p237) target = $region16
      $region15: #{resnet_block.2} parent=11 // pred_region
        _
      $region16: #{resnet_block.2} parent=11 // pred_fallthru
        _
    $region12: #{resnet_block.2} parent=5 // pred_fallthru
      _
    %p240 = scmp.lt.s32.totalorder %s13, 2
    // Predicated region
    $region17: #{resnet_block.2} parent=5 // pred_check
      %p241 = pneg %p240
    $region18: #{resnet_block.2} parent=5 // pred_check_branch
      %243 = sbr.rel (%p241) target = $region20
    $region19: #{resnet_block.2} parent=5 // pred_region
      // Predicated region
      $region21: #{resnet_block.2} parent=19 // pred_check
        %p244 = pneg %p47
      $region22: #{resnet_block.2} parent=19 // pred_check_branch
        %246 = sbr.rel (%p244) target = $region24
      $region23: #{resnet_block.2} parent=19 // pred_region
        %s247 = smul.u32 16, %s21
        %s248 = ssub.s32 18, %s247
        %p249 = scmp.lt.s32.totalorder %s248, 16
        %s250 = scalar_select %p249, %s248, 16
        %s251 = smul.u32 128, %s250
        %s252 = smul.u32 %s251, 3
        %p253 = scmp.lt.s32.totalorder %s20, 1
        %s254 = scalar_select %p253, %s20, 1
        %p255 = scmp.lt.s32.totalorder %s247, 17
        %s256 = scalar_select %p255, %s247, 17
        %s257 = smul.addr %s256, 3
        %s258 = smul.addr %s254, 54
        %s259 = sadd.s32 %s257, %s258
        %s260 = smul.addr %s259, 8
        %s261 = scalar_lea.vmem %s0, %s260
        %s262 = smul.u32 16, %s21
        %s263 = ssub.s32 18, %s262
        %p264 = scmp.lt.s32.totalorder %s263, 16
        %s265 = scalar_select %p264, %s263, 16
        %s266 = smul.u32 128, %s265
        %s267 = smul.u32 %s266, 3
      $region24: #{resnet_block.2} parent=19 // pred_fallthru
        _
      // Predicated region
      $region25: #{resnet_block.2} parent=19 // pred_check
        %p268 = pneg %p79
      $region26: #{resnet_block.2} parent=19 // pred_check_branch
        %270 = sbr.rel (%p268) target = $region28
      $region27: #{resnet_block.2} parent=19 // pred_region
        %s271 = smul.u32 %s21, 16
        %s272 = sadd.s32 %s271, 16
        %p273 = scmp.lt.s32.totalorder %s20, 1
        %s274 = scalar_select %p273, %s20, 1
        %p275 = scmp.lt.s32.totalorder %s272, 17
        %s276 = scalar_select %p275, %s272, 17
        %s277 = smul.addr %s276, 3
        %s278 = smul.addr %s274, 54
        %s279 = sadd.s32 %s277, %s278
        %s280 = smul.addr %s279, 8
        %s281 = scalar_lea.vmem %s1, %s280
        %s282 = smul.u32 %s21, 16
        %s283 = sadd.s32 %s282, 16
      $region28: #{resnet_block.2} parent=19 // pred_fallthru
        _
      // Predicated region
      $region29: #{resnet_block.2} parent=19 // pred_check
        %p284 = pneg %p111
      $region30: #{resnet_block.2} parent=19 // pred_check_branch
        %286 = sbr.rel (%p284) target = $region32
      $region31: #{resnet_block.2} parent=19 // pred_region
        %s287 = smul.u32 %s21, 16
        %s288 = sadd.s32 %s287, 17
        %p289 = scmp.lt.s32.totalorder %s20, 1
        %s290 = scalar_select %p289, %s20, 1
        %p291 = scmp.lt.s32.totalorder %s288, 17
        %s292 = scalar_select %p291, %s288, 17
        %s293 = smul.addr %s292, 3
        %s294 = smul.addr %s290, 54
        %s295 = sadd.s32 %s293, %s294
        %s296 = smul.addr %s295, 8
        %s297 = scalar_lea.vmem %s2, %s296
        %s298 = smul.u32 %s21, 16
        %s299 = sadd.s32 %s298, 17
      $region32: #{resnet_block.2} parent=19 // pred_fallthru
        _
    $region20: #{resnet_block.2} parent=5 // pred_fallthru
      _
    %p300 = scmp.le.s32.totalorder 1, %s13
    %p301 = scmp.lt.s32.totalorder %s13, 3
    %p302 = pnand %p300, %p301
    %p303 = pneg %p302
    // Predicated region
    $region33: #{resnet_block.2} parent=5 // pred_check
      _
    $region34: #{resnet_block.2} parent=5 // pred_check_branch
      %305 = sbr.rel (%p302) target = $region36
    $region35: #{resnet_block.2} parent=5 // pred_region
      %s306 = ssub.s32 %s13, 1
      %s307 = smul.u32 16, %s23
      %s308 = ssub.s32 18, %s307
      %p309 = scmp.lt.s32.totalorder %s308, 16
      %s310 = scalar_select %p309, %s308, 16
      %s311 = smul.u32 128, %s310
      %s312 = smul.u32 %s311, 3
      %p313 = scmp.lt.s32.totalorder %s22, 1
      %s314 = scalar_select %p313, %s22, 1
      %p315 = scmp.lt.s32.totalorder %s307, 17
      %s316 = scalar_select %p315, %s307, 17
      %s317 = smul.addr %s316, 3
      %s318 = smul.addr %s314, 54
      %s319 = sadd.s32 %s317, %s318
      %s320 = smul.addr %s319, 8
      %s321 = scalar_lea.vmem %s0, %s320
      %p322 = pneg %p53
      %p323 = pneg %p50
      %s324 = smul.u32 %s23, 16
      %s325 = sadd.s32 %s324, 16
      %p326 = scmp.lt.s32.totalorder %s22, 1
      %s327 = scalar_select %p326, %s22, 1
      %p328 = scmp.lt.s32.totalorder %s325, 17
      %s329 = scalar_select %p328, %s325, 17
      %s330 = smul.addr %s329, 3
      %s331 = smul.addr %s327, 54
      %s332 = sadd.s32 %s330, %s331
      %s333 = smul.addr %s332, 8
      %s334 = scalar_lea.vmem %s1, %s333
      %p335 = pneg %p85
      %p336 = pneg %p82
      %s337 = smul.u32 %s23, 16
      %s338 = sadd.s32 %s337, 17
      %p339 = scmp.lt.s32.totalorder %s22, 1
      %s340 = scalar_select %p339, %s22, 1
      %p341 = scmp.lt.s32.totalorder %s338, 17
      %s342 = scalar_select %p341, %s338, 17
      %s343 = smul.addr %s342, 3
      %s344 = smul.addr %s340, 54
      %s345 = sadd.s32 %s343, %s344
      %s346 = smul.addr %s345, 8
      %s347 = scalar_lea.vmem %s2, %s346
      %p348 = pneg %p117
      %p349 = pneg %p114
      %p350 = pneg %p138
      %p351 = pneg %p135
      %p352 = pneg %p166
      %p353 = pneg %p163
      %s354 = sadd.s32 %s22, %s23
      %s355 = smul.u32 32, %s354
      %p356 = scmp.lt.s32.totalorder %s355, 63
      %s357 = scalar_select %p356, %s355, 63
      %s358 = smul.addr %s357, 8
      %s359 = scalar_lea.vmem %s4, %s358
      %p360 = pneg %p194
      %p361 = pneg %p191
      %s362 = sadd.s32 %s22, %s23
      %p363 = scmp.lt.s32.totalorder %s362, 1
      %s364 = scalar_select %p363, %s362, 1
      %s365 = scalar_lea.vmem %s5, %s364
      %p366 = pneg %p222
      %p367 = pneg %p219
      %s368 = sadd.s32 %s22, %s23
      %p369 = scmp.lt.s32.totalorder %s368, 1
      %s370 = scalar_select %p369, %s368, 1
      %s371 = scalar_lea.vmem %s6, %s370
      %s372 = smul.u32 16, %s23
      %s373 = ssub.s32 18, %s372
      %p374 = scmp.lt.s32.totalorder %s373, 16
      %s375 = scalar_select %p374, %s373, 16
      %s376 = smul.u32 128, %s375
      %s377 = smul.u32 %s376, 3
      %p378 = scmp.lt.s32.totalorder %s22, 1
      %s379 = scalar_select %p378, %s22, 1
      %p380 = scmp.lt.s32.totalorder %s372, 17
      %s381 = scalar_select %p380, %s372, 17
      %s382 = smul.addr %s381, 3
      %s383 = smul.addr %s379, 54
      %s384 = sadd.s32 %s382, %s383
      %s385 = smul.addr %s384, 8
      %s386 = scalar_lea.vmem %s0, %s385
      %s387 = smul.u32 16, %s23
      %s388 = ssub.s32 18, %s387
      %p389 = scmp.lt.s32.totalorder %s388, 16
      %s390 = scalar_select %p389, %s388, 16
      %s391 = smul.u32 128, %s390
      %s392 = smul.u32 %s391, 3
      %s393 = smul.u32 %s23, 16
      %s394 = sadd.s32 %s393, 16
      %p395 = scmp.lt.s32.totalorder %s22, 1
      %s396 = scalar_select %p395, %s22, 1
      %p397 = scmp.lt.s32.totalorder %s394, 17
      %s398 = scalar_select %p397, %s394, 17
      %s399 = smul.addr %s398, 3
      %s400 = smul.addr %s396, 54
      %s401 = sadd.s32 %s399, %s400
      %s402 = smul.addr %s401, 8
      %s403 = scalar_lea.vmem %s1, %s402
      %s404 = smul.u32 %s23, 16
      %s405 = sadd.s32 %s404, 16
      %s406 = smul.u32 %s23, 16
      %s407 = sadd.s32 %s406, 17
      %p408 = scmp.lt.s32.totalorder %s22, 1
      %s409 = scalar_select %p408, %s22, 1
      %p410 = scmp.lt.s32.totalorder %s407, 17
      %s411 = scalar_select %p410, %s407, 17
      %s412 = smul.addr %s411, 3
      %s413 = smul.addr %s409, 54
      %s414 = sadd.s32 %s412, %s413
      %s415 = smul.addr %s414, 8
      %s416 = scalar_lea.vmem %s2, %s415
      %s417 = smul.u32 %s23, 16
      %s418 = sadd.s32 %s417, 17
      %s419 = sadd.s32 %s22, %s23
      %s420 = smul.u32 32, %s419
      %p421 = scmp.lt.s32.totalorder %s420, 63
      %s422 = scalar_select %p421, %s420, 63
      %s423 = smul.addr %s422, 8
      %s424 = scalar_lea.vmem %s4, %s423
      %s425 = sadd.s32 %s22, %s23
      %s426 = smul.u32 32, %s425
      %s427 = sadd.s32 %s22, %s23
      %p428 = scmp.lt.s32.totalorder %s427, 1
      %s429 = scalar_select %p428, %s427, 1
      %s430 = scalar_lea.vmem %s5, %s429
      %s431 = sadd.s32 %s22, %s23
      %s432 = sadd.s32 %s22, %s23
      %p433 = scmp.lt.s32.totalorder %s432, 1
      %s434 = scalar_select %p433, %s432, 1
      %s435 = scalar_lea.vmem %s6, %s434
      %s436 = sadd.s32 %s22, %s23
      %v438 = vld [vmem:[%s386] sm:$0xff]
      %v439 = vld [vmem:[%s386 + $0x8] sm:$0xff]
      %v440 = vld [vmem:[%s386 + $0x10] sm:$0x3]
      %v441 = vld [vmem:[%s386 + $0x18] sm:$0xff]
      %v442 = vld [vmem:[%s386 + $0x20] sm:$0xff]
      %v443 = vld [vmem:[%s386 + $0x28] sm:$0x3]
      %v444 = vld [vmem:[%s386 + $0x30] sm:$0xff]
      %v445 = vld [vmem:[%s386 + $0x38] sm:$0xff]
      %v446 = vld [vmem:[%s386 + $0x40] sm:$0x3]
      %v447 = vld [vmem:[%s386 + $0x48] sm:$0xff]
      %v448 = vld [vmem:[%s386 + $0x50] sm:$0xff]
      %v449 = vld [vmem:[%s386 + $0x58] sm:$0x3]
      %v450 = vld [vmem:[%s386 + $0x60] sm:$0xff]
      %v451 = vld [vmem:[%s386 + $0x68] sm:$0xff]
      %v452 = vld [vmem:[%s386 + $0x70] sm:$0x3]
      %v453 = vld [vmem:[%s386 + $0x78] sm:$0xff]
      %v454 = vld [vmem:[%s386 + $0x80] sm:$0xff]
      %v455 = vld [vmem:[%s386 + $0x88] sm:$0x3]
      %v456 = vld [vmem:[%s386 + $0x90] sm:$0xff]
      %v457 = vld [vmem:[%s386 + $0x98] sm:$0xff]
      %v458 = vld [vmem:[%s386 + $0xa0] sm:$0x3]
      %v459 = vld [vmem:[%s386 + $0xa8] sm:$0xff]
      %v460 = vld [vmem:[%s386 + $0xb0] sm:$0xff]
      %v461 = vld [vmem:[%s386 + $0xb8] sm:$0x3]
      %v462 = vld [vmem:[%s386 + $0xc0] sm:$0xff]
      %v463 = vld [vmem:[%s386 + $0xc8] sm:$0xff]
      %v464 = vld [vmem:[%s386 + $0xd0] sm:$0x3]
      %v465 = vld [vmem:[%s386 + $0xd8] sm:$0xff]
      %v466 = vld [vmem:[%s386 + $0xe0] sm:$0xff]
      %v467 = vld [vmem:[%s386 + $0xe8] sm:$0x3]
      %v468 = vld [vmem:[%s386 + $0xf0] sm:$0xff]
      %v469 = vld [vmem:[%s386 + $0xf8] sm:$0xff]
      %v470 = vld [vmem:[%s386 + $0x100] sm:$0x3]
      %v471 = vld [vmem:[%s386 + $0x108] sm:$0xff]
      %v472 = vld [vmem:[%s386 + $0x110] sm:$0xff]
      %v473 = vld [vmem:[%s386 + $0x118] sm:$0x3]
      %v474 = vld [vmem:[%s386 + $0x120] sm:$0xff]
      %v475 = vld [vmem:[%s386 + $0x128] sm:$0xff]
      %v476 = vld [vmem:[%s386 + $0x130] sm:$0x3]
      %v477 = vld [vmem:[%s386 + $0x138] sm:$0xff]
      %v478 = vld [vmem:[%s386 + $0x140] sm:$0xff]
      %v479 = vld [vmem:[%s386 + $0x148] sm:$0x3]
      %v480 = vld [vmem:[%s386 + $0x150] sm:$0xff]
      %v481 = vld [vmem:[%s386 + $0x158] sm:$0xff]
      %v482 = vld [vmem:[%s386 + $0x160] sm:$0x3]
      %v483 = vld [vmem:[%s386 + $0x168] sm:$0xff]
      %v484 = vld [vmem:[%s386 + $0x170] sm:$0xff]
      %v485 = vld [vmem:[%s386 + $0x178] sm:$0x3]
      %v486 = vld [vmem:[%s403] sm:$0xff]
      %v487 = vld [vmem:[%s403 + $0x8] sm:$0xff]
      %v488 = vld [vmem:[%s403 + $0x10] sm:$0x3]
      %v489 = vld [vmem:[%s416] sm:$0xff]
      %v490 = vld [vmem:[%s416 + $0x8] sm:$0xff]
      %v491 = vld [vmem:[%s416 + $0x10] sm:$0x3]
      %v492 = vpack.c.bf16 %v439, %v438
      %v493 = vpack.c.bf16 %v442, %v441
      %v494 = vpack.c.bf16 %v445, %v444
      %v495 = vpack.c.bf16 %v448, %v447
      %v496 = vpack.c.bf16 %v451, %v450
      %v497 = vpack.c.bf16 %v454, %v453
      %v498 = vpack.c.bf16 %v457, %v456
      %v499 = vpack.c.bf16 %v460, %v459
      %v500 = vpack.c.bf16 %v463, %v462
      %v501 = vpack.c.bf16 %v466, %v465
      %v502 = vpack.c.bf16 %v469, %v468
      %v503 = vpack.c.bf16 %v472, %v471
      %v504 = vpack.c.bf16 %v475, %v474
      %v505 = vpack.c.bf16 %v478, %v477
      %v506 = vpack.c.bf16 %v481, %v480
      %v507 = vpack.c.bf16 %v484, %v483
      %v508 = vpack.c.bf16 %v487, %v486
      %v509 = vpack.c.bf16 %v490, %v489
      %v510 = vld [vmem:[%s3] sm:$0x3]
      %s511 = scalar_lea.vmem %s3, 6
      %v512 = vld [vmem:[%s511] sm:$0x3]
      %vm513 = vcmask 31744
      %v515 = vsel %vm513, %v493, 0
      %v518 = vsel %vm513, %v494, 0
      %v521 = vsel %vm513, %v495, 0
      %v524 = vsel %vm513, %v496, 0
      %v527 = vsel %vm513, %v497, 0
      %v530 = vsel %vm513, %v498, 0
      %v533 = vsel %vm513, %v499, 0
      %v536 = vsel %vm513, %v500, 0
      %v539 = vsel %vm513, %v501, 0
      %v542 = vsel %vm513, %v502, 0
      %v545 = vsel %vm513, %v503, 0
      %v548 = vsel %vm513, %v504, 0
      %v551 = vsel %vm513, %v505, 0
      %v554 = vsel %vm513, %v506, 0
      %v557 = vsel %vm513, %v507, 0
      %v560 = vsel %vm513, %v508, 0
      %vm562 = vcmask 1041408
      %v564 = vsel %vm562, %v512, 0
      %566 = vmatprep.subr.bf16.mxu0 0
      %567 = vmatpush1.bf16.msra.mxu0 %v564
      %568 = vmatprep.subr.bf16.mxu0 0
      %569 = vmatpush1.bf16.msra.mxu0 0
      %570 = vmatprep.subr.bf16.mxu0 0
      %571 = vmatpush1.bf16.msra.mxu0 0
      %572 = vmatprep.subr.bf16.mxu0 0
      %573 = vmatpush1.bf16.msra.mxu0 0
      %574 = vmatprep.subr.bf16.mxu0 0
      %575 = vmatpush1.bf16.msra.mxu0 0
      %576 = vmatprep.subr.bf16.mxu0 0
      %577 = vmatpush1.bf16.msra.mxu0 0
      %578 = vmatprep.subr.bf16.mxu0 0
      %579 = vmatpush1.bf16.msra.mxu0 0
      %580 = vmatprep.subr.bf16.mxu0 0
      %581 = vmatpush1.bf16.msra.mxu0 0
      %582 = vmatprep.subr.bf16.mxu0 0
      %583 = vmatpush1.bf16.msra.mxu0 0
      %584 = vmatprep.subr.bf16.mxu0 0
      %585 = vmatpush1.bf16.msra.mxu0 0
      %586 = vmatprep.subr.bf16.mxu0 0
      %587 = vmatpush1.bf16.msra.mxu0 0
      %588 = vmatprep.subr.bf16.mxu0 0
      %589 = vmatpush1.bf16.msra.mxu0 0
      %590 = vmatprep.subr.bf16.mxu0 0
      %591 = vmatpush1.bf16.msra.mxu0 0
      %592 = vmatprep.subr.bf16.mxu0 0
      %593 = vmatpush1.bf16.msra.mxu0 0
      %594 = vmatprep.subr.bf16.mxu0 0
      %595 = vmatpush1.bf16.msra.mxu0 0
      %596 = vmatprep.subr.bf16.mxu0 0
      %597 = vmatpush1.bf16.msra.mxu0 0
      %598 = vmatprep.mubr.bf16.mxu0 0
      %599 = vmatmul.mubr.bf16.gmra.mrb[0].mxu0 %v515
      %v600 = vpop.f32.mrb[0].mxu0
      %v601 = vadd.f32 0.0, %v600
      %v602 = vpop.f32.mrb[0].mxu0
      %v603 = vpop.f32.mrb[0].mxu0
      %v604 = vadd.f32 0.0, %v603
      %v605 = vpop.f32.mrb[0].mxu0
      %606 = vmatprep.mubr.bf16.mxu0 0
      %607 = vmatmul.mubr.bf16.gmra.mrb[0].mxu0 %v518
      %v608 = vpop.f32.mrb[0].mxu0
      %v609 = vadd.f32 0.0, %v608
      %v610 = vpop.f32.mrb[0].mxu0
      %v611 = vpop.f32.mrb[0].mxu0
      %v612 = vadd.f32 0.0, %v611
      %v613 = vpop.f32.mrb[0].mxu0
      %614 = vmatprep.mubr.bf16.mxu0 0
      %615 = vmatmul.mubr.bf16.gmra.mrb[0].mxu0 %v521
      %v616 = vpop.f32.mrb[0].mxu0
      %v617 = vadd.f32 0.0, %v616
      %v618 = vpop.f32.mrb[0].mxu0
      %v619 = vpop.f32.mrb[0].mxu0
      %v620 = vadd.f32 0.0, %v619
      %v621 = vpop.f32.mrb[0].mxu0
      %622 = vmatprep.mubr.bf16.mxu0 0
      %623 = vmatmul.mubr.bf16.gmra.mrb[0].mxu0 %v524
      %v624 = vpop.f32.mrb[0].mxu0
      %v625 = vadd.f32 0.0, %v624
      %v626 = vpop.f32.mrb[0].mxu0
      %v627 = vpop.f32.mrb[0].mxu0
      %v628 = vadd.f32 0.0, %v627
      %v629 = vpop.f32.mrb[0].mxu0
      %630 = vmatprep.mubr.bf16.mxu0 0
      %631 = vmatmul.mubr.bf16.gmra.mrb[0].mxu0 %v527
      %v632 = vpop.f32.mrb[0].mxu0
      %v633 = vadd.f32 0.0, %v632
      %v634 = vpop.f32.mrb[0].mxu0
      %v635 = vpop.f32.mrb[0].mxu0
      %v636 = vadd.f32 0.0, %v635
      %v637 = vpop.f32.mrb[0].mxu0
      %638 = vmatprep.mubr.bf16.mxu0 0
      %639 = vmatmul.mubr.bf16.gmra.mrb[0].mxu0 %v530
      %v640 = vpop.f32.mrb[0].mxu0
      %v641 = vadd.f32 0.0, %v640
      %v642 = vpop.f32.mrb[0].mxu0
      %v643 = vpop.f32.mrb[0].mxu0
      %v644 = vadd.f32 0.0, %v643
      %v645 = vpop.f32.mrb[0].mxu0
      %646 = vmatprep.mubr.bf16.mxu0 0
      %647 = vmatmul.mubr.bf16.gmra.mrb[0].mxu0 %v533
      %v648 = vpop.f32.mrb[0].mxu0
      %v649 = vadd.f32 0.0, %v648
      %v650 = vpop.f32.mrb[0].mxu0
      %v651 = vpop.f32.mrb[0].mxu0
      %v652 = vadd.f32 0.0, %v651
      %v653 = vpop.f32.mrb[0].mxu0
      %654 = vmatprep.mubr.bf16.mxu0 0
      %655 = vmatmul.mubr.bf16.gmra.mrb[0].mxu0 %v536
      %v656 = vpop.f32.mrb[0].mxu0
      %v657 = vadd.f32 0.0, %v656
      %v658 = vpop.f32.mrb[0].mxu0
      %v659 = vpop.f32.mrb[0].mxu0
      %v660 = vadd.f32 0.0, %v659
      %v661 = vpop.f32.mrb[0].mxu0
      %662 = vmatprep.mubr.bf16.mxu0 0
      %663 = vmatmul.mubr.bf16.gmra.mrb[0].mxu0 %v539
      %v664 = vpop.f32.mrb[0].mxu0
      %v665 = vadd.f32 0.0, %v664
      %v666 = vpop.f32.mrb[0].mxu0
      %v667 = vpop.f32.mrb[0].mxu0
      %v668 = vadd.f32 0.0, %v667
      %v669 = vpop.f32.mrb[0].mxu0
      %670 = vmatprep.mubr.bf16.mxu0 0
      %671 = vmatmul.mubr.bf16.gmra.mrb[0].mxu0 %v542
      %v672 = vpop.f32.mrb[0].mxu0
      %v673 = vadd.f32 0.0, %v672
      %v674 = vpop.f32.mrb[0].mxu0
      %v675 = vpop.f32.mrb[0].mxu0
      %v676 = vadd.f32 0.0, %v675
      %v677 = vpop.f32.mrb[0].mxu0
      %678 = vmatprep.mubr.bf16.mxu0 0
      %679 = vmatmul.mubr.bf16.gmra.mrb[0].mxu0 %v545
      %v680 = vpop.f32.mrb[0].mxu0
      %v681 = vadd.f32 0.0, %v680
      %v682 = vpop.f32.mrb[0].mxu0
      %v683 = vpop.f32.mrb[0].mxu0
      %v684 = vadd.f32 0.0, %v683
      %v685 = vpop.f32.mrb[0].mxu0
      %686 = vmatprep.mubr.bf16.mxu0 0
      %687 = vmatmul.mubr.bf16.gmra.mrb[0].mxu0 %v548
      %v688 = vpop.f32.mrb[0].mxu0
      %v689 = vadd.f32 0.0, %v688
      %v690 = vpop.f32.mrb[0].mxu0
      %v691 = vpop.f32.mrb[0].mxu0
      %v692 = vadd.f32 0.0, %v691
      %v693 = vpop.f32.mrb[0].mxu0
      %694 = vmatprep.mubr.bf16.mxu0 0
      %695 = vmatmul.mubr.bf16.gmra.mrb[0].mxu0 %v551
      %v696 = vpop.f32.mrb[0].mxu0
      %v697 = vadd.f32 0.0, %v696
      %v698 = vpop.f32.mrb[0].mxu0
      %v699 = vpop.f32.mrb[0].mxu0
      %v700 = vadd.f32 0.0, %v699
      %v701 = vpop.f32.mrb[0].mxu0
      %702 = vmatprep.mubr.bf16.mxu0 0
      %703 = vmatmul.mubr.bf16.gmra.mrb[0].mxu0 %v554
      %v704 = vpop.f32.mrb[0].mxu0
      %v705 = vadd.f32 0.0, %v704
      %v706 = vpop.f32.mrb[0].mxu0
      %v707 = vpop.f32.mrb[0].mxu0
      %v708 = vadd.f32 0.0, %v707
      %v709 = vpop.f32.mrb[0].mxu0
      %710 = vmatprep.mubr.bf16.mxu0 0
      %711 = vmatmul.mubr.bf16.gmra.mrb[0].mxu0 %v557
      %v712 = vpop.f32.mrb[0].mxu0
      %v713 = vadd.f32 0.0, %v712
      %v714 = vpop.f32.mrb[0].mxu0
      %v715 = vpop.f32.mrb[0].mxu0
      %v716 = vadd.f32 0.0, %v715
      %v717 = vpop.f32.mrb[0].mxu0
      %718 = vmatprep.mubr.bf16.mxu0 0
      %719 = vmatmul.mubr.bf16.gmra.mrb[0].mxu0 %v560
      %v720 = vpop.f32.mrb[0].mxu0
      %v721 = vadd.f32 0.0, %v720
      %v722 = vpop.f32.mrb[0].mxu0
      %v723 = vpop.f32.mrb[0].mxu0
      %v724 = vadd.f32 0.0, %v723
      %v725 = vpop.f32.mrb[0].mxu0
      %726 = vdwg.mxu0
      %v728 = vsel %vm513, %v492, 0
      %v731 = vsel %vm562, %v510, 0
      %733 = vmatprep.subr.bf16.mxu0 0
      %734 = vmatpush1.bf16.msra.mxu0 %v731
      %735 = vmatprep.subr.bf16.mxu0 0
      %736 = vmatpush1.bf16.msra.mxu0 0
      %737 = vmatprep.subr.bf16.mxu0 0
      %738 = vmatpush1.bf16.msra.mxu0 0
      %739 = vmatprep.subr.bf16.mxu0 0
      %740 = vmatpush1.bf16.msra.mxu0 0
      %741 = vmatprep.subr.bf16.mxu0 0
      %742 = vmatpush1.bf16.msra.mxu0 0
      %743 = vmatprep.subr.bf16.mxu0 0
      %744 = vmatpush1.bf16.msra.mxu0 0
      %745 = vmatprep.subr.bf16.mxu0 0
      %746 = vmatpush1.bf16.msra.mxu0 0
      %747 = vmatprep.subr.bf16.mxu0 0
      %748 = vmatpush1.bf16.msra.mxu0 0
      %749 = vmatprep.subr.bf16.mxu0 0
      %750 = vmatpush1.bf16.msra.mxu0 0
      %751 = vmatprep.subr.bf16.mxu0 0
      %752 = vmatpush1.bf16.msra.mxu0 0
      %753 = vmatprep.subr.bf16.mxu0 0
      %754 = vmatpush1.bf16.msra.mxu0 0
      %755 = vmatprep.subr.bf16.mxu0 0
      %756 = vmatpush1.bf16.msra.mxu0 0
      %757 = vmatprep.subr.bf16.mxu0 0
      %758 = vmatpush1.bf16.msra.mxu0 0
      %759 = vmatprep.subr.bf16.mxu0 0
      %760 = vmatpush1.bf16.msra.mxu0 0
      %761 = vmatprep.subr.bf16.mxu0 0
      %762 = vmatpush1.bf16.msra.mxu0 0
      %763 = vmatprep.subr.bf16.mxu0 0
      %764 = vmatpush1.bf16.msra.mxu0 0
      %765 = vmatprep.mubr.bf16.mxu0 0
      %766 = vmatmul.mubr.bf16.gmra.mrb[0].mxu0 %v728
      %v767 = vpop.f32.mrb[0].mxu0
      %v768 = vadd.f32 %v601, %v767
      %v769 = vpop.f32.mrb[0].mxu0
      %v770 = vpop.f32.mrb[0].mxu0
      %v771 = vadd.f32 %v604, %v770
      %v772 = vpop.f32.mrb[0].mxu0
      %773 = vmatprep.mubr.bf16.mxu0 0
      %774 = vmatmul.mubr.bf16.gmra.mrb[0].mxu0 %v515
      %v775 = vpop.f32.mrb[0].mxu0
      %v776 = vadd.f32 %v609, %v775
      %v777 = vpop.f32.mrb[0].mxu0
      %v778 = vpop.f32.mrb[0].mxu0
      %v779 = vadd.f32 %v612, %v778
      %v780 = vpop.f32.mrb[0].mxu0
      %781 = vmatprep.mubr.bf16.mxu0 0
      %782 = vmatmul.mubr.bf16.gmra.mrb[0].mxu0 %v518
      %v783 = vpop.f32.mrb[0].mxu0
      %v784 = vadd.f32 %v617, %v783
      %v785 = vpop.f32.mrb[0].mxu0
      %v786 = vpop.f32.mrb[0].mxu0
      %v787 = vadd.f32 %v620, %v786
      %v788 = vpop.f32.mrb[0].mxu0
      %789 = vmatprep.mubr.bf16.mxu0 0
      %790 = vmatmul.mubr.bf16.gmra.mrb[0].mxu0 %v521
      %v791 = vpop.f32.mrb[0].mxu0
      %v792 = vadd.f32 %v625, %v791
      %v793 = vpop.f32.mrb[0].mxu0
      %v794 = vpop.f32.mrb[0].mxu0
      %v795 = vadd.f32 %v628, %v794
      %v796 = vpop.f32.mrb[0].mxu0
      %797 = vmatprep.mubr.bf16.mxu0 0
      %798 = vmatmul.mubr.bf16.gmra.mrb[0].mxu0 %v524
      %v799 = vpop.f32.mrb[0].mxu0
      %v800 = vadd.f32 %v633, %v799
      %v801 = vpop.f32.mrb[0].mxu0
      %v802 = vpop.f32.mrb[0].mxu0
      %v803 = vadd.f32 %v636, %v802
      %v804 = vpop.f32.mrb[0].mxu0
      %805 = vmatprep.mubr.bf16.mxu0 0
      %806 = vmatmul.mubr.bf16.gmra.mrb[0].mxu0 %v527
      %v807 = vpop.f32.mrb[0].mxu0
      %v808 = vadd.f32 %v641, %v807
      %v809 = vpop.f32.mrb[0].mxu0
      %v810 = vpop.f32.mrb[0].mxu0
      %v811 = vadd.f32 %v644, %v810
      %v812 = vpop.f32.mrb[0].mxu0
      %813 = vmatprep.mubr.bf16.mxu0 0
      %814 = vmatmul.mubr.bf16.gmra.mrb[0].mxu0 %v530
      %v815 = vpop.f32.mrb[0].mxu0
      %v816 = vadd.f32 %v649, %v815
      %v817 = vpop.f32.mrb[0].mxu0
      %v818 = vpop.f32.mrb[0].mxu0
      %v819 = vadd.f32 %v652, %v818
      %v820 = vpop.f32.mrb[0].mxu0
      %821 = vmatprep.mubr.bf16.mxu0 0
      %822 = vmatmul.mubr.bf16.gmra.mrb[0].mxu0 %v533
      %v823 = vpop.f32.mrb[0].mxu0
      %v824 = vadd.f32 %v657, %v823
      %v825 = vpop.f32.mrb[0].mxu0
      %v826 = vpop.f32.mrb[0].mxu0
      %v827 = vadd.f32 %v660, %v826
      %v828 = vpop.f32.mrb[0].mxu0
      %829 = vmatprep.mubr.bf16.mxu0 0
      %830 = vmatmul.mubr.bf16.gmra.mrb[0].mxu0 %v536
      %v831 = vpop.f32.mrb[0].mxu0
      %v832 = vadd.f32 %v665, %v831
      %v833 = vpop.f32.mrb[0].mxu0
      %v834 = vpop.f32.mrb[0].mxu0
      %v835 = vadd.f32 %v668, %v834
      %v836 = vpop.f32.mrb[0].mxu0
      %837 = vmatprep.mubr.bf16.mxu0 0
      %838 = vmatmul.mubr.bf16.gmra.mrb[0].mxu0 %v539
      %v839 = vpop.f32.mrb[0].mxu0
      %v840 = vadd.f32 %v673, %v839
      %v841 = vpop.f32.mrb[0].mxu0
      %v842 = vpop.f32.mrb[0].mxu0
      %v843 = vadd.f32 %v676, %v842
      %v844 = vpop.f32.mrb[0].mxu0
      %845 = vmatprep.mubr.bf16.mxu0 0
      %846 = vmatmul.mubr.bf16.gmra.mrb[0].mxu0 %v542
      %v847 = vpop.f32.mrb[0].mxu0
      %v848 = vadd.f32 %v681, %v847
      %v849 = vpop.f32.mrb[0].mxu0
      %v850 = vpop.f32.mrb[0].mxu0
      %v851 = vadd.f32 %v684, %v850
      %v852 = vpop.f32.mrb[0].mxu0
      %853 = vmatprep.mubr.bf16.mxu0 0
      %854 = vmatmul.mubr.bf16.gmra.mrb[0].mxu0 %v545
      %v855 = vpop.f32.mrb[0].mxu0
      %v856 = vadd.f32 %v689, %v855
      %v857 = vpop.f32.mrb[0].mxu0
      %v858 = vpop.f32.mrb[0].mxu0
      %v859 = vadd.f32 %v692, %v858
      %v860 = vpop.f32.mrb[0].mxu0
      %861 = vmatprep.mubr.bf16.mxu0 0
      %862 = vmatmul.mubr.bf16.gmra.mrb[0].mxu0 %v548
      %v863 = vpop.f32.mrb[0].mxu0
      %v864 = vadd.f32 %v697, %v863
      %v865 = vpop.f32.mrb[0].mxu0
      %v866 = vpop.f32.mrb[0].mxu0
      %v867 = vadd.f32 %v700, %v866
      %v868 = vpop.f32.mrb[0].mxu0
      %869 = vmatprep.mubr.bf16.mxu0 0
      %870 = vmatmul.mubr.bf16.gmra.mrb[0].mxu0 %v551
      %v871 = vpop.f32.mrb[0].mxu0
      %v872 = vadd.f32 %v705, %v871
      %v873 = vpop.f32.mrb[0].mxu0
      %v874 = vpop.f32.mrb[0].mxu0
      %v875 = vadd.f32 %v708, %v874
      %v876 = vpop.f32.mrb[0].mxu0
      %877 = vmatprep.mubr.bf16.mxu0 0
      %878 = vmatmul.mubr.bf16.gmra.mrb[0].mxu0 %v554
      %v879 = vpop.f32.mrb[0].mxu0
      %v880 = vadd.f32 %v713, %v879
      %v881 = vpop.f32.mrb[0].mxu0
      %v882 = vpop.f32.mrb[0].mxu0
      %v883 = vadd.f32 %v716, %v882
      %v884 = vpop.f32.mrb[0].mxu0
      %885 = vmatprep.mubr.bf16.mxu0 0
      %886 = vmatmul.mubr.bf16.gmra.mrb[0].mxu0 %v557
      %v887 = vpop.f32.mrb[0].mxu0
      %v888 = vadd.f32 %v721, %v887
      %v889 = vpop.f32.mrb[0].mxu0
      %v890 = vpop.f32.mrb[0].mxu0
      %v891 = vadd.f32 %v724, %v890
      %v892 = vpop.f32.mrb[0].mxu0
      %893 = vdwg.mxu0
      %s894 = scalar_lea.vmem %s3, 12
      %v895 = vld [vmem:[%s894] sm:$0x3]
      %v897 = vsel %vm513, %v509, 0
      %v900 = vsel %vm562, %v895, 0
      %902 = vmatprep.subr.bf16.mxu0 0
      %903 = vmatpush1.bf16.msra.mxu0 %v900
      %904 = vmatprep.subr.bf16.mxu0 0
      %905 = vmatpush1.bf16.msra.mxu0 0
      %906 = vmatprep.subr.bf16.mxu0 0
      %907 = vmatpush1.bf16.msra.mxu0 0
      %908 = vmatprep.subr.bf16.mxu0 0
      %909 = vmatpush1.bf16.msra.mxu0 0
      %910 = vmatprep.subr.bf16.mxu0 0
      %911 = vmatpush1.bf16.msra.mxu0 0
      %912 = vmatprep.subr.bf16.mxu0 0
      %913 = vmatpush1.bf16.msra.mxu0 0
      %914 = vmatprep.subr.bf16.mxu0 0
      %915 = vmatpush1.bf16.msra.mxu0 0
      %916 = vmatprep.subr.bf16.mxu0 0
      %917 = vmatpush1.bf16.msra.mxu0 0
      %918 = vmatprep.subr.bf16.mxu0 0
      %919 = vmatpush1.bf16.msra.mxu0 0
      %920 = vmatprep.subr.bf16.mxu0 0
      %921 = vmatpush1.bf16.msra.mxu0 0
      %922 = vmatprep.subr.bf16.mxu0 0
      %923 = vmatpush1.bf16.msra.mxu0 0
      %924 = vmatprep.subr.bf16.mxu0 0
      %925 = vmatpush1.bf16.msra.mxu0 0
      %926 = vmatprep.subr.bf16.mxu0 0
      %927 = vmatpush1.bf16.msra.mxu0 0
      %928 = vmatprep.subr.bf16.mxu0 0
      %929 = vmatpush1.bf16.msra.mxu0 0
      %930 = vmatprep.subr.bf16.mxu0 0
      %931 = vmatpush1.bf16.msra.mxu0 0
      %932 = vmatprep.subr.bf16.mxu0 0
      %933 = vmatpush1.bf16.msra.mxu0 0
      %934 = vmatprep.mubr.bf16.mxu0 0
      %935 = vmatmul.mubr.bf16.gmra.mrb[0].mxu0 %v518
      %v936 = vpop.f32.mrb[0].mxu0
      %v937 = vadd.f32 0.0, %v936
      %v938 = vpop.f32.mrb[0].mxu0
      %v939 = vpop.f32.mrb[0].mxu0
      %v940 = vadd.f32 0.0, %v939
      %v941 = vpop.f32.mrb[0].mxu0
      %942 = vmatprep.mubr.bf16.mxu0 0
      %943 = vmatmul.mubr.bf16.gmra.mrb[0].mxu0 %v521
      %v944 = vpop.f32.mrb[0].mxu0
      %v945 = vadd.f32 0.0, %v944
      %v946 = vpop.f32.mrb[0].mxu0
      %v947 = vpop.f32.mrb[0].mxu0
      %v948 = vadd.f32 0.0, %v947
      %v949 = vpop.f32.mrb[0].mxu0
      %950 = vmatprep.mubr.bf16.mxu0 0
      %951 = vmatmul.mubr.bf16.gmra.mrb[0].mxu0 %v524
      %v952 = vpop.f32.mrb[0].mxu0
      %v953 = vadd.f32 0.0, %v952
      %v954 = vpop.f32.mrb[0].mxu0
      %v955 = vpop.f32.mrb[0].mxu0
      %v956 = vadd.f32 0.0, %v955
      %v957 = vpop.f32.mrb[0].mxu0
      %958 = vmatprep.mubr.bf16.mxu0 0
      %959 = vmatmul.mubr.bf16.gmra.mrb[0].mxu0 %v527
      %v960 = vpop.f32.mrb[0].mxu0
      %v961 = vadd.f32 0.0, %v960
      %v962 = vpop.f32.mrb[0].mxu0
      %v963 = vpop.f32.mrb[0].mxu0
      %v964 = vadd.f32 0.0, %v963
      %v965 = vpop.f32.mrb[0].mxu0
      %966 = vmatprep.mubr.bf16.mxu0 0
      %967 = vmatmul.mubr.bf16.gmra.mrb[0].mxu0 %v530
      %v968 = vpop.f32.mrb[0].mxu0
      %v969 = vadd.f32 0.0, %v968
      %v970 = vpop.f32.mrb[0].mxu0
      %v971 = vpop.f32.mrb[0].mxu0
      %v972 = vadd.f32 0.0, %v971
      %v973 = vpop.f32.mrb[0].mxu0
      %974 = vmatprep.mubr.bf16.mxu0 0
      %975 = vmatmul.mubr.bf16.gmra.mrb[0].mxu0 %v533
      %v976 = vpop.f32.mrb[0].mxu0
      %v977 = vadd.f32 0.0, %v976
      %v978 = vpop.f32.mrb[0].mxu0
      %v979 = vpop.f32.mrb[0].mxu0
      %v980 = vadd.f32 0.0, %v979
      %v981 = vpop.f32.mrb[0].mxu0
      %982 = vmatprep.mubr.bf16.mxu0 0
      %983 = vmatmul.mubr.bf16.gmra.mrb[0].mxu0 %v536
      %v984 = vpop.f32.mrb[0].mxu0
      %v985 = vadd.f32 0.0, %v984
      %v986 = vpop.f32.mrb[0].mxu0
      %v987 = vpop.f32.mrb[0].mxu0
      %v988 = vadd.f32 0.0, %v987
      %v989 = vpop.f32.mrb[0].mxu0
      %990 = vmatprep.mubr.bf16.mxu0 0
      %991 = vmatmul.mubr.bf16.gmra.mrb[0].mxu0 %v539
      %v992 = vpop.f32.mrb[0].mxu0
      %v993 = vadd.f32 0.0, %v992
      %v994 = vpop.f32.mrb[0].mxu0
      %v995 = vpop.f32.mrb[0].mxu0
      %v996 = vadd.f32 0.0, %v995
      %v997 = vpop.f32.mrb[0].mxu0
      %998 = vmatprep.mubr.bf16.mxu0 0
      %999 = vmatmul.mubr.bf16.gmra.mrb[0].mxu0 %v542
      %v1000 = vpop.f32.mrb[0].mxu0
      %v1001 = vadd.f32 0.0, %v1000
      %v1002 = vpop.f32.mrb[0].mxu0
      %v1003 = vpop.f32.mrb[0].mxu0
      %v1004 = vadd.f32 0.0, %v1003
      %v1005 = vpop.f32.mrb[0].mxu0
      %1006 = vmatprep.mubr.bf16.mxu0 0
      %1007 = vmatmul.mubr.bf16.gmra.mrb[0].mxu0 %v545
      %v1008 = vpop.f32.mrb[0].mxu0
      %v1009 = vadd.f32 0.0, %v1008
      %v1010 = vpop.f32.mrb[0].mxu0
      %v1011 = vpop.f32.mrb[0].mxu0
      %v1012 = vadd.f32 0.0, %v1011
      %v1013 = vpop.f32.mrb[0].mxu0
      %1014 = vmatprep.mubr.bf16.mxu0 0
      %1015 = vmatmul.mubr.bf16.gmra.mrb[0].mxu0 %v548
      %v1016 = vpop.f32.mrb[0].mxu0
      %v1017 = vadd.f32 0.0, %v1016
      %v1018 = vpop.f32.mrb[0].mxu0
      %v1019 = vpop.f32.mrb[0].mxu0
      %v1020 = vadd.f32 0.0, %v1019
      %v1021 = vpop.f32.mrb[0].mxu0
      %1022 = vmatprep.mubr.bf16.mxu0 0
      %1023 = vmatmul.mubr.bf16.gmra.mrb[0].mxu0 %v551
      %v1024 = vpop.f32.mrb[0].mxu0
      %v1025 = vadd.f32 0.0, %v1024
      %v1026 = vpop.f32.mrb[0].mxu0
      %v1027 = vpop.f32.mrb[0].mxu0
      %v1028 = vadd.f32 0.0, %v1027
      %v1029 = vpop.f32.mrb[0].mxu0
      %1030 = vmatprep.mubr.bf16.mxu0 0
      %1031 = vmatmul.mubr.bf16.gmra.mrb[0].mxu0 %v554
      %v1032 = vpop.f32.mrb[0].mxu0
      %v1033 = vadd.f32 0.0, %v1032
      %v1034 = vpop.f32.mrb[0].mxu0
      %v1035 = vpop.f32.mrb[0].mxu0
      %v1036 = vadd.f32 0.0, %v1035
      %v1037 = vpop.f32.mrb[0].mxu0
      %1038 = vmatprep.mubr.bf16.mxu0 0
      %1039 = vmatmul.mubr.bf16.gmra.mrb[0].mxu0 %v557
      %v1040 = vpop.f32.mrb[0].mxu0
      %v1041 = vadd.f32 0.0, %v1040
      %v1042 = vpop.f32.mrb[0].mxu0
      %v1043 = vpop.f32.mrb[0].mxu0
      %v1044 = vadd.f32 0.0, %v1043
      %v1045 = vpop.f32.mrb[0].mxu0
      %1046 = vmatprep.mubr.bf16.mxu0 0
      %1047 = vmatmul.mubr.bf16.gmra.mrb[0].mxu0 %v560
      %v1048 = vpop.f32.mrb[0].mxu0
      %v1049 = vadd.f32 0.0, %v1048
      %v1050 = vpop.f32.mrb[0].mxu0
      %v1051 = vpop.f32.mrb[0].mxu0
      %v1052 = vadd.f32 0.0, %v1051
      %v1053 = vpop.f32.mrb[0].mxu0
      %1054 = vmatprep.mubr.bf16.mxu0 0
      %1055 = vmatmul.mubr.bf16.gmra.mrb[0].mxu0 %v897
      %v1056 = vpop.f32.mrb[0].mxu0
      %v1057 = vadd.f32 0.0, %v1056
      %v1058 = vpop.f32.mrb[0].mxu0
      %v1059 = vpop.f32.mrb[0].mxu0
      %v1060 = vadd.f32 0.0, %v1059
      %v1061 = vpop.f32.mrb[0].mxu0
      %1062 = vdwg.mxu0
      %v1063 = vadd.f32 %v768, %v937
      %v1064 = vadd.f32 %v771, %v940
      %v1065 = vadd.f32 %v776, %v945
      %v1066 = vadd.f32 %v779, %v948
      %v1067 = vadd.f32 %v784, %v953
      %v1068 = vadd.f32 %v787, %v956
      %v1069 = vadd.f32 %v792, %v961
      %v1070 = vadd.f32 %v795, %v964
      %v1071 = vadd.f32 %v800, %v969
      %v1072 = vadd.f32 %v803, %v972
      %v1073 = vadd.f32 %v808, %v977
      %v1074 = vadd.f32 %v811, %v980
      %v1075 = vadd.f32 %v816, %v985
      %v1076 = vadd.f32 %v819, %v988
      %v1077 = vadd.f32 %v824, %v993
      %v1078 = vadd.f32 %v827, %v996
      %v1079 = vadd.f32 %v832, %v1001
      %v1080 = vadd.f32 %v835, %v1004
      %v1081 = vadd.f32 %v840, %v1009
      %v1082 = vadd.f32 %v843, %v1012
      %v1083 = vadd.f32 %v848, %v1017
      %v1084 = vadd.f32 %v851, %v1020
      %v1085 = vadd.f32 %v856, %v1025
      %v1086 = vadd.f32 %v859, %v1028
      %v1087 = vadd.f32 %v864, %v1033
      %v1088 = vadd.f32 %v867, %v1036
      %v1089 = vadd.f32 %v872, %v1041
      %v1090 = vadd.f32 %v875, %v1044
      %v1091 = vadd.f32 %v880, %v1049
      %v1092 = vadd.f32 %v883, %v1052
      %v1093 = vadd.f32 %v888, %v1057
      %v1094 = vadd.f32 %v891, %v1060
      %vm1149 = vcmask 1046528
      %v1150 = vrot.slane %v438, 1
      %v1151 = vrot.slane %v439, 1
      %v1152 = vsel %vm1149, %v1150, %v1151
      %v1153 = vrot.slane %v440, 1
      %v1154 = vsel %vm1149, %v1151, %v1153
      %v1155 = vrot.slane %v441, 1
      %v1156 = vrot.slane %v442, 1
      %v1157 = vsel %vm1149, %v1155, %v1156
      %v1158 = vrot.slane %v443, 1
      %v1159 = vsel %vm1149, %v1156, %v1158
      %v1160 = vrot.slane %v444, 1
      %v1161 = vrot.slane %v445, 1
      %v1162 = vsel %vm1149, %v1160, %v1161
      %v1163 = vrot.slane %v446, 1
      %v1164 = vsel %vm1149, %v1161, %v1163
      %v1165 = vrot.slane %v447, 1
      %v1166 = vrot.slane %v448, 1
      %v1167 = vsel %vm1149, %v1165, %v1166
      %v1168 = vrot.slane %v449, 1
      %v1169 = vsel %vm1149, %v1166, %v1168
      %v1170 = vrot.slane %v450, 1
      %v1171 = vrot.slane %v451, 1
      %v1172 = vsel %vm1149, %v1170, %v1171
      %v1173 = vrot.slane %v452, 1
      %v1174 = vsel %vm1149, %v1171, %v1173
      %v1175 = vrot.slane %v453, 1
      %v1176 = vrot.slane %v454, 1
      %v1177 = vsel %vm1149, %v1175, %v1176
      %v1178 = vrot.slane %v455, 1
      %v1179 = vsel %vm1149, %v1176, %v1178
      %v1180 = vrot.slane %v456, 1
      %v1181 = vrot.slane %v457, 1
      %v1182 = vsel %vm1149, %v1180, %v1181
      %v1183 = vrot.slane %v458, 1
      %v1184 = vsel %vm1149, %v1181, %v1183
      %v1185 = vrot.slane %v459, 1
      %v1186 = vrot.slane %v460, 1
      %v1187 = vsel %vm1149, %v1185, %v1186
      %v1188 = vrot.slane %v461, 1
      %v1189 = vsel %vm1149, %v1186, %v1188
      %v1190 = vrot.slane %v462, 1
      %v1191 = vrot.slane %v463, 1
      %v1192 = vsel %vm1149, %v1190, %v1191
      %v1193 = vrot.slane %v464, 1
      %v1194 = vsel %vm1149, %v1191, %v1193
      %v1195 = vrot.slane %v465, 1
      %v1196 = vrot.slane %v466, 1
      %v1197 = vsel %vm1149, %v1195, %v1196
      %v1198 = vrot.slane %v467, 1
      %v1199 = vsel %vm1149, %v1196, %v1198
      %v1200 = vrot.slane %v468, 1
      %v1201 = vrot.slane %v469, 1
      %v1202 = vsel %vm1149, %v1200, %v1201
      %v1203 = vrot.slane %v470, 1
      %v1204 = vsel %vm1149, %v1201, %v1203
      %v1205 = vrot.slane %v471, 1
      %v1206 = vrot.slane %v472, 1
      %v1207 = vsel %vm1149, %v1205, %v1206
      %v1208 = vrot.slane %v473, 1
      %v1209 = vsel %vm1149, %v1206, %v1208
      %v1210 = vrot.slane %v474, 1
      %v1211 = vrot.slane %v475, 1
      %v1212 = vsel %vm1149, %v1210, %v1211
      %v1213 = vrot.slane %v476, 1
      %v1214 = vsel %vm1149, %v1211, %v1213
      %v1215 = vrot.slane %v477, 1
      %v1216 = vrot.slane %v478, 1
      %v1217 = vsel %vm1149, %v1215, %v1216
      %v1218 = vrot.slane %v479, 1
      %v1219 = vsel %vm1149, %v1216, %v1218
      %v1220 = vrot.slane %v480, 1
      %v1221 = vrot.slane %v481, 1
      %v1222 = vsel %vm1149, %v1220, %v1221
      %v1223 = vrot.slane %v482, 1
      %v1224 = vsel %vm1149, %v1221, %v1223
      %v1225 = vrot.slane %v483, 1
      %v1226 = vrot.slane %v484, 1
      %v1227 = vsel %vm1149, %v1225, %v1226
      %v1228 = vrot.slane %v485, 1
      %v1229 = vsel %vm1149, %v1226, %v1228
      %v1230 = vrot.slane %v486, 1
      %v1231 = vrot.slane %v487, 1
      %v1232 = vsel %vm1149, %v1230, %v1231
      %v1233 = vrot.slane %v488, 1
      %v1234 = vsel %vm1149, %v1231, %v1233
      %v1235 = vrot.slane %v489, 1
      %v1236 = vrot.slane %v490, 1
      %v1237 = vsel %vm1149, %v1235, %v1236
      %v1238 = vrot.slane %v491, 1
      %v1239 = vsel %vm1149, %v1236, %v1238
      %v1276 = vpack.c.bf16 %v1154, %v1152
      %v1277 = vpack.c.bf16 %v1159, %v1157
      %v1278 = vpack.c.bf16 %v1164, %v1162
      %v1279 = vpack.c.bf16 %v1169, %v1167
      %v1280 = vpack.c.bf16 %v1174, %v1172
      %v1281 = vpack.c.bf16 %v1179, %v1177
      %v1282 = vpack.c.bf16 %v1184, %v1182
      %v1283 = vpack.c.bf16 %v1189, %v1187
      %v1284 = vpack.c.bf16 %v1194, %v1192
      %v1285 = vpack.c.bf16 %v1199, %v1197
      %v1286 = vpack.c.bf16 %v1204, %v1202
      %v1287 = vpack.c.bf16 %v1209, %v1207
      %v1288 = vpack.c.bf16 %v1214, %v1212
      %v1289 = vpack.c.bf16 %v1219, %v1217
      %v1290 = vpack.c.bf16 %v1224, %v1222
      %v1291 = vpack.c.bf16 %v1229, %v1227
      %v1292 = vpack.c.bf16 %v1234, %v1232
      %v1293 = vpack.c.bf16 %v1239, %v1237
      %s1294 = scalar_lea.vmem %s3, 2
      %v1295 = vld [vmem:[%s1294] sm:$0x3]
      %v1297 = vsel %vm513, %v1276, 0
      %v1300 = vsel %vm513, %v1277, 0
      %v1303 = vsel %vm513, %v1278, 0
      %v1306 = vsel %vm513, %v1279, 0
      %v1309 = vsel %vm513, %v1280, 0
      %v1312 = vsel %vm513, %v1281, 0
      %v1315 = vsel %vm513, %v1282, 0
      %v1318 = vsel %vm513, %v1283, 0
      %v1321 = vsel %vm513, %v1284, 0
      %v1324 = vsel %vm513, %v1285, 0
      %v1327 = vsel %vm513, %v1286, 0
      %v1330 = vsel %vm513, %v1287, 0
      %v1333 = vsel %vm513, %v1288, 0
      %v1336 = vsel %vm513, %v1289, 0
      %v1339 = vsel %vm513, %v1290, 0
      %v1342 = vsel %vm513, %v1291, 0
      %v1345 = vsel %vm562, %v1295, 0
      %1347 = vmatprep.subr.bf16.mxu0 0
      %1348 = vmatpush1.bf16.msra.mxu0 %v1345
      %1349 = vmatprep.subr.bf16.mxu0 0
      %1350 = vmatpush1.bf16.msra.mxu0 0
      %1351 = vmatprep.subr.bf16.mxu0 0
      %1352 = vmatpush1.bf16.msra.mxu0 0
      %1353 = vmatprep.subr.bf16.mxu0 0
      %1354 = vmatpush1.bf16.msra.mxu0 0
      %1355 = vmatprep.subr.bf16.mxu0 0
      %1356 = vmatpush1.bf16.msra.mxu0 0
      %1357 = vmatprep.subr.bf16.mxu0 0
      %1358 = vmatpush1.bf16.msra.mxu0 0
      %1359 = vmatprep.subr.bf16.mxu0 0
      %1360 = vmatpush1.bf16.msra.mxu0 0
      %1361 = vmatprep.subr.bf16.mxu0 0
      %1362 = vmatpush1.bf16.msra.mxu0 0
      %1363 = vmatprep.subr.bf16.mxu0 0
      %1364 = vmatpush1.bf16.msra.mxu0 0
      %1365 = vmatprep.subr.bf16.mxu0 0
      %1366 = vmatpush1.bf16.msra.mxu0 0
      %1367 = vmatprep.subr.bf16.mxu0 0
      %1368 = vmatpush1.bf16.msra.mxu0 0
      %1369 = vmatprep.subr.bf16.mxu0 0
      %1370 = vmatpush1.bf16.msra.mxu0 0
      %1371 = vmatprep.subr.bf16.mxu0 0
      %1372 = vmatpush1.bf16.msra.mxu0 0
      %1373 = vmatprep.subr.bf16.mxu0 0
      %1374 = vmatpush1.bf16.msra.mxu0 0
      %1375 = vmatprep.subr.bf16.mxu0 0
      %1376 = vmatpush1.bf16.msra.mxu0 0
      %1377 = vmatprep.subr.bf16.mxu0 0
      %1378 = vmatpush1.bf16.msra.mxu0 0
      %1379 = vmatprep.mubr.bf16.mxu0 0
      %1380 = vmatmul.mubr.bf16.gmra.mrb[0].mxu0 %v1297
      %v1381 = vpop.f32.mrb[0].mxu0
      %v1382 = vadd.f32 0.0, %v1381
      %v1383 = vpop.f32.mrb[0].mxu0
      %v1384 = vpop.f32.mrb[0].mxu0
      %v1385 = vadd.f32 0.0, %v1384
      %v1386 = vpop.f32.mrb[0].mxu0
      %1387 = vmatprep.mubr.bf16.mxu0 0
      %1388 = vmatmul.mubr.bf16.gmra.mrb[0].mxu0 %v1300
      %v1389 = vpop.f32.mrb[0].mxu0
      %v1390 = vadd.f32 0.0, %v1389
      %v1391 = vpop.f32.mrb[0].mxu0
      %v1392 = vpop.f32.mrb[0].mxu0
      %v1393 = vadd.f32 0.0, %v1392
      %v1394 = vpop.f32.mrb[0].mxu0
      %1395 = vmatprep.mubr.bf16.mxu0 0
      %1396 = vmatmul.mubr.bf16.gmra.mrb[0].mxu0 %v1303
      %v1397 = vpop.f32.mrb[0].mxu0
      %v1398 = vadd.f32 0.0, %v1397
      %v1399 = vpop.f32.mrb[0].mxu0
      %v1400 = vpop.f32.mrb[0].mxu0
      %v1401 = vadd.f32 0.0, %v1400
      %v1402 = vpop.f32.mrb[0].mxu0
      %1403 = vmatprep.mubr.bf16.mxu0 0
      %1404 = vmatmul.mubr.bf16.gmra.mrb[0].mxu0 %v1306
      %v1405 = vpop.f32.mrb[0].mxu0
      %v1406 = vadd.f32 0.0, %v1405
      %v1407 = vpop.f32.mrb[0].mxu0
      %v1408 = vpop.f32.mrb[0].mxu0
      %v1409 = vadd.f32 0.0, %v1408
      %v1410 = vpop.f32.mrb[0].mxu0
      %1411 = vmatprep.mubr.bf16.mxu0 0
      %1412 = vmatmul.mubr.bf16.gmra.mrb[0].mxu0 %v1309
      %v1413 = vpop.f32.mrb[0].mxu0
      %v1414 = vadd.f32 0.0, %v1413
      %v1415 = vpop.f32.mrb[0].mxu0
      %v1416 = vpop.f32.mrb[0].mxu0
      %v1417 = vadd.f32 0.0, %v1416
      %v1418 = vpop.f32.mrb[0].mxu0
      %1419 = vmatprep.mubr.bf16.mxu0 0
      %1420 = vmatmul.mubr.bf16.gmra.mrb[0].mxu0 %v1312
      %v1421 = vpop.f32.mrb[0].mxu0
      %v1422 = vadd.f32 0.0, %v1421
      %v1423 = vpop.f32.mrb[0].mxu0
      %v1424 = vpop.f32.mrb[0].mxu0
      %v1425 = vadd.f32 0.0, %v1424
      %v1426 = vpop.f32.mrb[0].mxu0
      %1427 = vmatprep.mubr.bf16.mxu0 0
      %1428 = vmatmul.mubr.bf16.gmra.mrb[0].mxu0 %v1315
      %v1429 = vpop.f32.mrb[0].mxu0
      %v1430 = vadd.f32 0.0, %v1429
      %v1431 = vpop.f32.mrb[0].mxu0
      %v1432 = vpop.f32.mrb[0].mxu0
      %v1433 = vadd.f32 0.0, %v1432
      %v1434 = vpop.f32.mrb[0].mxu0
      %1435 = vmatprep.mubr.bf16.mxu0 0
      %1436 = vmatmul.mubr.bf16.gmra.mrb[0].mxu0 %v1318
      %v1437 = vpop.f32.mrb[0].mxu0
      %v1438 = vadd.f32 0.0, %v1437
      %v1439 = vpop.f32.mrb[0].mxu0
      %v1440 = vpop.f32.mrb[0].mxu0
      %v1441 = vadd.f32 0.0, %v1440
      %v1442 = vpop.f32.mrb[0].mxu0
      %1443 = vmatprep.mubr.bf16.mxu0 0
      %1444 = vmatmul.mubr.bf16.gmra.mrb[0].mxu0 %v1321
      %v1445 = vpop.f32.mrb[0].mxu0
      %v1446 = vadd.f32 0.0, %v1445
      %v1447 = vpop.f32.mrb[0].mxu0
      %v1448 = vpop.f32.mrb[0].mxu0
      %v1449 = vadd.f32 0.0, %v1448
      %v1450 = vpop.f32.mrb[0].mxu0
      %1451 = vmatprep.mubr.bf16.mxu0 0
      %1452 = vmatmul.mubr.bf16.gmra.mrb[0].mxu0 %v1324
      %v1453 = vpop.f32.mrb[0].mxu0
      %v1454 = vadd.f32 0.0, %v1453
      %v1455 = vpop.f32.mrb[0].mxu0
      %v1456 = vpop.f32.mrb[0].mxu0
      %v1457 = vadd.f32 0.0, %v1456
      %v1458 = vpop.f32.mrb[0].mxu0
      %1459 = vmatprep.mubr.bf16.mxu0 0
      %1460 = vmatmul.mubr.bf16.gmra.mrb[0].mxu0 %v1327
      %v1461 = vpop.f32.mrb[0].mxu0
      %v1462 = vadd.f32 0.0, %v1461
      %v1463 = vpop.f32.mrb[0].mxu0
      %v1464 = vpop.f32.mrb[0].mxu0
      %v1465 = vadd.f32 0.0, %v1464
      %v1466 = vpop.f32.mrb[0].mxu0
      %1467 = vmatprep.mubr.bf16.mxu0 0
      %1468 = vmatmul.mubr.bf16.gmra.mrb[0].mxu0 %v1330
      %v1469 = vpop.f32.mrb[0].mxu0
      %v1470 = vadd.f32 0.0, %v1469
      %v1471 = vpop.f32.mrb[0].mxu0
      %v1472 = vpop.f32.mrb[0].mxu0
      %v1473 = vadd.f32 0.0, %v1472
      %v1474 = vpop.f32.mrb[0].mxu0
      %1475 = vmatprep.mubr.bf16.mxu0 0
      %1476 = vmatmul.mubr.bf16.gmra.mrb[0].mxu0 %v1333
      %v1477 = vpop.f32.mrb[0].mxu0
      %v1478 = vadd.f32 0.0, %v1477
      %v1479 = vpop.f32.mrb[0].mxu0
      %v1480 = vpop.f32.mrb[0].mxu0
      %v1481 = vadd.f32 0.0, %v1480
      %v1482 = vpop.f32.mrb[0].mxu0
      %1483 = vmatprep.mubr.bf16.mxu0 0
      %1484 = vmatmul.mubr.bf16.gmra.mrb[0].mxu0 %v1336
      %v1485 = vpop.f32.mrb[0].mxu0
      %v1486 = vadd.f32 0.0, %v1485
      %v1487 = vpop.f32.mrb[0].mxu0
      %v1488 = vpop.f32.mrb[0].mxu0
      %v1489 = vadd.f32 0.0, %v1488
      %v1490 = vpop.f32.mrb[0].mxu0
      %1491 = vmatprep.mubr.bf16.mxu0 0
      %1492 = vmatmul.mubr.bf16.gmra.mrb[0].mxu0 %v1339
      %v1493 = vpop.f32.mrb[0].mxu0
      %v1494 = vadd.f32 0.0, %v1493
      %v1495 = vpop.f32.mrb[0].mxu0
      %v1496 = vpop.f32.mrb[0].mxu0
      %v1497 = vadd.f32 0.0, %v1496
      %v1498 = vpop.f32.mrb[0].mxu0
      %1499 = vmatprep.mubr.bf16.mxu0 0
      %1500 = vmatmul.mubr.bf16.gmra.mrb[0].mxu0 %v1342
      %v1501 = vpop.f32.mrb[0].mxu0
      %v1502 = vadd.f32 0.0, %v1501
      %v1503 = vpop.f32.mrb[0].mxu0
      %v1504 = vpop.f32.mrb[0].mxu0
      %v1505 = vadd.f32 0.0, %v1504
      %v1506 = vpop.f32.mrb[0].mxu0
      %1507 = vdwg.mxu0
      %v1508 = vadd.f32 %v1063, %v1382
      %v1509 = vadd.f32 %v1064, %v1385
      %v1510 = vadd.f32 %v1065, %v1390
      %v1511 = vadd.f32 %v1066, %v1393
      %v1512 = vadd.f32 %v1067, %v1398
      %v1513 = vadd.f32 %v1068, %v1401
      %v1514 = vadd.f32 %v1069, %v1406
      %v1515 = vadd.f32 %v1070, %v1409
      %v1516 = vadd.f32 %v1071, %v1414
      %v1517 = vadd.f32 %v1072, %v1417
      %v1518 = vadd.f32 %v1073, %v1422
      %v1519 = vadd.f32 %v1074, %v1425
      %v1520 = vadd.f32 %v1075, %v1430
      %v1521 = vadd.f32 %v1076, %v1433
      %v1522 = vadd.f32 %v1077, %v1438
      %v1523 = vadd.f32 %v1078, %v1441
      %v1524 = vadd.f32 %v1079, %v1446
      %v1525 = vadd.f32 %v1080, %v1449
      %v1526 = vadd.f32 %v1081, %v1454
      %v1527 = vadd.f32 %v1082, %v1457
      %v1528 = vadd.f32 %v1083, %v1462
      %v1529 = vadd.f32 %v1084, %v1465
      %v1530 = vadd.f32 %v1085, %v1470
      %v1531 = vadd.f32 %v1086, %v1473
      %v1532 = vadd.f32 %v1087, %v1478
      %v1533 = vadd.f32 %v1088, %v1481
      %v1534 = vadd.f32 %v1089, %v1486
      %v1535 = vadd.f32 %v1090, %v1489
      %v1536 = vadd.f32 %v1091, %v1494
      %v1537 = vadd.f32 %v1092, %v1497
      %v1538 = vadd.f32 %v1093, %v1502
      %v1539 = vadd.f32 %v1094, %v1505
      %s1540 = scalar_lea.vmem %s3, 8
      %v1541 = vld [vmem:[%s1540] sm:$0x3]
      %v1543 = vsel %vm513, %v1292, 0
      %v1546 = vsel %vm562, %v1541, 0
      %1548 = vmatprep.subr.bf16.mxu0 0
      %1549 = vmatpush1.bf16.msra.mxu0 %v1546
      %1550 = vmatprep.subr.bf16.mxu0 0
      %1551 = vmatpush1.bf16.msra.mxu0 0
      %1552 = vmatprep.subr.bf16.mxu0 0
      %1553 = vmatpush1.bf16.msra.mxu0 0
      %1554 = vmatprep.subr.bf16.mxu0 0
      %1555 = vmatpush1.bf16.msra.mxu0 0
      %1556 = vmatprep.subr.bf16.mxu0 0
      %1557 = vmatpush1.bf16.msra.mxu0 0
      %1558 = vmatprep.subr.bf16.mxu0 0
      %1559 = vmatpush1.bf16.msra.mxu0 0
      %1560 = vmatprep.subr.bf16.mxu0 0
      %1561 = vmatpush1.bf16.msra.mxu0 0
      %1562 = vmatprep.subr.bf16.mxu0 0
      %1563 = vmatpush1.bf16.msra.mxu0 0
      %1564 = vmatprep.subr.bf16.mxu0 0
      %1565 = vmatpush1.bf16.msra.mxu0 0
      %1566 = vmatprep.subr.bf16.mxu0 0
      %1567 = vmatpush1.bf16.msra.mxu0 0
      %1568 = vmatprep.subr.bf16.mxu0 0
      %1569 = vmatpush1.bf16.msra.mxu0 0
      %1570 = vmatprep.subr.bf16.mxu0 0
      %1571 = vmatpush1.bf16.msra.mxu0 0
      %1572 = vmatprep.subr.bf16.mxu0 0
      %1573 = vmatpush1.bf16.msra.mxu0 0
      %1574 = vmatprep.subr.bf16.mxu0 0
      %1575 = vmatpush1.bf16.msra.mxu0 0
      %1576 = vmatprep.subr.bf16.mxu0 0
      %1577 = vmatpush1.bf16.msra.mxu0 0
      %1578 = vmatprep.subr.bf16.mxu0 0
      %1579 = vmatpush1.bf16.msra.mxu0 0
      %1580 = vmatprep.mubr.bf16.mxu0 0
      %1581 = vmatmul.mubr.bf16.gmra.mrb[0].mxu0 %v1300
      %v1582 = vpop.f32.mrb[0].mxu0
      %v1583 = vadd.f32 0.0, %v1582
      %v1584 = vpop.f32.mrb[0].mxu0
      %v1585 = vpop.f32.mrb[0].mxu0
      %v1586 = vadd.f32 0.0, %v1585
      %v1587 = vpop.f32.mrb[0].mxu0
      %1588 = vmatprep.mubr.bf16.mxu0 0
      %1589 = vmatmul.mubr.bf16.gmra.mrb[0].mxu0 %v1303
      %v1590 = vpop.f32.mrb[0].mxu0
      %v1591 = vadd.f32 0.0, %v1590
      %v1592 = vpop.f32.mrb[0].mxu0
      %v1593 = vpop.f32.mrb[0].mxu0
      %v1594 = vadd.f32 0.0, %v1593
      %v1595 = vpop.f32.mrb[0].mxu0
      %1596 = vmatprep.mubr.bf16.mxu0 0
      %1597 = vmatmul.mubr.bf16.gmra.mrb[0].mxu0 %v1306
      %v1598 = vpop.f32.mrb[0].mxu0
      %v1599 = vadd.f32 0.0, %v1598
      %v1600 = vpop.f32.mrb[0].mxu0
      %v1601 = vpop.f32.mrb[0].mxu0
      %v1602 = vadd.f32 0.0, %v1601
      %v1603 = vpop.f32.mrb[0].mxu0
      %1604 = vmatprep.mubr.bf16.mxu0 0
      %1605 = vmatmul.mubr.bf16.gmra.mrb[0].mxu0 %v1309
      %v1606 = vpop.f32.mrb[0].mxu0
      %v1607 = vadd.f32 0.0, %v1606
      %v1608 = vpop.f32.mrb[0].mxu0
      %v1609 = vpop.f32.mrb[0].mxu0
      %v1610 = vadd.f32 0.0, %v1609
      %v1611 = vpop.f32.mrb[0].mxu0
      %1612 = vmatprep.mubr.bf16.mxu0 0
      %1613 = vmatmul.mubr.bf16.gmra.mrb[0].mxu0 %v1312
      %v1614 = vpop.f32.mrb[0].mxu0
      %v1615 = vadd.f32 0.0, %v1614
      %v1616 = vpop.f32.mrb[0].mxu0
      %v1617 = vpop.f32.mrb[0].mxu0
      %v1618 = vadd.f32 0.0, %v1617
      %v1619 = vpop.f32.mrb[0].mxu0
      %1620 = vmatprep.mubr.bf16.mxu0 0
      %1621 = vmatmul.mubr.bf16.gmra.mrb[0].mxu0 %v1315
      %v1622 = vpop.f32.mrb[0].mxu0
      %v1623 = vadd.f32 0.0, %v1622
      %v1624 = vpop.f32.mrb[0].mxu0
      %v1625 = vpop.f32.mrb[0].mxu0
      %v1626 = vadd.f32 0.0, %v1625
      %v1627 = vpop.f32.mrb[0].mxu0
      %1628 = vmatprep.mubr.bf16.mxu0 0
      %1629 = vmatmul.mubr.bf16.gmra.mrb[0].mxu0 %v1318
      %v1630 = vpop.f32.mrb[0].mxu0
      %v1631 = vadd.f32 0.0, %v1630
      %v1632 = vpop.f32.mrb[0].mxu0
      %v1633 = vpop.f32.mrb[0].mxu0
      %v1634 = vadd.f32 0.0, %v1633
      %v1635 = vpop.f32.mrb[0].mxu0
      %1636 = vmatprep.mubr.bf16.mxu0 0
      %1637 = vmatmul.mubr.bf16.gmra.mrb[0].mxu0 %v1321
      %v1638 = vpop.f32.mrb[0].mxu0
      %v1639 = vadd.f32 0.0, %v1638
      %v1640 = vpop.f32.mrb[0].mxu0
      %v1641 = vpop.f32.mrb[0].mxu0
      %v1642 = vadd.f32 0.0, %v1641
      %v1643 = vpop.f32.mrb[0].mxu0
      %1644 = vmatprep.mubr.bf16.mxu0 0
      %1645 = vmatmul.mubr.bf16.gmra.mrb[0].mxu0 %v1324
      %v1646 = vpop.f32.mrb[0].mxu0
      %v1647 = vadd.f32 0.0, %v1646
      %v1648 = vpop.f32.mrb[0].mxu0
      %v1649 = vpop.f32.mrb[0].mxu0
      %v1650 = vadd.f32 0.0, %v1649
      %v1651 = vpop.f32.mrb[0].mxu0
      %1652 = vmatprep.mubr.bf16.mxu0 0
      %1653 = vmatmul.mubr.bf16.gmra.mrb[0].mxu0 %v1327
      %v1654 = vpop.f32.mrb[0].mxu0
      %v1655 = vadd.f32 0.0, %v1654
      %v1656 = vpop.f32.mrb[0].mxu0
      %v1657 = vpop.f32.mrb[0].mxu0
      %v1658 = vadd.f32 0.0, %v1657
      %v1659 = vpop.f32.mrb[0].mxu0
      %1660 = vmatprep.mubr.bf16.mxu0 0
      %1661 = vmatmul.mubr.bf16.gmra.mrb[0].mxu0 %v1330
      %v1662 = vpop.f32.mrb[0].mxu0
      %v1663 = vadd.f32 0.0, %v1662
      %v1664 = vpop.f32.mrb[0].mxu0
      %v1665 = vpop.f32.mrb[0].mxu0
      %v1666 = vadd.f32 0.0, %v1665
      %v1667 = vpop.f32.mrb[0].mxu0
      %1668 = vmatprep.mubr.bf16.mxu0 0
      %1669 = vmatmul.mubr.bf16.gmra.mrb[0].mxu0 %v1333
      %v1670 = vpop.f32.mrb[0].mxu0
      %v1671 = vadd.f32 0.0, %v1670
      %v1672 = vpop.f32.mrb[0].mxu0
      %v1673 = vpop.f32.mrb[0].mxu0
      %v1674 = vadd.f32 0.0, %v1673
      %v1675 = vpop.f32.mrb[0].mxu0
      %1676 = vmatprep.mubr.bf16.mxu0 0
      %1677 = vmatmul.mubr.bf16.gmra.mrb[0].mxu0 %v1336
      %v1678 = vpop.f32.mrb[0].mxu0
      %v1679 = vadd.f32 0.0, %v1678
      %v1680 = vpop.f32.mrb[0].mxu0
      %v1681 = vpop.f32.mrb[0].mxu0
      %v1682 = vadd.f32 0.0, %v1681
      %v1683 = vpop.f32.mrb[0].mxu0
      %1684 = vmatprep.mubr.bf16.mxu0 0
      %1685 = vmatmul.mubr.bf16.gmra.mrb[0].mxu0 %v1339
      %v1686 = vpop.f32.mrb[0].mxu0
      %v1687 = vadd.f32 0.0, %v1686
      %v1688 = vpop.f32.mrb[0].mxu0
      %v1689 = vpop.f32.mrb[0].mxu0
      %v1690 = vadd.f32 0.0, %v1689
      %v1691 = vpop.f32.mrb[0].mxu0
      %1692 = vmatprep.mubr.bf16.mxu0 0
      %1693 = vmatmul.mubr.bf16.gmra.mrb[0].mxu0 %v1342
      %v1694 = vpop.f32.mrb[0].mxu0
      %v1695 = vadd.f32 0.0, %v1694
      %v1696 = vpop.f32.mrb[0].mxu0
      %v1697 = vpop.f32.mrb[0].mxu0
      %v1698 = vadd.f32 0.0, %v1697
      %v1699 = vpop.f32.mrb[0].mxu0
      %1700 = vmatprep.mubr.bf16.mxu0 0
      %1701 = vmatmul.mubr.bf16.gmra.mrb[0].mxu0 %v1543
      %v1702 = vpop.f32.mrb[0].mxu0
      %v1703 = vadd.f32 0.0, %v1702
      %v1704 = vpop.f32.mrb[0].mxu0
      %v1705 = vpop.f32.mrb[0].mxu0
      %v1706 = vadd.f32 0.0, %v1705
      %v1707 = vpop.f32.mrb[0].mxu0
      %1708 = vdwg.mxu0
      %v1709 = vadd.f32 %v1508, %v1583
      %v1710 = vadd.f32 %v1509, %v1586
      %v1711 = vadd.f32 %v1510, %v1591
      %v1712 = vadd.f32 %v1511, %v1594
      %v1713 = vadd.f32 %v1512, %v1599
      %v1714 = vadd.f32 %v1513, %v1602
      %v1715 = vadd.f32 %v1514, %v1607
      %v1716 = vadd.f32 %v1515, %v1610
      %v1717 = vadd.f32 %v1516, %v1615
      %v1718 = vadd.f32 %v1517, %v1618
      %v1719 = vadd.f32 %v1518, %v1623
      %v1720 = vadd.f32 %v1519, %v1626
      %v1721 = vadd.f32 %v1520, %v1631
      %v1722 = vadd.f32 %v1521, %v1634
      %v1723 = vadd.f32 %v1522, %v1639
      %v1724 = vadd.f32 %v1523, %v1642
      %v1725 = vadd.f32 %v1524, %v1647
      %v1726 = vadd.f32 %v1525, %v1650
      %v1727 = vadd.f32 %v1526, %v1655
      %v1728 = vadd.f32 %v1527, %v1658
      %v1729 = vadd.f32 %v1528, %v1663
      %v1730 = vadd.f32 %v1529, %v1666
      %v1731 = vadd.f32 %v1530, %v1671
      %v1732 = vadd.f32 %v1531, %v1674
      %v1733 = vadd.f32 %v1532, %v1679
      %v1734 = vadd.f32 %v1533, %v1682
      %v1735 = vadd.f32 %v1534, %v1687
      %v1736 = vadd.f32 %v1535, %v1690
      %v1737 = vadd.f32 %v1536, %v1695
      %v1738 = vadd.f32 %v1537, %v1698
      %v1739 = vadd.f32 %v1538, %v1703
      %v1740 = vadd.f32 %v1539, %v1706
      %s1741 = scalar_lea.vmem %s3, 14
      %v1742 = vld [vmem:[%s1741] sm:$0x3]
      %v1744 = vsel %vm513, %v1293, 0
      %v1747 = vsel %vm562, %v1742, 0
      %1749 = vmatprep.subr.bf16.mxu0 0
      %1750 = vmatpush1.bf16.msra.mxu0 %v1747
      %1751 = vmatprep.subr.bf16.mxu0 0
      %1752 = vmatpush1.bf16.msra.mxu0 0
      %1753 = vmatprep.subr.bf16.mxu0 0
      %1754 = vmatpush1.bf16.msra.mxu0 0
      %1755 = vmatprep.subr.bf16.mxu0 0
      %1756 = vmatpush1.bf16.msra.mxu0 0
      %1757 = vmatprep.subr.bf16.mxu0 0
      %1758 = vmatpush1.bf16.msra.mxu0 0
      %1759 = vmatprep.subr.bf16.mxu0 0
      %1760 = vmatpush1.bf16.msra.mxu0 0
      %1761 = vmatprep.subr.bf16.mxu0 0
      %1762 = vmatpush1.bf16.msra.mxu0 0
      %1763 = vmatprep.subr.bf16.mxu0 0
      %1764 = vmatpush1.bf16.msra.mxu0 0
      %1765 = vmatprep.subr.bf16.mxu0 0
      %1766 = vmatpush1.bf16.msra.mxu0 0
      %1767 = vmatprep.subr.bf16.mxu0 0
      %1768 = vmatpush1.bf16.msra.mxu0 0
      %1769 = vmatprep.subr.bf16.mxu0 0
      %1770 = vmatpush1.bf16.msra.mxu0 0
      %1771 = vmatprep.subr.bf16.mxu0 0
      %1772 = vmatpush1.bf16.msra.mxu0 0
      %1773 = vmatprep.subr.bf16.mxu0 0
      %1774 = vmatpush1.bf16.msra.mxu0 0
      %1775 = vmatprep.subr.bf16.mxu0 0
      %1776 = vmatpush1.bf16.msra.mxu0 0
      %1777 = vmatprep.subr.bf16.mxu0 0
      %1778 = vmatpush1.bf16.msra.mxu0 0
      %1779 = vmatprep.subr.bf16.mxu0 0
      %1780 = vmatpush1.bf16.msra.mxu0 0
      %1781 = vmatprep.mubr.bf16.mxu0 0
      %1782 = vmatmul.mubr.bf16.gmra.mrb[0].mxu0 %v1303
      %v1783 = vpop.f32.mrb[0].mxu0
      %v1784 = vadd.f32 0.0, %v1783
      %v1785 = vpop.f32.mrb[0].mxu0
      %v1786 = vpop.f32.mrb[0].mxu0
      %v1787 = vadd.f32 0.0, %v1786
      %v1788 = vpop.f32.mrb[0].mxu0
      %1789 = vmatprep.mubr.bf16.mxu0 0
      %1790 = vmatmul.mubr.bf16.gmra.mrb[0].mxu0 %v1306
      %v1791 = vpop.f32.mrb[0].mxu0
      %v1792 = vadd.f32 0.0, %v1791
      %v1793 = vpop.f32.mrb[0].mxu0
      %v1794 = vpop.f32.mrb[0].mxu0
      %v1795 = vadd.f32 0.0, %v1794
      %v1796 = vpop.f32.mrb[0].mxu0
      %1797 = vmatprep.mubr.bf16.mxu0 0
      %1798 = vmatmul.mubr.bf16.gmra.mrb[0].mxu0 %v1309
      %v1799 = vpop.f32.mrb[0].mxu0
      %v1800 = vadd.f32 0.0, %v1799
      %v1801 = vpop.f32.mrb[0].mxu0
      %v1802 = vpop.f32.mrb[0].mxu0
      %v1803 = vadd.f32 0.0, %v1802
      %v1804 = vpop.f32.mrb[0].mxu0
      %1805 = vmatprep.mubr.bf16.mxu0 0
      %1806 = vmatmul.mubr.bf16.gmra.mrb[0].mxu0 %v1312
      %v1807 = vpop.f32.mrb[0].mxu0
      %v1808 = vadd.f32 0.0, %v1807
      %v1809 = vpop.f32.mrb[0].mxu0
      %v1810 = vpop.f32.mrb[0].mxu0
      %v1811 = vadd.f32 0.0, %v1810
      %v1812 = vpop.f32.mrb[0].mxu0
      %1813 = vmatprep.mubr.bf16.mxu0 0
      %1814 = vmatmul.mubr.bf16.gmra.mrb[0].mxu0 %v1315
      %v1815 = vpop.f32.mrb[0].mxu0
      %v1816 = vadd.f32 0.0, %v1815
      %v1817 = vpop.f32.mrb[0].mxu0
      %v1818 = vpop.f32.mrb[0].mxu0
      %v1819 = vadd.f32 0.0, %v1818
      %v1820 = vpop.f32.mrb[0].mxu0
      %1821 = vmatprep.mubr.bf16.mxu0 0
      %1822 = vmatmul.mubr.bf16.gmra.mrb[0].mxu0 %v1318
      %v1823 = vpop.f32.mrb[0].mxu0
      %v1824 = vadd.f32 0.0, %v1823
      %v1825 = vpop.f32.mrb[0].mxu0
      %v1826 = vpop.f32.mrb[0].mxu0
      %v1827 = vadd.f32 0.0, %v1826
      %v1828 = vpop.f32.mrb[0].mxu0
      %1829 = vmatprep.mubr.bf16.mxu0 0
      %1830 = vmatmul.mubr.bf16.gmra.mrb[0].mxu0 %v1321
      %v1831 = vpop.f32.mrb[0].mxu0
      %v1832 = vadd.f32 0.0, %v1831
      %v1833 = vpop.f32.mrb[0].mxu0
      %v1834 = vpop.f32.mrb[0].mxu0
      %v1835 = vadd.f32 0.0, %v1834
      %v1836 = vpop.f32.mrb[0].mxu0
      %1837 = vmatprep.mubr.bf16.mxu0 0
      %1838 = vmatmul.mubr.bf16.gmra.mrb[0].mxu0 %v1324
      %v1839 = vpop.f32.mrb[0].mxu0
      %v1840 = vadd.f32 0.0, %v1839
      %v1841 = vpop.f32.mrb[0].mxu0
      %v1842 = vpop.f32.mrb[0].mxu0
      %v1843 = vadd.f32 0.0, %v1842
      %v1844 = vpop.f32.mrb[0].mxu0
      %1845 = vmatprep.mubr.bf16.mxu0 0
      %1846 = vmatmul.mubr.bf16.gmra.mrb[0].mxu0 %v1327
      %v1847 = vpop.f32.mrb[0].mxu0
      %v1848 = vadd.f32 0.0, %v1847
      %v1849 = vpop.f32.mrb[0].mxu0
      %v1850 = vpop.f32.mrb[0].mxu0
      %v1851 = vadd.f32 0.0, %v1850
      %v1852 = vpop.f32.mrb[0].mxu0
      %1853 = vmatprep.mubr.bf16.mxu0 0
      %1854 = vmatmul.mubr.bf16.gmra.mrb[0].mxu0 %v1330
      %v1855 = vpop.f32.mrb[0].mxu0
      %v1856 = vadd.f32 0.0, %v1855
      %v1857 = vpop.f32.mrb[0].mxu0
      %v1858 = vpop.f32.mrb[0].mxu0
      %v1859 = vadd.f32 0.0, %v1858
      %v1860 = vpop.f32.mrb[0].mxu0
      %1861 = vmatprep.mubr.bf16.mxu0 0
      %1862 = vmatmul.mubr.bf16.gmra.mrb[0].mxu0 %v1333
      %v1863 = vpop.f32.mrb[0].mxu0
      %v1864 = vadd.f32 0.0, %v1863
      %v1865 = vpop.f32.mrb[0].mxu0
      %v1866 = vpop.f32.mrb[0].mxu0
      %v1867 = vadd.f32 0.0, %v1866
      %v1868 = vpop.f32.mrb[0].mxu0
      %1869 = vmatprep.mubr.bf16.mxu0 0
      %1870 = vmatmul.mubr.bf16.gmra.mrb[0].mxu0 %v1336
      %v1871 = vpop.f32.mrb[0].mxu0
      %v1872 = vadd.f32 0.0, %v1871
      %v1873 = vpop.f32.mrb[0].mxu0
      %v1874 = vpop.f32.mrb[0].mxu0
      %v1875 = vadd.f32 0.0, %v1874
      %v1876 = vpop.f32.mrb[0].mxu0
      %1877 = vmatprep.mubr.bf16.mxu0 0
      %1878 = vmatmul.mubr.bf16.gmra.mrb[0].mxu0 %v1339
      %v1879 = vpop.f32.mrb[0].mxu0
      %v1880 = vadd.f32 0.0, %v1879
      %v1881 = vpop.f32.mrb[0].mxu0
      %v1882 = vpop.f32.mrb[0].mxu0
      %v1883 = vadd.f32 0.0, %v1882
      %v1884 = vpop.f32.mrb[0].mxu0
      %1885 = vmatprep.mubr.bf16.mxu0 0
      %1886 = vmatmul.mubr.bf16.gmra.mrb[0].mxu0 %v1342
      %v1887 = vpop.f32.mrb[0].mxu0
      %v1888 = vadd.f32 0.0, %v1887
      %v1889 = vpop.f32.mrb[0].mxu0
      %v1890 = vpop.f32.mrb[0].mxu0
      %v1891 = vadd.f32 0.0, %v1890
      %v1892 = vpop.f32.mrb[0].mxu0
      %1893 = vmatprep.mubr.bf16.mxu0 0
      %1894 = vmatmul.mubr.bf16.gmra.mrb[0].mxu0 %v1543
      %v1895 = vpop.f32.mrb[0].mxu0
      %v1896 = vadd.f32 0.0, %v1895
      %v1897 = vpop.f32.mrb[0].mxu0
      %v1898 = vpop.f32.mrb[0].mxu0
      %v1899 = vadd.f32 0.0, %v1898
      %v1900 = vpop.f32.mrb[0].mxu0
      %1901 = vmatprep.mubr.bf16.mxu0 0
      %1902 = vmatmul.mubr.bf16.gmra.mrb[0].mxu0 %v1744
      %v1903 = vpop.f32.mrb[0].mxu0
      %v1904 = vadd.f32 0.0, %v1903
      %v1905 = vpop.f32.mrb[0].mxu0
      %v1906 = vpop.f32.mrb[0].mxu0
      %v1907 = vadd.f32 0.0, %v1906
      %v1908 = vpop.f32.mrb[0].mxu0
      %1909 = vdwg.mxu0
      %v1910 = vadd.f32 %v1709, %v1784
      %v1911 = vadd.f32 %v1710, %v1787
      %v1912 = vadd.f32 %v1711, %v1792
      %v1913 = vadd.f32 %v1712, %v1795
      %v1914 = vadd.f32 %v1713, %v1800
      %v1915 = vadd.f32 %v1714, %v1803
      %v1916 = vadd.f32 %v1715, %v1808
      %v1917 = vadd.f32 %v1716, %v1811
      %v1918 = vadd.f32 %v1717, %v1816
      %v1919 = vadd.f32 %v1718, %v1819
      %v1920 = vadd.f32 %v1719, %v1824
      %v1921 = vadd.f32 %v1720, %v1827
      %v1922 = vadd.f32 %v1721, %v1832
      %v1923 = vadd.f32 %v1722, %v1835
      %v1924 = vadd.f32 %v1723, %v1840
      %v1925 = vadd.f32 %v1724, %v1843
      %v1926 = vadd.f32 %v1725, %v1848
      %v1927 = vadd.f32 %v1726, %v1851
      %v1928 = vadd.f32 %v1727, %v1856
      %v1929 = vadd.f32 %v1728, %v1859
      %v1930 = vadd.f32 %v1729, %v1864
      %v1931 = vadd.f32 %v1730, %v1867
      %v1932 = vadd.f32 %v1731, %v1872
      %v1933 = vadd.f32 %v1732, %v1875
      %v1934 = vadd.f32 %v1733, %v1880
      %v1935 = vadd.f32 %v1734, %v1883
      %v1936 = vadd.f32 %v1735, %v1888
      %v1937 = vadd.f32 %v1736, %v1891
      %v1938 = vadd.f32 %v1737, %v1896
      %v1939 = vadd.f32 %v1738, %v1899
      %v1940 = vadd.f32 %v1739, %v1904
      %v1941 = vadd.f32 %v1740, %v1907
      %vm1942 = vcmask 1045504
      %v1943 = vrot.slane %v438, 2
      %v1944 = vrot.slane %v439, 2
      %v1945 = vsel %vm1942, %v1943, %v1944
      %v1946 = vrot.slane %v440, 2
      %v1947 = vsel %vm1942, %v1944, %v1946
      %v1948 = vrot.slane %v441, 2
      %v1949 = vrot.slane %v442, 2
      %v1950 = vsel %vm1942, %v1948, %v1949
      %v1951 = vrot.slane %v443, 2
      %v1952 = vsel %vm1942, %v1949, %v1951
      %v1953 = vrot.slane %v444, 2
      %v1954 = vrot.slane %v445, 2
      %v1955 = vsel %vm1942, %v1953, %v1954
      %v1956 = vrot.slane %v446, 2
      %v1957 = vsel %vm1942, %v1954, %v1956
      %v1958 = vrot.slane %v447, 2
      %v1959 = vrot.slane %v448, 2
      %v1960 = vsel %vm1942, %v1958, %v1959
      %v1961 = vrot.slane %v449, 2
      %v1962 = vsel %vm1942, %v1959, %v1961
      %v1963 = vrot.slane %v450, 2
      %v1964 = vrot.slane %v451, 2
      %v1965 = vsel %vm1942, %v1963, %v1964
      %v1966 = vrot.slane %v452, 2
      %v1967 = vsel %vm1942, %v1964, %v1966
      %v1968 = vrot.slane %v453, 2
      %v1969 = vrot.slane %v454, 2
      %v1970 = vsel %vm1942, %v1968, %v1969
      %v1971 = vrot.slane %v455, 2
      %v1972 = vsel %vm1942, %v1969, %v1971
      %v1973 = vrot.slane %v456, 2
      %v1974 = vrot.slane %v457, 2
      %v1975 = vsel %vm1942, %v1973, %v1974
      %v1976 = vrot.slane %v458, 2
      %v1977 = vsel %vm1942, %v1974, %v1976
      %v1978 = vrot.slane %v459, 2
      %v1979 = vrot.slane %v460, 2
      %v1980 = vsel %vm1942, %v1978, %v1979
      %v1981 = vrot.slane %v461, 2
      %v1982 = vsel %vm1942, %v1979, %v1981
      %v1983 = vrot.slane %v462, 2
      %v1984 = vrot.slane %v463, 2
      %v1985 = vsel %vm1942, %v1983, %v1984
      %v1986 = vrot.slane %v464, 2
      %v1987 = vsel %vm1942, %v1984, %v1986
      %v1988 = vrot.slane %v465, 2
      %v1989 = vrot.slane %v466, 2
      %v1990 = vsel %vm1942, %v1988, %v1989
      %v1991 = vrot.slane %v467, 2
      %v1992 = vsel %vm1942, %v1989, %v1991
      %v1993 = vrot.slane %v468, 2
      %v1994 = vrot.slane %v469, 2
      %v1995 = vsel %vm1942, %v1993, %v1994
      %v1996 = vrot.slane %v470, 2
      %v1997 = vsel %vm1942, %v1994, %v1996
      %v1998 = vrot.slane %v471, 2
      %v1999 = vrot.slane %v472, 2
      %v2000 = vsel %vm1942, %v1998, %v1999
      %v2001 = vrot.slane %v473, 2
      %v2002 = vsel %vm1942, %v1999, %v2001
      %v2003 = vrot.slane %v474, 2
      %v2004 = vrot.slane %v475, 2
      %v2005 = vsel %vm1942, %v2003, %v2004
      %v2006 = vrot.slane %v476, 2
      %v2007 = vsel %vm1942, %v2004, %v2006
      %v2008 = vrot.slane %v477, 2
      %v2009 = vrot.slane %v478, 2
      %v2010 = vsel %vm1942, %v2008, %v2009
      %v2011 = vrot.slane %v479, 2
      %v2012 = vsel %vm1942, %v2009, %v2011
      %v2013 = vrot.slane %v480, 2
      %v2014 = vrot.slane %v481, 2
      %v2015 = vsel %vm1942, %v2013, %v2014
      %v2016 = vrot.slane %v482, 2
      %v2017 = vsel %vm1942, %v2014, %v2016
      %v2018 = vrot.slane %v483, 2
      %v2019 = vrot.slane %v484, 2
      %v2020 = vsel %vm1942, %v2018, %v2019
      %v2021 = vrot.slane %v485, 2
      %v2022 = vsel %vm1942, %v2019, %v2021
      %v2023 = vrot.slane %v486, 2
      %v2024 = vrot.slane %v487, 2
      %v2025 = vsel %vm1942, %v2023, %v2024
      %v2026 = vrot.slane %v488, 2
      %v2027 = vsel %vm1942, %v2024, %v2026
      %v2028 = vrot.slane %v489, 2
      %v2029 = vrot.slane %v490, 2
      %v2030 = vsel %vm1942, %v2028, %v2029
      %v2031 = vrot.slane %v491, 2
      %v2032 = vsel %vm1942, %v2029, %v2031
      %v2069 = vpack.c.bf16 %v1947, %v1945
      %v2070 = vpack.c.bf16 %v1952, %v1950
      %v2071 = vpack.c.bf16 %v1957, %v1955
      %v2072 = vpack.c.bf16 %v1962, %v1960
      %v2073 = vpack.c.bf16 %v1967, %v1965
      %v2074 = vpack.c.bf16 %v1972, %v1970
      %v2075 = vpack.c.bf16 %v1977, %v1975
      %v2076 = vpack.c.bf16 %v1982, %v1980
      %v2077 = vpack.c.bf16 %v1987, %v1985
      %v2078 = vpack.c.bf16 %v1992, %v1990
      %v2079 = vpack.c.bf16 %v1997, %v1995
      %v2080 = vpack.c.bf16 %v2002, %v2000
      %v2081 = vpack.c.bf16 %v2007, %v2005
      %v2082 = vpack.c.bf16 %v2012, %v2010
      %v2083 = vpack.c.bf16 %v2017, %v2015
      %v2084 = vpack.c.bf16 %v2022, %v2020
      %v2085 = vpack.c.bf16 %v2027, %v2025
      %v2086 = vpack.c.bf16 %v2032, %v2030
      %s2087 = scalar_lea.vmem %s3, 4
      %v2088 = vld [vmem:[%s2087] sm:$0x3]
      %v2090 = vsel %vm513, %v2069, 0
      %v2093 = vsel %vm513, %v2070, 0
      %v2096 = vsel %vm513, %v2071, 0
      %v2099 = vsel %vm513, %v2072, 0
      %v2102 = vsel %vm513, %v2073, 0
      %v2105 = vsel %vm513, %v2074, 0
      %v2108 = vsel %vm513, %v2075, 0
      %v2111 = vsel %vm513, %v2076, 0
      %v2114 = vsel %vm513, %v2077, 0
      %v2117 = vsel %vm513, %v2078, 0
      %v2120 = vsel %vm513, %v2079, 0
      %v2123 = vsel %vm513, %v2080, 0
      %v2126 = vsel %vm513, %v2081, 0
      %v2129 = vsel %vm513, %v2082, 0
      %v2132 = vsel %vm513, %v2083, 0
      %v2135 = vsel %vm513, %v2084, 0
      %v2138 = vsel %vm562, %v2088, 0
      %2140 = vmatprep.subr.bf16.mxu0 0
      %2141 = vmatpush1.bf16.msra.mxu0 %v2138
      %2142 = vmatprep.subr.bf16.mxu0 0
      %2143 = vmatpush1.bf16.msra.mxu0 0
      %2144 = vmatprep.subr.bf16.mxu0 0
      %2145 = vmatpush1.bf16.msra.mxu0 0
      %2146 = vmatprep.subr.bf16.mxu0 0
      %2147 = vmatpush1.bf16.msra.mxu0 0
      %2148 = vmatprep.subr.bf16.mxu0 0
      %2149 = vmatpush1.bf16.msra.mxu0 0
      %2150 = vmatprep.subr.bf16.mxu0 0
      %2151 = vmatpush1.bf16.msra.mxu0 0
      %2152 = vmatprep.subr.bf16.mxu0 0
      %2153 = vmatpush1.bf16.msra.mxu0 0
      %2154 = vmatprep.subr.bf16.mxu0 0
      %2155 = vmatpush1.bf16.msra.mxu0 0
      %2156 = vmatprep.subr.bf16.mxu0 0
      %2157 = vmatpush1.bf16.msra.mxu0 0
      %2158 = vmatprep.subr.bf16.mxu0 0
      %2159 = vmatpush1.bf16.msra.mxu0 0
      %2160 = vmatprep.subr.bf16.mxu0 0
      %2161 = vmatpush1.bf16.msra.mxu0 0
      %2162 = vmatprep.subr.bf16.mxu0 0
      %2163 = vmatpush1.bf16.msra.mxu0 0
      %2164 = vmatprep.subr.bf16.mxu0 0
      %2165 = vmatpush1.bf16.msra.mxu0 0
      %2166 = vmatprep.subr.bf16.mxu0 0
      %2167 = vmatpush1.bf16.msra.mxu0 0
      %2168 = vmatprep.subr.bf16.mxu0 0
      %2169 = vmatpush1.bf16.msra.mxu0 0
      %2170 = vmatprep.subr.bf16.mxu0 0
      %2171 = vmatpush1.bf16.msra.mxu0 0
      %2172 = vmatprep.mubr.bf16.mxu0 0
      %2173 = vmatmul.mubr.bf16.gmra.mrb[0].mxu0 %v2090
      %v2174 = vpop.f32.mrb[0].mxu0
      %v2175 = vadd.f32 0.0, %v2174
      %v2176 = vpop.f32.mrb[0].mxu0
      %v2177 = vpop.f32.mrb[0].mxu0
      %v2178 = vadd.f32 0.0, %v2177
      %v2179 = vpop.f32.mrb[0].mxu0
      %2180 = vmatprep.mubr.bf16.mxu0 0
      %2181 = vmatmul.mubr.bf16.gmra.mrb[0].mxu0 %v2093
      %v2182 = vpop.f32.mrb[0].mxu0
      %v2183 = vadd.f32 0.0, %v2182
      %v2184 = vpop.f32.mrb[0].mxu0
      %v2185 = vpop.f32.mrb[0].mxu0
      %v2186 = vadd.f32 0.0, %v2185
      %v2187 = vpop.f32.mrb[0].mxu0
      %2188 = vmatprep.mubr.bf16.mxu0 0
      %2189 = vmatmul.mubr.bf16.gmra.mrb[0].mxu0 %v2096
      %v2190 = vpop.f32.mrb[0].mxu0
      %v2191 = vadd.f32 0.0, %v2190
      %v2192 = vpop.f32.mrb[0].mxu0
      %v2193 = vpop.f32.mrb[0].mxu0
      %v2194 = vadd.f32 0.0, %v2193
      %v2195 = vpop.f32.mrb[0].mxu0
      %2196 = vmatprep.mubr.bf16.mxu0 0
      %2197 = vmatmul.mubr.bf16.gmra.mrb[0].mxu0 %v2099
      %v2198 = vpop.f32.mrb[0].mxu0
      %v2199 = vadd.f32 0.0, %v2198
      %v2200 = vpop.f32.mrb[0].mxu0
      %v2201 = vpop.f32.mrb[0].mxu0
      %v2202 = vadd.f32 0.0, %v2201
      %v2203 = vpop.f32.mrb[0].mxu0
      %2204 = vmatprep.mubr.bf16.mxu0 0
      %2205 = vmatmul.mubr.bf16.gmra.mrb[0].mxu0 %v2102
      %v2206 = vpop.f32.mrb[0].mxu0
      %v2207 = vadd.f32 0.0, %v2206
      %v2208 = vpop.f32.mrb[0].mxu0
      %v2209 = vpop.f32.mrb[0].mxu0
      %v2210 = vadd.f32 0.0, %v2209
      %v2211 = vpop.f32.mrb[0].mxu0
      %2212 = vmatprep.mubr.bf16.mxu0 0
      %2213 = vmatmul.mubr.bf16.gmra.mrb[0].mxu0 %v2105
      %v2214 = vpop.f32.mrb[0].mxu0
      %v2215 = vadd.f32 0.0, %v2214
      %v2216 = vpop.f32.mrb[0].mxu0
      %v2217 = vpop.f32.mrb[0].mxu0
      %v2218 = vadd.f32 0.0, %v2217
      %v2219 = vpop.f32.mrb[0].mxu0
      %2220 = vmatprep.mubr.bf16.mxu0 0
      %2221 = vmatmul.mubr.bf16.gmra.mrb[0].mxu0 %v2108
      %v2222 = vpop.f32.mrb[0].mxu0
      %v2223 = vadd.f32 0.0, %v2222
      %v2224 = vpop.f32.mrb[0].mxu0
      %v2225 = vpop.f32.mrb[0].mxu0
      %v2226 = vadd.f32 0.0, %v2225
      %v2227 = vpop.f32.mrb[0].mxu0
      %2228 = vmatprep.mubr.bf16.mxu0 0
      %2229 = vmatmul.mubr.bf16.gmra.mrb[0].mxu0 %v2111
      %v2230 = vpop.f32.mrb[0].mxu0
      %v2231 = vadd.f32 0.0, %v2230
      %v2232 = vpop.f32.mrb[0].mxu0
      %v2233 = vpop.f32.mrb[0].mxu0
      %v2234 = vadd.f32 0.0, %v2233
      %v2235 = vpop.f32.mrb[0].mxu0
      %2236 = vmatprep.mubr.bf16.mxu0 0
      %2237 = vmatmul.mubr.bf16.gmra.mrb[0].mxu0 %v2114
      %v2238 = vpop.f32.mrb[0].mxu0
      %v2239 = vadd.f32 0.0, %v2238
      %v2240 = vpop.f32.mrb[0].mxu0
      %v2241 = vpop.f32.mrb[0].mxu0
      %v2242 = vadd.f32 0.0, %v2241
      %v2243 = vpop.f32.mrb[0].mxu0
      %2244 = vmatprep.mubr.bf16.mxu0 0
      %2245 = vmatmul.mubr.bf16.gmra.mrb[0].mxu0 %v2117
      %v2246 = vpop.f32.mrb[0].mxu0
      %v2247 = vadd.f32 0.0, %v2246
      %v2248 = vpop.f32.mrb[0].mxu0
      %v2249 = vpop.f32.mrb[0].mxu0
      %v2250 = vadd.f32 0.0, %v2249
      %v2251 = vpop.f32.mrb[0].mxu0
      %2252 = vmatprep.mubr.bf16.mxu0 0
      %2253 = vmatmul.mubr.bf16.gmra.mrb[0].mxu0 %v2120
      %v2254 = vpop.f32.mrb[0].mxu0
      %v2255 = vadd.f32 0.0, %v2254
      %v2256 = vpop.f32.mrb[0].mxu0
      %v2257 = vpop.f32.mrb[0].mxu0
      %v2258 = vadd.f32 0.0, %v2257
      %v2259 = vpop.f32.mrb[0].mxu0
      %2260 = vmatprep.mubr.bf16.mxu0 0
      %2261 = vmatmul.mubr.bf16.gmra.mrb[0].mxu0 %v2123
      %v2262 = vpop.f32.mrb[0].mxu0
      %v2263 = vadd.f32 0.0, %v2262
      %v2264 = vpop.f32.mrb[0].mxu0
      %v2265 = vpop.f32.mrb[0].mxu0
      %v2266 = vadd.f32 0.0, %v2265
      %v2267 = vpop.f32.mrb[0].mxu0
      %2268 = vmatprep.mubr.bf16.mxu0 0
      %2269 = vmatmul.mubr.bf16.gmra.mrb[0].mxu0 %v2126
      %v2270 = vpop.f32.mrb[0].mxu0
      %v2271 = vadd.f32 0.0, %v2270
      %v2272 = vpop.f32.mrb[0].mxu0
      %v2273 = vpop.f32.mrb[0].mxu0
      %v2274 = vadd.f32 0.0, %v2273
      %v2275 = vpop.f32.mrb[0].mxu0
      %2276 = vmatprep.mubr.bf16.mxu0 0
      %2277 = vmatmul.mubr.bf16.gmra.mrb[0].mxu0 %v2129
      %v2278 = vpop.f32.mrb[0].mxu0
      %v2279 = vadd.f32 0.0, %v2278
      %v2280 = vpop.f32.mrb[0].mxu0
      %v2281 = vpop.f32.mrb[0].mxu0
      %v2282 = vadd.f32 0.0, %v2281
      %v2283 = vpop.f32.mrb[0].mxu0
      %2284 = vmatprep.mubr.bf16.mxu0 0
      %2285 = vmatmul.mubr.bf16.gmra.mrb[0].mxu0 %v2132
      %v2286 = vpop.f32.mrb[0].mxu0
      %v2287 = vadd.f32 0.0, %v2286
      %v2288 = vpop.f32.mrb[0].mxu0
      %v2289 = vpop.f32.mrb[0].mxu0
      %v2290 = vadd.f32 0.0, %v2289
      %v2291 = vpop.f32.mrb[0].mxu0
      %2292 = vmatprep.mubr.bf16.mxu0 0
      %2293 = vmatmul.mubr.bf16.gmra.mrb[0].mxu0 %v2135
      %v2294 = vpop.f32.mrb[0].mxu0
      %v2295 = vadd.f32 0.0, %v2294
      %v2296 = vpop.f32.mrb[0].mxu0
      %v2297 = vpop.f32.mrb[0].mxu0
      %v2298 = vadd.f32 0.0, %v2297
      %v2299 = vpop.f32.mrb[0].mxu0
      %2300 = vdwg.mxu0
      %v2301 = vadd.f32 %v1910, %v2175
      %v2302 = vadd.f32 %v1911, %v2178
      %v2303 = vadd.f32 %v1912, %v2183
      %v2304 = vadd.f32 %v1913, %v2186
      %v2305 = vadd.f32 %v1914, %v2191
      %v2306 = vadd.f32 %v1915, %v2194
      %v2307 = vadd.f32 %v1916, %v2199
      %v2308 = vadd.f32 %v1917, %v2202
      %v2309 = vadd.f32 %v1918, %v2207
      %v2310 = vadd.f32 %v1919, %v2210
      %v2311 = vadd.f32 %v1920, %v2215
      %v2312 = vadd.f32 %v1921, %v2218
      %v2313 = vadd.f32 %v1922, %v2223
      %v2314 = vadd.f32 %v1923, %v2226
      %v2315 = vadd.f32 %v1924, %v2231
      %v2316 = vadd.f32 %v1925, %v2234
      %v2317 = vadd.f32 %v1926, %v2239
      %v2318 = vadd.f32 %v1927, %v2242
      %v2319 = vadd.f32 %v1928, %v2247
      %v2320 = vadd.f32 %v1929, %v2250
      %v2321 = vadd.f32 %v1930, %v2255
      %v2322 = vadd.f32 %v1931, %v2258
      %v2323 = vadd.f32 %v1932, %v2263
      %v2324 = vadd.f32 %v1933, %v2266
      %v2325 = vadd.f32 %v1934, %v2271
      %v2326 = vadd.f32 %v1935, %v2274
      %v2327 = vadd.f32 %v1936, %v2279
      %v2328 = vadd.f32 %v1937, %v2282
      %v2329 = vadd.f32 %v1938, %v2287
      %v2330 = vadd.f32 %v1939, %v2290
      %v2331 = vadd.f32 %v1940, %v2295
      %v2332 = vadd.f32 %v1941, %v2298
      %s2333 = scalar_lea.vmem %s3, 10
      %v2334 = vld [vmem:[%s2333] sm:$0x3]
      %v2336 = vsel %vm513, %v2085, 0
      %v2339 = vsel %vm562, %v2334, 0
      %2341 = vmatprep.subr.bf16.mxu0 0
      %2342 = vmatpush1.bf16.msra.mxu0 %v2339
      %2343 = vmatprep.subr.bf16.mxu0 0
      %2344 = vmatpush1.bf16.msra.mxu0 0
      %2345 = vmatprep.subr.bf16.mxu0 0
      %2346 = vmatpush1.bf16.msra.mxu0 0
      %2347 = vmatprep.subr.bf16.mxu0 0
      %2348 = vmatpush1.bf16.msra.mxu0 0
      %2349 = vmatprep.subr.bf16.mxu0 0
      %2350 = vmatpush1.bf16.msra.mxu0 0
      %2351 = vmatprep.subr.bf16.mxu0 0
      %2352 = vmatpush1.bf16.msra.mxu0 0
      %2353 = vmatprep.subr.bf16.mxu0 0
      %2354 = vmatpush1.bf16.msra.mxu0 0
      %2355 = vmatprep.subr.bf16.mxu0 0
      %2356 = vmatpush1.bf16.msra.mxu0 0
      %2357 = vmatprep.subr.bf16.mxu0 0
      %2358 = vmatpush1.bf16.msra.mxu0 0
      %2359 = vmatprep.subr.bf16.mxu0 0
      %2360 = vmatpush1.bf16.msra.mxu0 0
      %2361 = vmatprep.subr.bf16.mxu0 0
      %2362 = vmatpush1.bf16.msra.mxu0 0
      %2363 = vmatprep.subr.bf16.mxu0 0
      %2364 = vmatpush1.bf16.msra.mxu0 0
      %2365 = vmatprep.subr.bf16.mxu0 0
      %2366 = vmatpush1.bf16.msra.mxu0 0
      %2367 = vmatprep.subr.bf16.mxu0 0
      %2368 = vmatpush1.bf16.msra.mxu0 0
      %2369 = vmatprep.subr.bf16.mxu0 0
      %2370 = vmatpush1.bf16.msra.mxu0 0
      %2371 = vmatprep.subr.bf16.mxu0 0
      %2372 = vmatpush1.bf16.msra.mxu0 0
      %2373 = vmatprep.mubr.bf16.mxu0 0
      %2374 = vmatmul.mubr.bf16.gmra.mrb[0].mxu0 %v2093
      %v2375 = vpop.f32.mrb[0].mxu0
      %v2376 = vadd.f32 0.0, %v2375
      %v2377 = vpop.f32.mrb[0].mxu0
      %v2378 = vpop.f32.mrb[0].mxu0
      %v2379 = vadd.f32 0.0, %v2378
      %v2380 = vpop.f32.mrb[0].mxu0
      %2381 = vmatprep.mubr.bf16.mxu0 0
      %2382 = vmatmul.mubr.bf16.gmra.mrb[0].mxu0 %v2096
      %v2383 = vpop.f32.mrb[0].mxu0
      %v2384 = vadd.f32 0.0, %v2383
      %v2385 = vpop.f32.mrb[0].mxu0
      %v2386 = vpop.f32.mrb[0].mxu0
      %v2387 = vadd.f32 0.0, %v2386
      %v2388 = vpop.f32.mrb[0].mxu0
      %2389 = vmatprep.mubr.bf16.mxu0 0
      %2390 = vmatmul.mubr.bf16.gmra.mrb[0].mxu0 %v2099
      %v2391 = vpop.f32.mrb[0].mxu0
      %v2392 = vadd.f32 0.0, %v2391
      %v2393 = vpop.f32.mrb[0].mxu0
      %v2394 = vpop.f32.mrb[0].mxu0
      %v2395 = vadd.f32 0.0, %v2394
      %v2396 = vpop.f32.mrb[0].mxu0
      %2397 = vmatprep.mubr.bf16.mxu0 0
      %2398 = vmatmul.mubr.bf16.gmra.mrb[0].mxu0 %v2102
      %v2399 = vpop.f32.mrb[0].mxu0
      %v2400 = vadd.f32 0.0, %v2399
      %v2401 = vpop.f32.mrb[0].mxu0
      %v2402 = vpop.f32.mrb[0].mxu0
      %v2403 = vadd.f32 0.0, %v2402
      %v2404 = vpop.f32.mrb[0].mxu0
      %2405 = vmatprep.mubr.bf16.mxu0 0
      %2406 = vmatmul.mubr.bf16.gmra.mrb[0].mxu0 %v2105
      %v2407 = vpop.f32.mrb[0].mxu0
      %v2408 = vadd.f32 0.0, %v2407
      %v2409 = vpop.f32.mrb[0].mxu0
      %v2410 = vpop.f32.mrb[0].mxu0
      %v2411 = vadd.f32 0.0, %v2410
      %v2412 = vpop.f32.mrb[0].mxu0
      %2413 = vmatprep.mubr.bf16.mxu0 0
      %2414 = vmatmul.mubr.bf16.gmra.mrb[0].mxu0 %v2108
      %v2415 = vpop.f32.mrb[0].mxu0
      %v2416 = vadd.f32 0.0, %v2415
      %v2417 = vpop.f32.mrb[0].mxu0
      %v2418 = vpop.f32.mrb[0].mxu0
      %v2419 = vadd.f32 0.0, %v2418
      %v2420 = vpop.f32.mrb[0].mxu0
      %2421 = vmatprep.mubr.bf16.mxu0 0
      %2422 = vmatmul.mubr.bf16.gmra.mrb[0].mxu0 %v2111
      %v2423 = vpop.f32.mrb[0].mxu0
      %v2424 = vadd.f32 0.0, %v2423
      %v2425 = vpop.f32.mrb[0].mxu0
      %v2426 = vpop.f32.mrb[0].mxu0
      %v2427 = vadd.f32 0.0, %v2426
      %v2428 = vpop.f32.mrb[0].mxu0
      %2429 = vmatprep.mubr.bf16.mxu0 0
      %2430 = vmatmul.mubr.bf16.gmra.mrb[0].mxu0 %v2114
      %v2431 = vpop.f32.mrb[0].mxu0
      %v2432 = vadd.f32 0.0, %v2431
      %v2433 = vpop.f32.mrb[0].mxu0
      %v2434 = vpop.f32.mrb[0].mxu0
      %v2435 = vadd.f32 0.0, %v2434
      %v2436 = vpop.f32.mrb[0].mxu0
      %2437 = vmatprep.mubr.bf16.mxu0 0
      %2438 = vmatmul.mubr.bf16.gmra.mrb[0].mxu0 %v2117
      %v2439 = vpop.f32.mrb[0].mxu0
      %v2440 = vadd.f32 0.0, %v2439
      %v2441 = vpop.f32.mrb[0].mxu0
      %v2442 = vpop.f32.mrb[0].mxu0
      %v2443 = vadd.f32 0.0, %v2442
      %v2444 = vpop.f32.mrb[0].mxu0
      %2445 = vmatprep.mubr.bf16.mxu0 0
      %2446 = vmatmul.mubr.bf16.gmra.mrb[0].mxu0 %v2120
      %v2447 = vpop.f32.mrb[0].mxu0
      %v2448 = vadd.f32 0.0, %v2447
      %v2449 = vpop.f32.mrb[0].mxu0
      %v2450 = vpop.f32.mrb[0].mxu0
      %v2451 = vadd.f32 0.0, %v2450
      %v2452 = vpop.f32.mrb[0].mxu0
      %2453 = vmatprep.mubr.bf16.mxu0 0
      %2454 = vmatmul.mubr.bf16.gmra.mrb[0].mxu0 %v2123
      %v2455 = vpop.f32.mrb[0].mxu0
      %v2456 = vadd.f32 0.0, %v2455
      %v2457 = vpop.f32.mrb[0].mxu0
      %v2458 = vpop.f32.mrb[0].mxu0
      %v2459 = vadd.f32 0.0, %v2458
      %v2460 = vpop.f32.mrb[0].mxu0
      %2461 = vmatprep.mubr.bf16.mxu0 0
      %2462 = vmatmul.mubr.bf16.gmra.mrb[0].mxu0 %v2126
      %v2463 = vpop.f32.mrb[0].mxu0
      %v2464 = vadd.f32 0.0, %v2463
      %v2465 = vpop.f32.mrb[0].mxu0
      %v2466 = vpop.f32.mrb[0].mxu0
      %v2467 = vadd.f32 0.0, %v2466
      %v2468 = vpop.f32.mrb[0].mxu0
      %2469 = vmatprep.mubr.bf16.mxu0 0
      %2470 = vmatmul.mubr.bf16.gmra.mrb[0].mxu0 %v2129
      %v2471 = vpop.f32.mrb[0].mxu0
      %v2472 = vadd.f32 0.0, %v2471
      %v2473 = vpop.f32.mrb[0].mxu0
      %v2474 = vpop.f32.mrb[0].mxu0
      %v2475 = vadd.f32 0.0, %v2474
      %v2476 = vpop.f32.mrb[0].mxu0
      %2477 = vmatprep.mubr.bf16.mxu0 0
      %2478 = vmatmul.mubr.bf16.gmra.mrb[0].mxu0 %v2132
      %v2479 = vpop.f32.mrb[0].mxu0
      %v2480 = vadd.f32 0.0, %v2479
      %v2481 = vpop.f32.mrb[0].mxu0
      %v2482 = vpop.f32.mrb[0].mxu0
      %v2483 = vadd.f32 0.0, %v2482
      %v2484 = vpop.f32.mrb[0].mxu0
      %2485 = vmatprep.mubr.bf16.mxu0 0
      %2486 = vmatmul.mubr.bf16.gmra.mrb[0].mxu0 %v2135
      %v2487 = vpop.f32.mrb[0].mxu0
      %v2488 = vadd.f32 0.0, %v2487
      %v2489 = vpop.f32.mrb[0].mxu0
      %v2490 = vpop.f32.mrb[0].mxu0
      %v2491 = vadd.f32 0.0, %v2490
      %v2492 = vpop.f32.mrb[0].mxu0
      %2493 = vmatprep.mubr.bf16.mxu0 0
      %2494 = vmatmul.mubr.bf16.gmra.mrb[0].mxu0 %v2336
      %v2495 = vpop.f32.mrb[0].mxu0
      %v2496 = vadd.f32 0.0, %v2495
      %v2497 = vpop.f32.mrb[0].mxu0
      %v2498 = vpop.f32.mrb[0].mxu0
      %v2499 = vadd.f32 0.0, %v2498
      %v2500 = vpop.f32.mrb[0].mxu0
      %2501 = vdwg.mxu0
      %v2502 = vadd.f32 %v2301, %v2376
      %v2503 = vadd.f32 %v2302, %v2379
      %v2504 = vadd.f32 %v2303, %v2384
      %v2505 = vadd.f32 %v2304, %v2387
      %v2506 = vadd.f32 %v2305, %v2392
      %v2507 = vadd.f32 %v2306, %v2395
      %v2508 = vadd.f32 %v2307, %v2400
      %v2509 = vadd.f32 %v2308, %v2403
      %v2510 = vadd.f32 %v2309, %v2408
      %v2511 = vadd.f32 %v2310, %v2411
      %v2512 = vadd.f32 %v2311, %v2416
      %v2513 = vadd.f32 %v2312, %v2419
      %v2514 = vadd.f32 %v2313, %v2424
      %v2515 = vadd.f32 %v2314, %v2427
      %v2516 = vadd.f32 %v2315, %v2432
      %v2517 = vadd.f32 %v2316, %v2435
      %v2518 = vadd.f32 %v2317, %v2440
      %v2519 = vadd.f32 %v2318, %v2443
      %v2520 = vadd.f32 %v2319, %v2448
      %v2521 = vadd.f32 %v2320, %v2451
      %v2522 = vadd.f32 %v2321, %v2456
      %v2523 = vadd.f32 %v2322, %v2459
      %v2524 = vadd.f32 %v2323, %v2464
      %v2525 = vadd.f32 %v2324, %v2467
      %v2526 = vadd.f32 %v2325, %v2472
      %v2527 = vadd.f32 %v2326, %v2475
      %v2528 = vadd.f32 %v2327, %v2480
      %v2529 = vadd.f32 %v2328, %v2483
      %v2530 = vadd.f32 %v2329, %v2488
      %v2531 = vadd.f32 %v2330, %v2491
      %v2532 = vadd.f32 %v2331, %v2496
      %v2533 = vadd.f32 %v2332, %v2499
      %s2534 = scalar_lea.vmem %s3, 16
      %v2535 = vld [vmem:[%s2534] sm:$0x3]
      %v2537 = vsel %vm513, %v2086, 0
      %v2540 = vsel %vm562, %v2535, 0
      %2542 = vmatprep.subr.bf16.mxu0 0
      %2543 = vmatpush1.bf16.msra.mxu0 %v2540
      %2544 = vmatprep.subr.bf16.mxu0 0
      %2545 = vmatpush1.bf16.msra.mxu0 0
      %2546 = vmatprep.subr.bf16.mxu0 0
      %2547 = vmatpush1.bf16.msra.mxu0 0
      %2548 = vmatprep.subr.bf16.mxu0 0
      %2549 = vmatpush1.bf16.msra.mxu0 0
      %2550 = vmatprep.subr.bf16.mxu0 0
      %2551 = vmatpush1.bf16.msra.mxu0 0
      %2552 = vmatprep.subr.bf16.mxu0 0
      %2553 = vmatpush1.bf16.msra.mxu0 0
      %2554 = vmatprep.subr.bf16.mxu0 0
      %2555 = vmatpush1.bf16.msra.mxu0 0
      %2556 = vmatprep.subr.bf16.mxu0 0
      %2557 = vmatpush1.bf16.msra.mxu0 0
      %2558 = vmatprep.subr.bf16.mxu0 0
      %2559 = vmatpush1.bf16.msra.mxu0 0
      %2560 = vmatprep.subr.bf16.mxu0 0
      %2561 = vmatpush1.bf16.msra.mxu0 0
      %2562 = vmatprep.subr.bf16.mxu0 0
      %2563 = vmatpush1.bf16.msra.mxu0 0
      %2564 = vmatprep.subr.bf16.mxu0 0
      %2565 = vmatpush1.bf16.msra.mxu0 0
      %2566 = vmatprep.subr.bf16.mxu0 0
      %2567 = vmatpush1.bf16.msra.mxu0 0
      %2568 = vmatprep.subr.bf16.mxu0 0
      %2569 = vmatpush1.bf16.msra.mxu0 0
      %2570 = vmatprep.subr.bf16.mxu0 0
      %2571 = vmatpush1.bf16.msra.mxu0 0
      %2572 = vmatprep.subr.bf16.mxu0 0
      %2573 = vmatpush1.bf16.msra.mxu0 0
      %2574 = vmatprep.mubr.bf16.mxu0 0
      %2575 = vmatmul.mubr.bf16.gmra.mrb[0].mxu0 %v2096
      %v2576 = vpop.f32.mrb[0].mxu0
      %v2577 = vadd.f32 0.0, %v2576
      %v2578 = vpop.f32.mrb[0].mxu0
      %v2579 = vpop.f32.mrb[0].mxu0
      %v2580 = vadd.f32 0.0, %v2579
      %v2581 = vpop.f32.mrb[0].mxu0
      %2582 = vmatprep.mubr.bf16.mxu0 0
      %2583 = vmatmul.mubr.bf16.gmra.mrb[0].mxu0 %v2099
      %v2584 = vpop.f32.mrb[0].mxu0
      %v2585 = vadd.f32 0.0, %v2584
      %v2586 = vpop.f32.mrb[0].mxu0
      %v2587 = vpop.f32.mrb[0].mxu0
      %v2588 = vadd.f32 0.0, %v2587
      %v2589 = vpop.f32.mrb[0].mxu0
      %2590 = vmatprep.mubr.bf16.mxu0 0
      %2591 = vmatmul.mubr.bf16.gmra.mrb[0].mxu0 %v2102
      %v2592 = vpop.f32.mrb[0].mxu0
      %v2593 = vadd.f32 0.0, %v2592
      %v2594 = vpop.f32.mrb[0].mxu0
      %v2595 = vpop.f32.mrb[0].mxu0
      %v2596 = vadd.f32 0.0, %v2595
      %v2597 = vpop.f32.mrb[0].mxu0
      %2598 = vmatprep.mubr.bf16.mxu0 0
      %2599 = vmatmul.mubr.bf16.gmra.mrb[0].mxu0 %v2105
      %v2600 = vpop.f32.mrb[0].mxu0
      %v2601 = vadd.f32 0.0, %v2600
      %v2602 = vpop.f32.mrb[0].mxu0
      %v2603 = vpop.f32.mrb[0].mxu0
      %v2604 = vadd.f32 0.0, %v2603
      %v2605 = vpop.f32.mrb[0].mxu0
      %2606 = vmatprep.mubr.bf16.mxu0 0
      %2607 = vmatmul.mubr.bf16.gmra.mrb[0].mxu0 %v2108
      %v2608 = vpop.f32.mrb[0].mxu0
      %v2609 = vadd.f32 0.0, %v2608
      %v2610 = vpop.f32.mrb[0].mxu0
      %v2611 = vpop.f32.mrb[0].mxu0
      %v2612 = vadd.f32 0.0, %v2611
      %v2613 = vpop.f32.mrb[0].mxu0
      %2614 = vmatprep.mubr.bf16.mxu0 0
      %2615 = vmatmul.mubr.bf16.gmra.mrb[0].mxu0 %v2111
      %v2616 = vpop.f32.mrb[0].mxu0
      %v2617 = vadd.f32 0.0, %v2616
      %v2618 = vpop.f32.mrb[0].mxu0
      %v2619 = vpop.f32.mrb[0].mxu0
      %v2620 = vadd.f32 0.0, %v2619
      %v2621 = vpop.f32.mrb[0].mxu0
      %2622 = vmatprep.mubr.bf16.mxu0 0
      %2623 = vmatmul.mubr.bf16.gmra.mrb[0].mxu0 %v2114
      %v2624 = vpop.f32.mrb[0].mxu0
      %v2625 = vadd.f32 0.0, %v2624
      %v2626 = vpop.f32.mrb[0].mxu0
      %v2627 = vpop.f32.mrb[0].mxu0
      %v2628 = vadd.f32 0.0, %v2627
      %v2629 = vpop.f32.mrb[0].mxu0
      %2630 = vmatprep.mubr.bf16.mxu0 0
      %2631 = vmatmul.mubr.bf16.gmra.mrb[0].mxu0 %v2117
      %v2632 = vpop.f32.mrb[0].mxu0
      %v2633 = vadd.f32 0.0, %v2632
      %v2634 = vpop.f32.mrb[0].mxu0
      %v2635 = vpop.f32.mrb[0].mxu0
      %v2636 = vadd.f32 0.0, %v2635
      %v2637 = vpop.f32.mrb[0].mxu0
      %2638 = vmatprep.mubr.bf16.mxu0 0
      %2639 = vmatmul.mubr.bf16.gmra.mrb[0].mxu0 %v2120
      %v2640 = vpop.f32.mrb[0].mxu0
      %v2641 = vadd.f32 0.0, %v2640
      %v2642 = vpop.f32.mrb[0].mxu0
      %v2643 = vpop.f32.mrb[0].mxu0
      %v2644 = vadd.f32 0.0, %v2643
      %v2645 = vpop.f32.mrb[0].mxu0
      %2646 = vmatprep.mubr.bf16.mxu0 0
      %2647 = vmatmul.mubr.bf16.gmra.mrb[0].mxu0 %v2123
      %v2648 = vpop.f32.mrb[0].mxu0
      %v2649 = vadd.f32 0.0, %v2648
      %v2650 = vpop.f32.mrb[0].mxu0
      %v2651 = vpop.f32.mrb[0].mxu0
      %v2652 = vadd.f32 0.0, %v2651
      %v2653 = vpop.f32.mrb[0].mxu0
      %2654 = vmatprep.mubr.bf16.mxu0 0
      %2655 = vmatmul.mubr.bf16.gmra.mrb[0].mxu0 %v2126
      %v2656 = vpop.f32.mrb[0].mxu0
      %v2657 = vadd.f32 0.0, %v2656
      %v2658 = vpop.f32.mrb[0].mxu0
      %v2659 = vpop.f32.mrb[0].mxu0
      %v2660 = vadd.f32 0.0, %v2659
      %v2661 = vpop.f32.mrb[0].mxu0
      %2662 = vmatprep.mubr.bf16.mxu0 0
      %2663 = vmatmul.mubr.bf16.gmra.mrb[0].mxu0 %v2129
      %v2664 = vpop.f32.mrb[0].mxu0
      %v2665 = vadd.f32 0.0, %v2664
      %v2666 = vpop.f32.mrb[0].mxu0
      %v2667 = vpop.f32.mrb[0].mxu0
      %v2668 = vadd.f32 0.0, %v2667
      %v2669 = vpop.f32.mrb[0].mxu0
      %2670 = vmatprep.mubr.bf16.mxu0 0
      %2671 = vmatmul.mubr.bf16.gmra.mrb[0].mxu0 %v2132
      %v2672 = vpop.f32.mrb[0].mxu0
      %v2673 = vadd.f32 0.0, %v2672
      %v2674 = vpop.f32.mrb[0].mxu0
      %v2675 = vpop.f32.mrb[0].mxu0
      %v2676 = vadd.f32 0.0, %v2675
      %v2677 = vpop.f32.mrb[0].mxu0
      %2678 = vmatprep.mubr.bf16.mxu0 0
      %2679 = vmatmul.mubr.bf16.gmra.mrb[0].mxu0 %v2135
      %v2680 = vpop.f32.mrb[0].mxu0
      %v2681 = vadd.f32 0.0, %v2680
      %v2682 = vpop.f32.mrb[0].mxu0
      %v2683 = vpop.f32.mrb[0].mxu0
      %v2684 = vadd.f32 0.0, %v2683
      %v2685 = vpop.f32.mrb[0].mxu0
      %2686 = vmatprep.mubr.bf16.mxu0 0
      %2687 = vmatmul.mubr.bf16.gmra.mrb[0].mxu0 %v2336
      %v2688 = vpop.f32.mrb[0].mxu0
      %v2689 = vadd.f32 0.0, %v2688
      %v2690 = vpop.f32.mrb[0].mxu0
      %v2691 = vpop.f32.mrb[0].mxu0
      %v2692 = vadd.f32 0.0, %v2691
      %v2693 = vpop.f32.mrb[0].mxu0
      %2694 = vmatprep.mubr.bf16.mxu0 0
      %2695 = vmatmul.mubr.bf16.gmra.mrb[0].mxu0 %v2537
      %v2696 = vpop.f32.mrb[0].mxu0
      %v2697 = vadd.f32 0.0, %v2696
      %v2698 = vpop.f32.mrb[0].mxu0
      %v2699 = vpop.f32.mrb[0].mxu0
      %v2700 = vadd.f32 0.0, %v2699
      %v2701 = vpop.f32.mrb[0].mxu0
      %2702 = vdwg.mxu0
      %v2703 = vadd.f32 %v2502, %v2577
      %v2704 = vadd.f32 %v2503, %v2580
      %v2705 = vadd.f32 %v2504, %v2585
      %v2706 = vadd.f32 %v2505, %v2588
      %v2707 = vadd.f32 %v2506, %v2593
      %v2708 = vadd.f32 %v2507, %v2596
      %v2709 = vadd.f32 %v2508, %v2601
      %v2710 = vadd.f32 %v2509, %v2604
      %v2711 = vadd.f32 %v2510, %v2609
      %v2712 = vadd.f32 %v2511, %v2612
      %v2713 = vadd.f32 %v2512, %v2617
      %v2714 = vadd.f32 %v2513, %v2620
      %v2715 = vadd.f32 %v2514, %v2625
      %v2716 = vadd.f32 %v2515, %v2628
      %v2717 = vadd.f32 %v2516, %v2633
      %v2718 = vadd.f32 %v2517, %v2636
      %v2719 = vadd.f32 %v2518, %v2641
      %v2720 = vadd.f32 %v2519, %v2644
      %v2721 = vadd.f32 %v2520, %v2649
      %v2722 = vadd.f32 %v2521, %v2652
      %v2723 = vadd.f32 %v2522, %v2657
      %v2724 = vadd.f32 %v2523, %v2660
      %v2725 = vadd.f32 %v2524, %v2665
      %v2726 = vadd.f32 %v2525, %v2668
      %v2727 = vadd.f32 %v2526, %v2673
      %v2728 = vadd.f32 %v2527, %v2676
      %v2729 = vadd.f32 %v2528, %v2681
      %v2730 = vadd.f32 %v2529, %v2684
      %v2731 = vadd.f32 %v2530, %v2689
      %v2732 = vadd.f32 %v2531, %v2692
      %v2733 = vadd.f32 %v2532, %v2697
      %v2734 = vadd.f32 %v2533, %v2700
      %2735 = vst.msk [vmem:[%s424] sm:$0xff] %vm513, %v2703
      %2736 = vst.msk [vmem:[%s424 + $0x8] sm:$0xff] %vm513, %v2704
      %2737 = vst.msk [vmem:[%s424 + $0x10] sm:$0xff] %vm513, %v2705
      %2738 = vst.msk [vmem:[%s424 + $0x18] sm:$0xff] %vm513, %v2706
      %2739 = vst.msk [vmem:[%s424 + $0x20] sm:$0xff] %vm513, %v2707
      %2740 = vst.msk [vmem:[%s424 + $0x28] sm:$0xff] %vm513, %v2708
      %2741 = vst.msk [vmem:[%s424 + $0x30] sm:$0xff] %vm513, %v2709
      %2742 = vst.msk [vmem:[%s424 + $0x38] sm:$0xff] %vm513, %v2710
      %2743 = vst.msk [vmem:[%s424 + $0x40] sm:$0xff] %vm513, %v2711
      %2744 = vst.msk [vmem:[%s424 + $0x48] sm:$0xff] %vm513, %v2712
      %2745 = vst.msk [vmem:[%s424 + $0x50] sm:$0xff] %vm513, %v2713
      %2746 = vst.msk [vmem:[%s424 + $0x58] sm:$0xff] %vm513, %v2714
      %2747 = vst.msk [vmem:[%s424 + $0x60] sm:$0xff] %vm513, %v2715
      %2748 = vst.msk [vmem:[%s424 + $0x68] sm:$0xff] %vm513, %v2716
      %2749 = vst.msk [vmem:[%s424 + $0x70] sm:$0xff] %vm513, %v2717
      %2750 = vst.msk [vmem:[%s424 + $0x78] sm:$0xff] %vm513, %v2718
      %2751 = vst.msk [vmem:[%s424 + $0x80] sm:$0xff] %vm513, %v2719
      %2752 = vst.msk [vmem:[%s424 + $0x88] sm:$0xff] %vm513, %v2720
      %2753 = vst.msk [vmem:[%s424 + $0x90] sm:$0xff] %vm513, %v2721
      %2754 = vst.msk [vmem:[%s424 + $0x98] sm:$0xff] %vm513, %v2722
      %2755 = vst.msk [vmem:[%s424 + $0xa0] sm:$0xff] %vm513, %v2723
      %2756 = vst.msk [vmem:[%s424 + $0xa8] sm:$0xff] %vm513, %v2724
      %2757 = vst.msk [vmem:[%s424 + $0xb0] sm:$0xff] %vm513, %v2725
      %2758 = vst.msk [vmem:[%s424 + $0xb8] sm:$0xff] %vm513, %v2726
      %2759 = vst.msk [vmem:[%s424 + $0xc0] sm:$0xff] %vm513, %v2727
      %2760 = vst.msk [vmem:[%s424 + $0xc8] sm:$0xff] %vm513, %v2728
      %2761 = vst.msk [vmem:[%s424 + $0xd0] sm:$0xff] %vm513, %v2729
      %2762 = vst.msk [vmem:[%s424 + $0xd8] sm:$0xff] %vm513, %v2730
      %2763 = vst.msk [vmem:[%s424 + $0xe0] sm:$0xff] %vm513, %v2731
      %2764 = vst.msk [vmem:[%s424 + $0xe8] sm:$0xff] %vm513, %v2732
      %2765 = vst.msk [vmem:[%s424 + $0xf0] sm:$0xff] %vm513, %v2733
      %2766 = vst.msk [vmem:[%s424 + $0xf8] sm:$0xff] %vm513, %v2734
      %v2767 = vsel %vm513, %v2703, 0.0
      %v2768 = vsel %vm513, %v2704, 0.0
      %v2769 = vadd.f32 %v2767, %v2768
      %v2770 = vsel %vm513, %v2705, 0.0
      %v2771 = vadd.f32 %v2769, %v2770
      %v2772 = vsel %vm513, %v2706, 0.0
      %v2773 = vadd.f32 %v2771, %v2772
      %v2774 = vsel %vm513, %v2707, 0.0
      %v2775 = vadd.f32 %v2773, %v2774
      %v2776 = vsel %vm513, %v2708, 0.0
      %v2777 = vadd.f32 %v2775, %v2776
      %v2778 = vsel %vm513, %v2709, 0.0
      %v2779 = vadd.f32 %v2777, %v2778
      %v2780 = vsel %vm513, %v2710, 0.0
      %v2781 = vadd.f32 %v2779, %v2780
      %v2782 = vsel %vm513, %v2711, 0.0
      %v2783 = vadd.f32 %v2781, %v2782
      %v2784 = vsel %vm513, %v2712, 0.0
      %v2785 = vadd.f32 %v2783, %v2784
      %v2786 = vsel %vm513, %v2713, 0.0
      %v2787 = vadd.f32 %v2785, %v2786
      %v2788 = vsel %vm513, %v2714, 0.0
      %v2789 = vadd.f32 %v2787, %v2788
      %v2790 = vsel %vm513, %v2715, 0.0
      %v2791 = vadd.f32 %v2789, %v2790
      %v2792 = vsel %vm513, %v2716, 0.0
      %v2793 = vadd.f32 %v2791, %v2792
      %v2794 = vsel %vm513, %v2717, 0.0
      %v2795 = vadd.f32 %v2793, %v2794
      %v2796 = vsel %vm513, %v2718, 0.0
      %v2797 = vadd.f32 %v2795, %v2796
      %v2798 = vsel %vm513, %v2719, 0.0
      %v2799 = vadd.f32 %v2797, %v2798
      %v2800 = vsel %vm513, %v2720, 0.0
      %v2801 = vadd.f32 %v2799, %v2800
      %v2802 = vsel %vm513, %v2721, 0.0
      %v2803 = vadd.f32 %v2801, %v2802
      %v2804 = vsel %vm513, %v2722, 0.0
      %v2805 = vadd.f32 %v2803, %v2804
      %v2806 = vsel %vm513, %v2723, 0.0
      %v2807 = vadd.f32 %v2805, %v2806
      %v2808 = vsel %vm513, %v2724, 0.0
      %v2809 = vadd.f32 %v2807, %v2808
      %v2810 = vsel %vm513, %v2725, 0.0
      %v2811 = vadd.f32 %v2809, %v2810
      %v2812 = vsel %vm513, %v2726, 0.0
      %v2813 = vadd.f32 %v2811, %v2812
      %v2814 = vsel %vm513, %v2727, 0.0
      %v2815 = vadd.f32 %v2813, %v2814
      %v2816 = vsel %vm513, %v2728, 0.0
      %v2817 = vadd.f32 %v2815, %v2816
      %v2818 = vsel %vm513, %v2729, 0.0
      %v2819 = vadd.f32 %v2817, %v2818
      %v2820 = vsel %vm513, %v2730, 0.0
      %v2821 = vadd.f32 %v2819, %v2820
      %v2822 = vsel %vm513, %v2731, 0.0
      %v2823 = vadd.f32 %v2821, %v2822
      %v2824 = vsel %vm513, %v2732, 0.0
      %v2825 = vadd.f32 %v2823, %v2824
      %v2826 = vsel %vm513, %v2733, 0.0
      %v2827 = vadd.f32 %v2825, %v2826
      %v2828 = vsel %vm513, %v2734, 0.0
      %v2829 = vadd.f32 %v2827, %v2828
      %v2830 = vrot.slane %v2829, 4
      %v2831 = vadd.f32 %v2829, %v2830
      %v2832 = vrot.slane %v2831, 2
      %v2833 = vadd.f32 %v2831, %v2832
      %v2834 = vrot.slane %v2833, 1
      %v2835 = vadd.f32 %v2833, %v2834
      %vm2836 = vcmask 24576
      %2837 = vst.msk [vmem:[%s430] sm:$0x1] %vm2836, %v2835
      %v2838 = vmul.f32 %v2703, %v2703
      %v2839 = vmul.f32 %v2704, %v2704
      %v2840 = vmul.f32 %v2705, %v2705
      %v2841 = vmul.f32 %v2706, %v2706
      %v2842 = vmul.f32 %v2707, %v2707
      %v2843 = vmul.f32 %v2708, %v2708
      %v2844 = vmul.f32 %v2709, %v2709
      %v2845 = vmul.f32 %v2710, %v2710
      %v2846 = vmul.f32 %v2711, %v2711
      %v2847 = vmul.f32 %v2712, %v2712
      %v2848 = vmul.f32 %v2713, %v2713
      %v2849 = vmul.f32 %v2714, %v2714
      %v2850 = vmul.f32 %v2715, %v2715
      %v2851 = vmul.f32 %v2716, %v2716
      %v2852 = vmul.f32 %v2717, %v2717
      %v2853 = vmul.f32 %v2718, %v2718
      %v2854 = vmul.f32 %v2719, %v2719
      %v2855 = vmul.f32 %v2720, %v2720
      %v2856 = vmul.f32 %v2721, %v2721
      %v2857 = vmul.f32 %v2722, %v2722
      %v2858 = vmul.f32 %v2723, %v2723
      %v2859 = vmul.f32 %v2724, %v2724
      %v2860 = vmul.f32 %v2725, %v2725
      %v2861 = vmul.f32 %v2726, %v2726
      %v2862 = vmul.f32 %v2727, %v2727
      %v2863 = vmul.f32 %v2728, %v2728
      %v2864 = vmul.f32 %v2729, %v2729
      %v2865 = vmul.f32 %v2730, %v2730
      %v2866 = vmul.f32 %v2731, %v2731
      %v2867 = vmul.f32 %v2732, %v2732
      %v2868 = vmul.f32 %v2733, %v2733
      %v2869 = vmul.f32 %v2734, %v2734
      %v2870 = vsel %vm513, %v2838, 0.0
      %v2871 = vsel %vm513, %v2839, 0.0
      %v2872 = vadd.f32 %v2870, %v2871
      %v2873 = vsel %vm513, %v2840, 0.0
      %v2874 = vadd.f32 %v2872, %v2873
      %v2875 = vsel %vm513, %v2841, 0.0
      %v2876 = vadd.f32 %v2874, %v2875
      %v2877 = vsel %vm513, %v2842, 0.0
      %v2878 = vadd.f32 %v2876, %v2877
      %v2879 = vsel %vm513, %v2843, 0.0
      %v2880 = vadd.f32 %v2878, %v2879
      %v2881 = vsel %vm513, %v2844, 0.0
      %v2882 = vadd.f32 %v2880, %v2881
      %v2883 = vsel %vm513, %v2845, 0.0
      %v2884 = vadd.f32 %v2882, %v2883
      %v2885 = vsel %vm513, %v2846, 0.0
      %v2886 = vadd.f32 %v2884, %v2885
      %v2887 = vsel %vm513, %v2847, 0.0
      %v2888 = vadd.f32 %v2886, %v2887
      %v2889 = vsel %vm513, %v2848, 0.0
      %v2890 = vadd.f32 %v2888, %v2889
      %v2891 = vsel %vm513, %v2849, 0.0
      %v2892 = vadd.f32 %v2890, %v2891
      %v2893 = vsel %vm513, %v2850, 0.0
      %v2894 = vadd.f32 %v2892, %v2893
      %v2895 = vsel %vm513, %v2851, 0.0
      %v2896 = vadd.f32 %v2894, %v2895
      %v2897 = vsel %vm513, %v2852, 0.0
      %v2898 = vadd.f32 %v2896, %v2897
      %v2899 = vsel %vm513, %v2853, 0.0
      %v2900 = vadd.f32 %v2898, %v2899
      %v2901 = vsel %vm513, %v2854, 0.0
      %v2902 = vadd.f32 %v2900, %v2901
      %v2903 = vsel %vm513, %v2855, 0.0
      %v2904 = vadd.f32 %v2902, %v2903
      %v2905 = vsel %vm513, %v2856, 0.0
      %v2906 = vadd.f32 %v2904, %v2905
      %v2907 = vsel %vm513, %v2857, 0.0
      %v2908 = vadd.f32 %v2906, %v2907
      %v2909 = vsel %vm513, %v2858, 0.0
      %v2910 = vadd.f32 %v2908, %v2909
      %v2911 = vsel %vm513, %v2859, 0.0
      %v2912 = vadd.f32 %v2910, %v2911
      %v2913 = vsel %vm513, %v2860, 0.0
      %v2914 = vadd.f32 %v2912, %v2913
      %v2915 = vsel %vm513, %v2861, 0.0
      %v2916 = vadd.f32 %v2914, %v2915
      %v2917 = vsel %vm513, %v2862, 0.0
      %v2918 = vadd.f32 %v2916, %v2917
      %v2919 = vsel %vm513, %v2863, 0.0
      %v2920 = vadd.f32 %v2918, %v2919
      %v2921 = vsel %vm513, %v2864, 0.0
      %v2922 = vadd.f32 %v2920, %v2921
      %v2923 = vsel %vm513, %v2865, 0.0
      %v2924 = vadd.f32 %v2922, %v2923
      %v2925 = vsel %vm513, %v2866, 0.0
      %v2926 = vadd.f32 %v2924, %v2925
      %v2927 = vsel %vm513, %v2867, 0.0
      %v2928 = vadd.f32 %v2926, %v2927
      %v2929 = vsel %vm513, %v2868, 0.0
      %v2930 = vadd.f32 %v2928, %v2929
      %v2931 = vsel %vm513, %v2869, 0.0
      %v2932 = vadd.f32 %v2930, %v2931
      %v2933 = vrot.slane %v2932, 4
      %v2934 = vadd.f32 %v2932, %v2933
      %v2935 = vrot.slane %v2934, 2
      %v2936 = vadd.f32 %v2934, %v2935
      %v2937 = vrot.slane %v2936, 1
      %v2938 = vadd.f32 %v2936, %v2937
      %2939 = vst.msk [vmem:[%s435] sm:$0x1] %vm2836, %v2938
      %s2940 = sadd.s32 %s22, %s23
      %s2941 = smul.u32 32, %s2940
      %p2942 = scmp.lt.s32.totalorder %s2941, 63
      %s2943 = scalar_select %p2942, %s2941, 63
      %s2944 = smul.addr %s2943, 8
      %s2945 = scalar_lea.vmem %s4, %s2944
      %s2946 = sadd.s32 %s22, %s23
      %p2947 = scmp.lt.s32.totalorder %s2946, 1
      %s2948 = scalar_select %p2947, %s2946, 1
      %s2949 = scalar_lea.vmem %s5, %s2948
      %s2950 = sadd.s32 %s22, %s23
      %p2951 = scmp.lt.s32.totalorder %s2950, 1
      %s2952 = scalar_select %p2951, %s2950, 1
      %s2953 = scalar_lea.vmem %s6, %s2952
      // Predicated region
      $region37: #{resnet_block.2} parent=35 // pred_check
        %p2954 = pneg %p163
      $region38: #{resnet_block.2} parent=35 // pred_check_branch
        %2956 = sbr.rel (%p2954) target = $region40
      $region39: #{resnet_block.2} parent=35 // pred_region
        %s2957 = sadd.s32 %s22, %s23
        %s2958 = smul.u32 32, %s2957
      $region40: #{resnet_block.2} parent=35 // pred_fallthru
        _
      // Predicated region
      $region41: #{resnet_block.2} parent=35 // pred_check
        %p2959 = pneg %p191
      $region42: #{resnet_block.2} parent=35 // pred_check_branch
        %2961 = sbr.rel (%p2959) target = $region44
      $region43: #{resnet_block.2} parent=35 // pred_region
        %s2962 = sadd.s32 %s22, %s23
      $region44: #{resnet_block.2} parent=35 // pred_fallthru
        _
      // Predicated region
      $region45: #{resnet_block.2} parent=35 // pred_check
        %p2963 = pneg %p219
      $region46: #{resnet_block.2} parent=35 // pred_check_branch
        %2965 = sbr.rel (%p2963) target = $region48
      $region47: #{resnet_block.2} parent=35 // pred_region
        %s2966 = sadd.s32 %s22, %s23
      $region48: #{resnet_block.2} parent=35 // pred_fallthru
        _
    $region36: #{resnet_block.2} parent=5 // pred_fallthru
      _
    %p2967 = scmp.le.s32.totalorder 2, %s13
    // Predicated region
    $region49: #{resnet_block.2} parent=5 // pred_check
      %p2968 = pneg %p2967
    $region50: #{resnet_block.2} parent=5 // pred_check_branch
      %2970 = sbr.rel (%p2968) target = $region52
    $region51: #{resnet_block.2} parent=5 // pred_region
      %s2971 = ssub.s32 %s13, 2
      // Predicated region
      $region53: #{resnet_block.2} parent=51 // pred_check
        %p2972 = pneg %p169
      $region54: #{resnet_block.2} parent=51 // pred_check_branch
        %2974 = sbr.rel (%p2972) target = $region56
      $region55: #{resnet_block.2} parent=51 // pred_region
        %s2975 = sadd.s32 %s24, %s25
        %s2976 = smul.u32 32, %s2975
        %p2977 = scmp.lt.s32.totalorder %s2976, 63
        %s2978 = scalar_select %p2977, %s2976, 63
        %s2979 = smul.addr %s2978, 8
        %s2980 = scalar_lea.vmem %s4, %s2979
      $region56: #{resnet_block.2} parent=51 // pred_fallthru
        _
      // Predicated region
      $region57: #{resnet_block.2} parent=51 // pred_check
        %p2981 = pneg %p197
      $region58: #{resnet_block.2} parent=51 // pred_check_branch
        %2983 = sbr.rel (%p2981) target = $region60
      $region59: #{resnet_block.2} parent=51 // pred_region
        %s2984 = sadd.s32 %s24, %s25
        %p2985 = scmp.lt.s32.totalorder %s2984, 1
        %s2986 = scalar_select %p2985, %s2984, 1
        %s2987 = scalar_lea.vmem %s5, %s2986
      $region60: #{resnet_block.2} parent=51 // pred_fallthru
        _
      // Predicated region
      $region61: #{resnet_block.2} parent=51 // pred_check
        %p2988 = pneg %p225
      $region62: #{resnet_block.2} parent=51 // pred_check_branch
        %2990 = sbr.rel (%p2988) target = $region64
      $region63: #{resnet_block.2} parent=51 // pred_region
        %s2991 = sadd.s32 %s24, %s25
        %p2992 = scmp.lt.s32.totalorder %s2991, 1
        %s2993 = scalar_select %p2992, %s2991, 1
        %s2994 = scalar_lea.vmem %s6, %s2993
      $region64: #{resnet_block.2} parent=51 // pred_fallthru
        _
    $region52: #{resnet_block.2} parent=5 // pred_fallthru
      _
  $region6: #{resnet_block.2} parent=0 // loop_footer
    %s17 = sadd.s32 1, %s13
  $region7: #{resnet_block.2} parent=0 // loop_footer_branch
    %12 = sbr.rel target = $region3
  $region8: #{resnet_block.2} parent=0 // loop_exit
    _

</llo_original>
